<compile_context>
chip_gen: v7x
topology: tpu7x:2x2x1
jax: 0.10.0
libtpu: 0.0.40
codegen_flags: <defaults>
</compile_context>

<pallas_src>
import functools
import math

import jax
import jax.numpy as jnp
from jax.experimental import pallas as pl
from jax.experimental.pallas import tpu as pltpu

EPS = 1e-5            # nn.LayerNorm default eps
NEG_INF = -1e9        # key_padding_mask additive bias
APPROX_RECIP = True   # EUP vrcp in softmax; set False for tight parity tests


# ---------------------------------------------------------------------------
# Fused encoder kernel: input LN + all layers + final LN, one graph per step.
# ---------------------------------------------------------------------------

def _encoder_kernel(
    x_ref,                     # (1, S, d)  f32 — one graph per grid step
    bias_ref,                  # (1, 1, S)  f32 additive key-padding bias
    ni_g_ref, ni_b_ref,        # (1, d)     input LayerNorm gamma/beta
    wqkv_ref, bqkv_ref,        # (L, d, 3d) bf16 / (L, 1, 3d) f32
    wo_ref, bo_ref,            # (L, d, d)  bf16 / (L, 1, d)  f32
    ln1g_ref, ln1b_ref,        # (L, 1, d)  f32
    w1_ref, b1_ref,            # (L, d, dff) bf16 / (L, 1, dff) f32
    w2_ref, b2_ref,            # (L, dff, d) bf16 / (L, 1, d)   f32
    ln2g_ref, ln2b_ref,        # (L, 1, d)  f32
    fg_ref, fb_ref,            # (1, d)     final LayerNorm gamma/beta
    o_ref,                     # (1, S, d)  f32 output
    qh_ref, kh_ref, vh_ref,    # (H, S, dh) f32 VMEM scratch (head-major)
    ctx_ref,                   # (S, d)     f32 VMEM scratch (attention context)
    *, nhead, has_norm_input,
):
    seq = x_ref.shape[1]
    d = x_ref.shape[2]
    dh = d // nhead
    num_layers = wqkv_ref.shape[0]
    scale = 1.0 / math.sqrt(dh)

    def ln(v, g, b):
        mu = jnp.mean(v, axis=-1, keepdims=True)
        var = jnp.mean(jnp.square(v - mu), axis=-1, keepdims=True)
        return (v - mu) * jax.lax.rsqrt(var + EPS) * g + b

    x = x_ref[0]                                           # (S, d) f32

    # Key-padding bias: broadcast ONCE per invocation (hoisted out of all loops;
    # JAX does not CSE broadcast_in_dim, so this saves L*H broadcasts).
    bias_hqk = jnp.broadcast_to(bias_ref[...], (nhead, seq, seq))   # (H, S, S)

    if has_norm_input:
        x = ln(x, ni_g_ref[...], ni_b_ref[...])

    for layer in range(num_layers):
        # ---- self-attention (post-norm, eval-mode dropout) ----
        qkv = (
            jnp.dot(x.astype(jnp.bfloat16), wqkv_ref[layer],
                    preferred_element_type=jnp.float32)
            + bqkv_ref[layer]
        )                                                  # (S, 3d) f32

        # Repack into head-major (H, S, dh) scratch: static-index stores only.
        for h in range(nhead):
            c = h * dh
            qh_ref[h] = qkv[:, c:c + dh]
            kh_ref[h] = qkv[:, d + c:d + c + dh]
            vh_ref[h] = qkv[:, 2 * d + c:2 * d + c + dh]

        qh = qh_ref[...].astype(jnp.bfloat16)              # bf16 only at MXU inputs
        kh = kh_ref[...].astype(jnp.bfloat16)
        vh = vh_ref[...].astype(jnp.bfloat16)

        # One head-batched contraction pair instead of 2*H tiny per-head dots.
        s = (jnp.einsum("hqc,hkc->hqk", qh, kh,
                        preferred_element_type=jnp.float32) * scale
             + bias_hqk)                                   # (H, S, S) f32
        m = jnp.max(s, axis=-1, keepdims=True)
        p = jnp.exp(s - m)
        p = p * pl.reciprocal(jnp.sum(p, axis=-1, keepdims=True),
                              approx=APPROX_RECIP)
        ctxh = jnp.einsum("hqk,hkc->hqc", p.astype(jnp.bfloat16), vh,
                          preferred_element_type=jnp.float32)   # (H, S, dh) f32

        # Scatter heads back to (S, d) via direct lane-slice stores (no concat).
        for h in range(nhead):
            ctx_ref[:, h * dh:(h + 1) * dh] = ctxh[h]

        attn = (
            jnp.dot(ctx_ref[...].astype(jnp.bfloat16), wo_ref[layer],
                    preferred_element_type=jnp.float32)
            + bo_ref[layer]
        )
        x = ln(x + attn, ln1g_ref[layer], ln1b_ref[layer])

        # ---- feed-forward (relu) ----
        h1 = jnp.maximum(
            jnp.dot(x.astype(jnp.bfloat16), w1_ref[layer],
                    preferred_element_type=jnp.float32) + b1_ref[layer],
            0.0,
        )
        h2 = (
            jnp.dot(h1.astype(jnp.bfloat16), w2_ref[layer],
                    preferred_element_type=jnp.float32)
            + b2_ref[layer]
        )
        x = ln(x + h2, ln2g_ref[layer], ln2b_ref[layer])

    # final encoder_norm
    o_ref[0] = ln(x, fg_ref[...], fb_ref[...])


# ---------------------------------------------------------------------------
# Wrapper: CLS concat, mask bias, grid-over-batch pallas_call, layout plumbing.
# ---------------------------------------------------------------------------

def _replicated_spec(arr):
    """Whole-array VMEM block, same block index for every grid step."""
    zeros = (0,) * arr.ndim

    def index_map(b):
        return zeros

    return pl.BlockSpec(arr.shape, index_map,
                        memory_space=pltpu.MemorySpace.VMEM)


def transformer_node_encoder(padded_h_node, src_padding_mask, params, nhead):
    """
    padded_h_node: (n_b, B, d_model) float32
    src_padding_mask: (B, n_b)       bool (True == padded node)
    returns (transformer_out, src_padding_mask)
    """
    x = padded_h_node
    mask = src_padding_mask

    if params["cls_embedding"] is not None:
        _, b0, d0 = x.shape
        cls = jnp.broadcast_to(params["cls_embedding"].astype(x.dtype), (1, b0, d0))
        x = jnp.concatenate([x, cls], axis=0)
        mask = jnp.concatenate(
            [mask, jnp.zeros((b0, 1), dtype=mask.dtype)], axis=1)

    S, B, d = x.shape
    xb = jnp.transpose(x, (1, 0, 2))                               # (B, S, d)
    bias = jnp.where(mask, NEG_INF, 0.0).astype(jnp.float32)[:, None, :]  # (B,1,S)

    has_ni = params["norm_input_g"] is not None
    ni_g = params["norm_input_g"] if has_ni else jnp.ones((1, d), jnp.float32)
    ni_b = params["norm_input_b"] if has_ni else jnp.zeros((1, d), jnp.float32)

    weights = (
        ni_g, ni_b,
        params["wqkv"], params["bqkv"], params["wo"], params["bo"],
        params["ln1_g"], params["ln1_b"],
        params["w1"], params["b1"], params["w2"], params["b2"],
        params["ln2_g"], params["ln2_b"],
        params["final_ln_g"], params["final_ln_b"],
    )

    L = params["wqkv"].shape[0]
    dff = params["w1"].shape[-1]
    dh = d // nhead
    rows = B * S

    # Advisory cost hint for XLA's scheduler around the custom call.
    flops = L * (
        2 * rows * d * (3 * d)             # QKV projection
        + 2 * 2 * B * nhead * S * S * dh   # QK^T and PV
        + 2 * rows * d * d                 # output projection
        + 2 * 2 * rows * d * dff           # feed-forward
    )
    transcendentals = L * B * nhead * S * S          # softmax exp
    bytes_accessed = int(
        sum(int(a.size) * a.dtype.itemsize for a in (xb, bias) + weights)
        + rows * d * 4)

    kern = functools.partial(
        _encoder_kernel, nhead=nhead, has_norm_input=has_ni)

    data_spec = pl.BlockSpec((1, S, d), lambda b: (b, 0, 0),
                             memory_space=pltpu.MemorySpace.VMEM)
    bias_spec = pl.BlockSpec((1, 1, S), lambda b: (b, 0, 0),
                             memory_space=pltpu.MemorySpace.VMEM)

    grid_spec = pltpu.PrefetchScalarGridSpec(
        num_scalar_prefetch=0,
        grid=(B,),   # one graph per step; "parallel" shards across v7x TensorCores
        in_specs=[data_spec, bias_spec] + [_replicated_spec(w) for w in weights],
        out_specs=data_spec,
        scratch_shapes=[
            pltpu.VMEM((nhead, S, dh), jnp.float32),   # q, head-major
            pltpu.VMEM((nhead, S, dh), jnp.float32),   # k, head-major
            pltpu.VMEM((nhead, S, dh), jnp.float32),   # v, head-major
            pltpu.VMEM((S, d), jnp.float32),           # attention context
        ],
    )

    out = pl.pallas_call(
        kern,
        out_shape=jax.ShapeDtypeStruct((B, S, d), jnp.float32),
        grid_spec=grid_spec,
        compiler_params=pltpu.CompilerParams(
            dimension_semantics=("parallel",)),
        cost_estimate=pl.CostEstimate(
            flops=flops,
            transcendentals=transcendentals,
            bytes_accessed=bytes_accessed),
    )(xb, bias, *weights)

    out = jnp.transpose(out, (1, 0, 2))                            # (S, B, d)
    return out, mask


# ---------------------------------------------------------------------------
# Deterministic parameter init: pre-transposed (din, dout), stacked over layers,
# matmul weights in bf16 (MXU-native), LN params / biases in f32.
# ---------------------------------------------------------------------------

def init_params(key, d_model, nhead, dff, num_layers, norm_input=True, use_cls=True):
    keys = iter(jax.random.split(key, 8 * num_layers + 2))

    def w(shape, scale=0.02):
        return (scale * jax.random.normal(next(keys), shape)).astype(jnp.float32)

    wqkv, bqkv, wo, bo, w1, b1, w2, b2 = ([] for _ in range(8))
    for _ in range(num_layers):
        wqkv.append(w((d_model, 3 * d_model)))   # == in_proj_weight.T
        bqkv.append(w((1, 3 * d_model)))
        wo.append(w((d_model, d_model)))         # == out_proj.weight.T
        bo.append(w((1, d_model)))
        w1.append(w((d_model, dff)))             # == linear1.weight.T
        b1.append(w((1, dff)))
        w2.append(w((dff, d_model)))             # == linear2.weight.T
        b2.append(w((1, d_model)))

    params = dict(
        wqkv=jnp.stack(wqkv).astype(jnp.bfloat16),
        bqkv=jnp.stack(bqkv),
        wo=jnp.stack(wo).astype(jnp.bfloat16),
        bo=jnp.stack(bo),
        w1=jnp.stack(w1).astype(jnp.bfloat16),
        b1=jnp.stack(b1),
        w2=jnp.stack(w2).astype(jnp.bfloat16),
        b2=jnp.stack(b2),
        ln1_g=jnp.ones((num_layers, 1, d_model), jnp.float32),
        ln1_b=jnp.zeros((num_layers, 1, d_model), jnp.float32),
        ln2_g=jnp.ones((num_layers, 1, d_model), jnp.float32),
        ln2_b=jnp.zeros((num_layers, 1, d_model), jnp.float32),
        final_ln_g=jnp.ones((1, d_model), jnp.float32),
        final_ln_b=jnp.zeros((1, d_model), jnp.float32),
        norm_input_g=jnp.ones((1, d_model), jnp.float32) if norm_input else None,
        norm_input_b=jnp.zeros((1, d_model), jnp.float32) if norm_input else None,
        cls_embedding=w((1, 1, d_model)) if use_cls else None,
    )
    return params


# ---------------------------------------------------------------------------

if __name__ == "__main__":
    d_model, nhead, dff, num_layers = 32, 4, 64, 2
    S, B = 7, 2   # 7 nodes; +1 cls token -> sequence length 8

    key = jax.random.PRNGKey(0)
    k_param, k_input = jax.random.split(key)

    params = init_params(k_param, d_model, nhead, dff, num_layers,
                         norm_input=True, use_cls=True)

    padded_h_node = jax.random.normal(k_input, (S, B, d_model), dtype=jnp.float32)
    # True == padded node; pad last 2 nodes of graph 1
    src_padding_mask = jnp.zeros((B, S), dtype=bool).at[1, 5:].set(True)

    fwd = jax.jit(
        lambda x, m: transformer_node_encoder(x, m, params, nhead))

    out, out_mask = fwd(padded_h_node, src_padding_mask)
    out, out_mask = jax.block_until_ready((out, out_mask))

    assert out.shape == (S + 1, B, d_model), out.shape
    assert out_mask.shape == (B, S + 1), out_mask.shape
    assert bool(jnp.all(jnp.isfinite(out)))

    print("KERNEL_OK")
</pallas_src>

<mosaic_0001>
module attributes {stable_mosaic.version = 11 : i64} {
  func.func @_encoder_kernel(%arg0: i32, %arg1: memref<1x8x32xf32, #tpu.memory_space<vmem>>, %arg2: memref<1x1x8xf32, #tpu.memory_space<vmem>>, %arg3: memref<1x32xf32, #tpu.memory_space<vmem>>, %arg4: memref<1x32xf32, #tpu.memory_space<vmem>>, %arg5: memref<2x32x96xbf16, #tpu.memory_space<vmem>>, %arg6: memref<2x1x96xf32, #tpu.memory_space<vmem>>, %arg7: memref<2x32x32xbf16, #tpu.memory_space<vmem>>, %arg8: memref<2x1x32xf32, #tpu.memory_space<vmem>>, %arg9: memref<2x1x32xf32, #tpu.memory_space<vmem>>, %arg10: memref<2x1x32xf32, #tpu.memory_space<vmem>>, %arg11: memref<2x32x64xbf16, #tpu.memory_space<vmem>>, %arg12: memref<2x1x64xf32, #tpu.memory_space<vmem>>, %arg13: memref<2x64x32xbf16, #tpu.memory_space<vmem>>, %arg14: memref<2x1x32xf32, #tpu.memory_space<vmem>>, %arg15: memref<2x1x32xf32, #tpu.memory_space<vmem>>, %arg16: memref<2x1x32xf32, #tpu.memory_space<vmem>>, %arg17: memref<1x32xf32, #tpu.memory_space<vmem>>, %arg18: memref<1x32xf32, #tpu.memory_space<vmem>>, %arg19: memref<1x8x32xf32, #tpu.memory_space<vmem>>, %arg20: memref<4x8x8xf32, #tpu.memory_space<vmem>>, %arg21: memref<4x8x8xf32, #tpu.memory_space<vmem>>, %arg22: memref<4x8x8xf32, #tpu.memory_space<vmem>>, %arg23: memref<8x32xf32, #tpu.memory_space<vmem>>) attributes {dimension_semantics = [#tpu.dimension_semantics<parallel>], iteration_bounds = array<i64: 2>, scalar_prefetch = 0 : i64, scratch_operands = 4 : i64, tpu.core_type = #tpu.core_type<tc>, window_params = [{transform_indices = @transform_0, window_bounds = array<i64: 1, 8, 32>}, {transform_indices = @transform_1, window_bounds = array<i64: 1, 1, 8>}, {pipeline_mode = #tpu.pipeline_mode<synchronous>, transform_indices = @transform_2, window_bounds = array<i64: 1, 32>}, {pipeline_mode = #tpu.pipeline_mode<synchronous>, transform_indices = @transform_3, window_bounds = array<i64: 1, 32>}, {pipeline_mode = #tpu.pipeline_mode<synchronous>, transform_indices = @transform_4, window_bounds = array<i64: 2, 32, 96>}, {pipeline_mode = #tpu.pipeline_mode<synchronous>, transform_indices = @transform_5, window_bounds = array<i64: 2, 1, 96>}, {pipeline_mode = #tpu.pipeline_mode<synchronous>, transform_indices = @transform_6, window_bounds = array<i64: 2, 32, 32>}, {pipeline_mode = #tpu.pipeline_mode<synchronous>, transform_indices = @transform_7, window_bounds = array<i64: 2, 1, 32>}, {pipeline_mode = #tpu.pipeline_mode<synchronous>, transform_indices = @transform_8, window_bounds = array<i64: 2, 1, 32>}, {pipeline_mode = #tpu.pipeline_mode<synchronous>, transform_indices = @transform_9, window_bounds = array<i64: 2, 1, 32>}, {pipeline_mode = #tpu.pipeline_mode<synchronous>, transform_indices = @transform_10, window_bounds = array<i64: 2, 32, 64>}, {pipeline_mode = #tpu.pipeline_mode<synchronous>, transform_indices = @transform_11, window_bounds = array<i64: 2, 1, 64>}, {pipeline_mode = #tpu.pipeline_mode<synchronous>, transform_indices = @transform_12, window_bounds = array<i64: 2, 64, 32>}, {pipeline_mode = #tpu.pipeline_mode<synchronous>, transform_indices = @transform_13, window_bounds = array<i64: 2, 1, 32>}, {pipeline_mode = #tpu.pipeline_mode<synchronous>, transform_indices = @transform_14, window_bounds = array<i64: 2, 1, 32>}, {pipeline_mode = #tpu.pipeline_mode<synchronous>, transform_indices = @transform_15, window_bounds = array<i64: 2, 1, 32>}, {pipeline_mode = #tpu.pipeline_mode<synchronous>, transform_indices = @transform_16, window_bounds = array<i64: 1, 32>}, {pipeline_mode = #tpu.pipeline_mode<synchronous>, transform_indices = @transform_17, window_bounds = array<i64: 1, 32>}, {transform_indices = @transform_18, window_bounds = array<i64: 1, 8, 32>}]} {
    %c0 = arith.constant 0 : index
    %c0_0 = arith.constant 0 : index
    %c0_1 = arith.constant 0 : index
    %0 = vector.load %arg1[%c0, %c0_0, %c0_1] : memref<1x8x32xf32, #tpu.memory_space<vmem>>, vector<1x8x32xf32>
    %1 = vector.shape_cast %0 : vector<1x8x32xf32> to vector<8x32xf32>
    %c0_2 = arith.constant 0 : index
    %c0_3 = arith.constant 0 : index
    %c0_4 = arith.constant 0 : index
    %2 = vector.load %arg2[%c0_2, %c0_3, %c0_4] : memref<1x1x8xf32, #tpu.memory_space<vmem>>, vector<1x1x8xf32>
    %3 = vector.shape_cast %2 : vector<1x1x8xf32> to vector<1x1x8xf32>
    %4 = vector.broadcast %3 : vector<1x1x8xf32> to vector<4x8x8xf32>
    %c0_5 = arith.constant 0 : index
    %c0_6 = arith.constant 0 : index
    %5 = vector.load %arg3[%c0_5, %c0_6] : memref<1x32xf32, #tpu.memory_space<vmem>>, vector<1x32xf32>
    %c0_7 = arith.constant 0 : index
    %c0_8 = arith.constant 0 : index
    %6 = vector.load %arg4[%c0_7, %c0_8] : memref<1x32xf32, #tpu.memory_space<vmem>>, vector<1x32xf32>
    %cst = arith.constant dense<0.000000e+00> : vector<8xf32>
    %7 = vector.multi_reduction <add>, %1, %cst [1] : vector<8x32xf32> to vector<8xf32>
    %8 = vector.shape_cast %7 : vector<8xf32> to vector<8x1xf32>
    %cst_9 = arith.constant 3.200000e+01 : f32
    %9 = vector.broadcast %cst_9 : f32 to vector<8x1xf32>
    %10 = arith.divf %8, %9 : vector<8x1xf32>
    %11 = vector.broadcast %10 : vector<8x1xf32> to vector<8x32xf32>
    %12 = arith.subf %1, %11 : vector<8x32xf32>
    %13 = arith.mulf %12, %12 : vector<8x32xf32>
    %cst_10 = arith.constant dense<0.000000e+00> : vector<8xf32>
    %14 = vector.multi_reduction <add>, %13, %cst_10 [1] : vector<8x32xf32> to vector<8xf32>
    %15 = vector.shape_cast %14 : vector<8xf32> to vector<8x1xf32>
    %cst_11 = arith.constant 3.200000e+01 : f32
    %16 = vector.broadcast %cst_11 : f32 to vector<8x1xf32>
    %17 = arith.divf %15, %16 : vector<8x1xf32>
    %18 = vector.broadcast %10 : vector<8x1xf32> to vector<8x32xf32>
    %19 = arith.subf %1, %18 : vector<8x32xf32>
    %cst_12 = arith.constant 9.99999974E-6 : f32
    %20 = vector.broadcast %cst_12 : f32 to vector<8x1xf32>
    %21 = arith.addf %17, %20 : vector<8x1xf32>
    %22 = math.rsqrt %21 : vector<8x1xf32>
    %23 = vector.broadcast %22 : vector<8x1xf32> to vector<8x32xf32>
    %24 = arith.mulf %19, %23 : vector<8x32xf32>
    %25 = vector.broadcast %5 : vector<1x32xf32> to vector<8x32xf32>
    %26 = arith.mulf %24, %25 : vector<8x32xf32>
    %27 = vector.broadcast %6 : vector<1x32xf32> to vector<8x32xf32>
    %28 = arith.addf %26, %27 : vector<8x32xf32>
    %29 = arith.truncf %28 : vector<8x32xf32> to vector<8x32xbf16>
    %c0_13 = arith.constant 0 : index
    %c0_14 = arith.constant 0 : index
    %c0_15 = arith.constant 0 : index
    %30 = vector.load %arg5[%c0_13, %c0_14, %c0_15] : memref<2x32x96xbf16, #tpu.memory_space<vmem>>, vector<1x32x96xbf16>
    %31 = vector.shape_cast %30 : vector<1x32x96xbf16> to vector<32x96xbf16>
    %cst_16 = arith.constant dense<0.000000e+00> : vector<8x96xf32>
    %32 = tpu.matmul %29, %31, %cst_16 {dimension_numbers = #tpu.dot_dimension_numbers<[1], [0], [0], [1], [0, 0, 1, 1], [], []>} : vector<8x32xbf16>, vector<32x96xbf16>, vector<8x96xf32> -> vector<8x96xf32>
    %c0_17 = arith.constant 0 : index
    %c0_18 = arith.constant 0 : index
    %c0_19 = arith.constant 0 : index
    %33 = vector.load %arg6[%c0_17, %c0_18, %c0_19] : memref<2x1x96xf32, #tpu.memory_space<vmem>>, vector<1x1x96xf32>
    %34 = vector.shape_cast %33 : vector<1x1x96xf32> to vector<1x96xf32>
    %35 = vector.broadcast %34 : vector<1x96xf32> to vector<8x96xf32>
    %36 = arith.addf %32, %35 : vector<8x96xf32>
    %37 = vector.extract_strided_slice %36 {offsets = [0, 0], sizes = [8, 8], strides = [1, 1]} : vector<8x96xf32> to vector<8x8xf32>
    %c0_20 = arith.constant 0 : index
    %c0_21 = arith.constant 0 : index
    %c0_22 = arith.constant 0 : index
    %38 = vector.load %arg20[%c0_20, %c0_21, %c0_22] : memref<4x8x8xf32, #tpu.memory_space<vmem>>, vector<1x8x8xf32>
    %39 = vector.shape_cast %38 : vector<1x8x8xf32> to vector<8x8xf32>
    %40 = vector.shape_cast %37 : vector<8x8xf32> to vector<1x8x8xf32>
    tpu.vector_store %arg20[%c0_20, %c0_21, %c0_22], %40 {strides = array<i32>} : memref<4x8x8xf32, #tpu.memory_space<vmem>>, vector<1x8x8xf32>,
    %41 = vector.extract_strided_slice %36 {offsets = [0, 32], sizes = [8, 8], strides = [1, 1]} : vector<8x96xf32> to vector<8x8xf32>
    %c0_23 = arith.constant 0 : index
    %c0_24 = arith.constant 0 : index
    %c0_25 = arith.constant 0 : index
    %42 = vector.load %arg21[%c0_23, %c0_24, %c0_25] : memref<4x8x8xf32, #tpu.memory_space<vmem>>, vector<1x8x8xf32>
    %43 = vector.shape_cast %42 : vector<1x8x8xf32> to vector<8x8xf32>
    %44 = vector.shape_cast %41 : vector<8x8xf32> to vector<1x8x8xf32>
    tpu.vector_store %arg21[%c0_23, %c0_24, %c0_25], %44 {strides = array<i32>} : memref<4x8x8xf32, #tpu.memory_space<vmem>>, vector<1x8x8xf32>,
    %45 = vector.extract_strided_slice %36 {offsets = [0, 64], sizes = [8, 8], strides = [1, 1]} : vector<8x96xf32> to vector<8x8xf32>
    %c0_26 = arith.constant 0 : index
    %c0_27 = arith.constant 0 : index
    %c0_28 = arith.constant 0 : index
    %46 = vector.load %arg22[%c0_26, %c0_27, %c0_28] : memref<4x8x8xf32, #tpu.memory_space<vmem>>, vector<1x8x8xf32>
    %47 = vector.shape_cast %46 : vector<1x8x8xf32> to vector<8x8xf32>
    %48 = vector.shape_cast %45 : vector<8x8xf32> to vector<1x8x8xf32>
    tpu.vector_store %arg22[%c0_26, %c0_27, %c0_28], %48 {strides = array<i32>} : memref<4x8x8xf32, #tpu.memory_space<vmem>>, vector<1x8x8xf32>,
    %49 = vector.extract_strided_slice %36 {offsets = [0, 8], sizes = [8, 8], strides = [1, 1]} : vector<8x96xf32> to vector<8x8xf32>
    %c1 = arith.constant 1 : index
    %c0_29 = arith.constant 0 : index
    %c0_30 = arith.constant 0 : index
    %50 = vector.load %arg20[%c1, %c0_29, %c0_30] : memref<4x8x8xf32, #tpu.memory_space<vmem>>, vector<1x8x8xf32>
    %51 = vector.shape_cast %50 : vector<1x8x8xf32> to vector<8x8xf32>
    %52 = vector.shape_cast %49 : vector<8x8xf32> to vector<1x8x8xf32>
    tpu.vector_store %arg20[%c1, %c0_29, %c0_30], %52 {strides = array<i32>} : memref<4x8x8xf32, #tpu.memory_space<vmem>>, vector<1x8x8xf32>,
    %53 = vector.extract_strided_slice %36 {offsets = [0, 40], sizes = [8, 8], strides = [1, 1]} : vector<8x96xf32> to vector<8x8xf32>
    %c1_31 = arith.constant 1 : index
    %c0_32 = arith.constant 0 : index
    %c0_33 = arith.constant 0 : index
    %54 = vector.load %arg21[%c1_31, %c0_32, %c0_33] : memref<4x8x8xf32, #tpu.memory_space<vmem>>, vector<1x8x8xf32>
    %55 = vector.shape_cast %54 : vector<1x8x8xf32> to vector<8x8xf32>
    %56 = vector.shape_cast %53 : vector<8x8xf32> to vector<1x8x8xf32>
    tpu.vector_store %arg21[%c1_31, %c0_32, %c0_33], %56 {strides = array<i32>} : memref<4x8x8xf32, #tpu.memory_space<vmem>>, vector<1x8x8xf32>,
    %57 = vector.extract_strided_slice %36 {offsets = [0, 72], sizes = [8, 8], strides = [1, 1]} : vector<8x96xf32> to vector<8x8xf32>
    %c1_34 = arith.constant 1 : index
    %c0_35 = arith.constant 0 : index
    %c0_36 = arith.constant 0 : index
    %58 = vector.load %arg22[%c1_34, %c0_35, %c0_36] : memref<4x8x8xf32, #tpu.memory_space<vmem>>, vector<1x8x8xf32>
    %59 = vector.shape_cast %58 : vector<1x8x8xf32> to vector<8x8xf32>
    %60 = vector.shape_cast %57 : vector<8x8xf32> to vector<1x8x8xf32>
    tpu.vector_store %arg22[%c1_34, %c0_35, %c0_36], %60 {strides = array<i32>} : memref<4x8x8xf32, #tpu.memory_space<vmem>>, vector<1x8x8xf32>,
    %61 = vector.extract_strided_slice %36 {offsets = [0, 16], sizes = [8, 8], strides = [1, 1]} : vector<8x96xf32> to vector<8x8xf32>
    %c2 = arith.constant 2 : index
    %c0_37 = arith.constant 0 : index
    %c0_38 = arith.constant 0 : index
    %62 = vector.load %arg20[%c2, %c0_37, %c0_38] : memref<4x8x8xf32, #tpu.memory_space<vmem>>, vector<1x8x8xf32>
    %63 = vector.shape_cast %62 : vector<1x8x8xf32> to vector<8x8xf32>
    %64 = vector.shape_cast %61 : vector<8x8xf32> to vector<1x8x8xf32>
    tpu.vector_store %arg20[%c2, %c0_37, %c0_38], %64 {strides = array<i32>} : memref<4x8x8xf32, #tpu.memory_space<vmem>>, vector<1x8x8xf32>,
    %65 = vector.extract_strided_slice %36 {offsets = [0, 48], sizes = [8, 8], strides = [1, 1]} : vector<8x96xf32> to vector<8x8xf32>
    %c2_39 = arith.constant 2 : index
    %c0_40 = arith.constant 0 : index
    %c0_41 = arith.constant 0 : index
    %66 = vector.load %arg21[%c2_39, %c0_40, %c0_41] : memref<4x8x8xf32, #tpu.memory_space<vmem>>, vector<1x8x8xf32>
    %67 = vector.shape_cast %66 : vector<1x8x8xf32> to vector<8x8xf32>
    %68 = vector.shape_cast %65 : vector<8x8xf32> to vector<1x8x8xf32>
    tpu.vector_store %arg21[%c2_39, %c0_40, %c0_41], %68 {strides = array<i32>} : memref<4x8x8xf32, #tpu.memory_space<vmem>>, vector<1x8x8xf32>,
    %69 = vector.extract_strided_slice %36 {offsets = [0, 80], sizes = [8, 8], strides = [1, 1]} : vector<8x96xf32> to vector<8x8xf32>
    %c2_42 = arith.constant 2 : index
    %c0_43 = arith.constant 0 : index
    %c0_44 = arith.constant 0 : index
    %70 = vector.load %arg22[%c2_42, %c0_43, %c0_44] : memref<4x8x8xf32, #tpu.memory_space<vmem>>, vector<1x8x8xf32>
    %71 = vector.shape_cast %70 : vector<1x8x8xf32> to vector<8x8xf32>
    %72 = vector.shape_cast %69 : vector<8x8xf32> to vector<1x8x8xf32>
    tpu.vector_store %arg22[%c2_42, %c0_43, %c0_44], %72 {strides = array<i32>} : memref<4x8x8xf32, #tpu.memory_space<vmem>>, vector<1x8x8xf32>,
    %73 = vector.extract_strided_slice %36 {offsets = [0, 24], sizes = [8, 8], strides = [1, 1]} : vector<8x96xf32> to vector<8x8xf32>
    %c3 = arith.constant 3 : index
    %c0_45 = arith.constant 0 : index
    %c0_46 = arith.constant 0 : index
    %74 = vector.load %arg20[%c3, %c0_45, %c0_46] : memref<4x8x8xf32, #tpu.memory_space<vmem>>, vector<1x8x8xf32>
    %75 = vector.shape_cast %74 : vector<1x8x8xf32> to vector<8x8xf32>
    %76 = vector.shape_cast %73 : vector<8x8xf32> to vector<1x8x8xf32>
    tpu.vector_store %arg20[%c3, %c0_45, %c0_46], %76 {strides = array<i32>} : memref<4x8x8xf32, #tpu.memory_space<vmem>>, vector<1x8x8xf32>,
    %77 = vector.extract_strided_slice %36 {offsets = [0, 56], sizes = [8, 8], strides = [1, 1]} : vector<8x96xf32> to vector<8x8xf32>
    %c3_47 = arith.constant 3 : index
    %c0_48 = arith.constant 0 : index
    %c0_49 = arith.constant 0 : index
    %78 = vector.load %arg21[%c3_47, %c0_48, %c0_49] : memref<4x8x8xf32, #tpu.memory_space<vmem>>, vector<1x8x8xf32>
    %79 = vector.shape_cast %78 : vector<1x8x8xf32> to vector<8x8xf32>
    %80 = vector.shape_cast %77 : vector<8x8xf32> to vector<1x8x8xf32>
    tpu.vector_store %arg21[%c3_47, %c0_48, %c0_49], %80 {strides = array<i32>} : memref<4x8x8xf32, #tpu.memory_space<vmem>>, vector<1x8x8xf32>,
    %81 = vector.extract_strided_slice %36 {offsets = [0, 88], sizes = [8, 8], strides = [1, 1]} : vector<8x96xf32> to vector<8x8xf32>
    %c3_50 = arith.constant 3 : index
    %c0_51 = arith.constant 0 : index
    %c0_52 = arith.constant 0 : index
    %82 = vector.load %arg22[%c3_50, %c0_51, %c0_52] : memref<4x8x8xf32, #tpu.memory_space<vmem>>, vector<1x8x8xf32>
    %83 = vector.shape_cast %82 : vector<1x8x8xf32> to vector<8x8xf32>
    %84 = vector.shape_cast %81 : vector<8x8xf32> to vector<1x8x8xf32>
    tpu.vector_store %arg22[%c3_50, %c0_51, %c0_52], %84 {strides = array<i32>} : memref<4x8x8xf32, #tpu.memory_space<vmem>>, vector<1x8x8xf32>,
    %c0_53 = arith.constant 0 : index
    %c0_54 = arith.constant 0 : index
    %c0_55 = arith.constant 0 : index
    %85 = vector.load %arg20[%c0_53, %c0_54, %c0_55] : memref<4x8x8xf32, #tpu.memory_space<vmem>>, vector<4x8x8xf32>
    %86 = arith.truncf %85 : vector<4x8x8xf32> to vector<4x8x8xbf16>
    %c0_56 = arith.constant 0 : index
    %c0_57 = arith.constant 0 : index
    %c0_58 = arith.constant 0 : index
    %87 = vector.load %arg21[%c0_56, %c0_57, %c0_58] : memref<4x8x8xf32, #tpu.memory_space<vmem>>, vector<4x8x8xf32>
    %88 = arith.truncf %87 : vector<4x8x8xf32> to vector<4x8x8xbf16>
    %c0_59 = arith.constant 0 : index
    %c0_60 = arith.constant 0 : index
    %c0_61 = arith.constant 0 : index
    %89 = vector.load %arg22[%c0_59, %c0_60, %c0_61] : memref<4x8x8xf32, #tpu.memory_space<vmem>>, vector<4x8x8xf32>
    %90 = arith.truncf %89 : vector<4x8x8xf32> to vector<4x8x8xbf16>
    "tpu.trace_start"() <{level = 10 : i32, message = "hqc,hkc->hqk"}> : () -> ()
    %cst_62 = arith.constant dense<0.000000e+00> : vector<4x8x8xf32>
    %91 = tpu.matmul %86, %88, %cst_62 {dimension_numbers = #tpu.dot_dimension_numbers<[2], [2], [1], [1], [0, 0, 0, 1, 1, 1], [0], [0]>} : vector<4x8x8xbf16>, vector<4x8x8xbf16>, vector<4x8x8xf32> -> vector<4x8x8xf32>
    "tpu.trace_stop"() : () -> ()
    %cst_63 = arith.constant 0.353553385 : f32
    %92 = vector.broadcast %cst_63 : f32 to vector<4x8x8xf32>
    %93 = arith.mulf %91, %92 : vector<4x8x8xf32>
    %94 = arith.addf %93, %4 : vector<4x8x8xf32>
    %cst_64 = arith.constant dense<0xFF800000> : vector<4x8xf32>
    %95 = vector.multi_reduction <maximumf>, %94, %cst_64 [2] : vector<4x8x8xf32> to vector<4x8xf32>
    %96 = vector.shape_cast %95 : vector<4x8xf32> to vector<4x8x1xf32>
    %97 = vector.broadcast %96 : vector<4x8x1xf32> to vector<4x8x8xf32>
    %98 = arith.subf %94, %97 : vector<4x8x8xf32>
    %99 = math.exp %98 : vector<4x8x8xf32>
    %cst_65 = arith.constant dense<0.000000e+00> : vector<4x8xf32>
    %100 = vector.multi_reduction <add>, %99, %cst_65 [2] : vector<4x8x8xf32> to vector<4x8xf32>
    %101 = vector.shape_cast %100 : vector<4x8xf32> to vector<4x8x1xf32>
    %102 = tpu.reciprocal %101 {approx = true} : vector<4x8x1xf32> -> vector<4x8x1xf32>
    %103 = vector.broadcast %102 : vector<4x8x1xf32> to vector<4x8x8xf32>
    %104 = arith.mulf %99, %103 : vector<4x8x8xf32>
    %105 = arith.truncf %104 : vector<4x8x8xf32> to vector<4x8x8xbf16>
    "tpu.trace_start"() <{level = 10 : i32, message = "hqk,hkc->hqc"}> : () -> ()
    %cst_66 = arith.constant dense<0.000000e+00> : vector<4x8x8xf32>
    %106 = tpu.matmul %105, %90, %cst_66 {dimension_numbers = #tpu.dot_dimension_numbers<[2], [1], [1], [2], [0, 0, 0, 1, 1, 2], [0], [0]>} : vector<4x8x8xbf16>, vector<4x8x8xbf16>, vector<4x8x8xf32> -> vector<4x8x8xf32>
    "tpu.trace_stop"() : () -> ()
    %107 = vector.extract_strided_slice %106 {offsets = [0, 0, 0], sizes = [1, 8, 8], strides = [1, 1, 1]} : vector<4x8x8xf32> to vector<1x8x8xf32>
    %108 = vector.shape_cast %107 : vector<1x8x8xf32> to vector<8x8xf32>
    %c0_67 = arith.constant 0 : index
    %c0_68 = arith.constant 0 : index
    %109 = vector.load %arg23[%c0_67, %c0_68] : memref<8x32xf32, #tpu.memory_space<vmem>>, vector<8x8xf32>
    tpu.vector_store %arg23[%c0_67, %c0_68], %108 {strides = array<i32>} : memref<8x32xf32, #tpu.memory_space<vmem>>, vector<8x8xf32>,
    %110 = vector.extract_strided_slice %106 {offsets = [1, 0, 0], sizes = [1, 8, 8], strides = [1, 1, 1]} : vector<4x8x8xf32> to vector<1x8x8xf32>
    %111 = vector.shape_cast %110 : vector<1x8x8xf32> to vector<8x8xf32>
    %c0_69 = arith.constant 0 : index
    %c8 = arith.constant 8 : index
    %112 = vector.load %arg23[%c0_69, %c8] : memref<8x32xf32, #tpu.memory_space<vmem>>, vector<8x8xf32>
    tpu.vector_store %arg23[%c0_69, %c8], %111 {strides = array<i32>} : memref<8x32xf32, #tpu.memory_space<vmem>>, vector<8x8xf32>,
    %113 = vector.extract_strided_slice %106 {offsets = [2, 0, 0], sizes = [1, 8, 8], strides = [1, 1, 1]} : vector<4x8x8xf32> to vector<1x8x8xf32>
    %114 = vector.shape_cast %113 : vector<1x8x8xf32> to vector<8x8xf32>
    %c0_70 = arith.constant 0 : index
    %c16 = arith.constant 16 : index
    %115 = vector.load %arg23[%c0_70, %c16] : memref<8x32xf32, #tpu.memory_space<vmem>>, vector<8x8xf32>
    tpu.vector_store %arg23[%c0_70, %c16], %114 {strides = array<i32>} : memref<8x32xf32, #tpu.memory_space<vmem>>, vector<8x8xf32>,
    %116 = vector.extract_strided_slice %106 {offsets = [3, 0, 0], sizes = [1, 8, 8], strides = [1, 1, 1]} : vector<4x8x8xf32> to vector<1x8x8xf32>
    %117 = vector.shape_cast %116 : vector<1x8x8xf32> to vector<8x8xf32>
    %c0_71 = arith.constant 0 : index
    %c24 = arith.constant 24 : index
    %118 = vector.load %arg23[%c0_71, %c24] : memref<8x32xf32, #tpu.memory_space<vmem>>, vector<8x8xf32>
    tpu.vector_store %arg23[%c0_71, %c24], %117 {strides = array<i32>} : memref<8x32xf32, #tpu.memory_space<vmem>>, vector<8x8xf32>,
    %c0_72 = arith.constant 0 : index
    %c0_73 = arith.constant 0 : index
    %119 = vector.load %arg23[%c0_72, %c0_73] : memref<8x32xf32, #tpu.memory_space<vmem>>, vector<8x32xf32>
    %120 = arith.truncf %119 : vector<8x32xf32> to vector<8x32xbf16>
    %c0_74 = arith.constant 0 : index
    %c0_75 = arith.constant 0 : index
    %c0_76 = arith.constant 0 : index
    %121 = vector.load %arg7[%c0_74, %c0_75, %c0_76] : memref<2x32x32xbf16, #tpu.memory_space<vmem>>, vector<1x32x32xbf16>
    %122 = vector.shape_cast %121 : vector<1x32x32xbf16> to vector<32x32xbf16>
    %cst_77 = arith.constant dense<0.000000e+00> : vector<8x32xf32>
    %123 = tpu.matmul %120, %122, %cst_77 {dimension_numbers = #tpu.dot_dimension_numbers<[1], [0], [0], [1], [0, 0, 1, 1], [], []>} : vector<8x32xbf16>, vector<32x32xbf16>, vector<8x32xf32> -> vector<8x32xf32>
    %c0_78 = arith.constant 0 : index
    %c0_79 = arith.constant 0 : index
    %c0_80 = arith.constant 0 : index
    %124 = vector.load %arg8[%c0_78, %c0_79, %c0_80] : memref<2x1x32xf32, #tpu.memory_space<vmem>>, vector<1x1x32xf32>
    %125 = vector.shape_cast %124 : vector<1x1x32xf32> to vector<1x32xf32>
    %126 = vector.broadcast %125 : vector<1x32xf32> to vector<8x32xf32>
    %127 = arith.addf %123, %126 : vector<8x32xf32>
    %128 = arith.addf %28, %127 : vector<8x32xf32>
    %c0_81 = arith.constant 0 : index
    %c0_82 = arith.constant 0 : index
    %c0_83 = arith.constant 0 : index
    %129 = vector.load %arg9[%c0_81, %c0_82, %c0_83] : memref<2x1x32xf32, #tpu.memory_space<vmem>>, vector<1x1x32xf32>
    %130 = vector.shape_cast %129 : vector<1x1x32xf32> to vector<1x32xf32>
    %c0_84 = arith.constant 0 : index
    %c0_85 = arith.constant 0 : index
    %c0_86 = arith.constant 0 : index
    %131 = vector.load %arg10[%c0_84, %c0_85, %c0_86] : memref<2x1x32xf32, #tpu.memory_space<vmem>>, vector<1x1x32xf32>
    %132 = vector.shape_cast %131 : vector<1x1x32xf32> to vector<1x32xf32>
    %cst_87 = arith.constant dense<0.000000e+00> : vector<8xf32>
    %133 = vector.multi_reduction <add>, %128, %cst_87 [1] : vector<8x32xf32> to vector<8xf32>
    %134 = vector.shape_cast %133 : vector<8xf32> to vector<8x1xf32>
    %cst_88 = arith.constant 3.200000e+01 : f32
    %135 = vector.broadcast %cst_88 : f32 to vector<8x1xf32>
    %136 = arith.divf %134, %135 : vector<8x1xf32>
    %137 = vector.broadcast %136 : vector<8x1xf32> to vector<8x32xf32>
    %138 = arith.subf %128, %137 : vector<8x32xf32>
    %139 = arith.mulf %138, %138 : vector<8x32xf32>
    %cst_89 = arith.constant dense<0.000000e+00> : vector<8xf32>
    %140 = vector.multi_reduction <add>, %139, %cst_89 [1] : vector<8x32xf32> to vector<8xf32>
    %141 = vector.shape_cast %140 : vector<8xf32> to vector<8x1xf32>
    %cst_90 = arith.constant 3.200000e+01 : f32
    %142 = vector.broadcast %cst_90 : f32 to vector<8x1xf32>
    %143 = arith.divf %141, %142 : vector<8x1xf32>
    %144 = vector.broadcast %136 : vector<8x1xf32> to vector<8x32xf32>
    %145 = arith.subf %128, %144 : vector<8x32xf32>
    %cst_91 = arith.constant 9.99999974E-6 : f32
    %146 = vector.broadcast %cst_91 : f32 to vector<8x1xf32>
    %147 = arith.addf %143, %146 : vector<8x1xf32>
    %148 = math.rsqrt %147 : vector<8x1xf32>
    %149 = vector.broadcast %148 : vector<8x1xf32> to vector<8x32xf32>
    %150 = arith.mulf %145, %149 : vector<8x32xf32>
    %151 = vector.broadcast %130 : vector<1x32xf32> to vector<8x32xf32>
    %152 = arith.mulf %150, %151 : vector<8x32xf32>
    %153 = vector.broadcast %132 : vector<1x32xf32> to vector<8x32xf32>
    %154 = arith.addf %152, %153 : vector<8x32xf32>
    %155 = arith.truncf %154 : vector<8x32xf32> to vector<8x32xbf16>
    %c0_92 = arith.constant 0 : index
    %c0_93 = arith.constant 0 : index
    %c0_94 = arith.constant 0 : index
    %156 = vector.load %arg11[%c0_92, %c0_93, %c0_94] : memref<2x32x64xbf16, #tpu.memory_space<vmem>>, vector<1x32x64xbf16>
    %157 = vector.shape_cast %156 : vector<1x32x64xbf16> to vector<32x64xbf16>
    %cst_95 = arith.constant dense<0.000000e+00> : vector<8x64xf32>
    %158 = tpu.matmul %155, %157, %cst_95 {dimension_numbers = #tpu.dot_dimension_numbers<[1], [0], [0], [1], [0, 0, 1, 1], [], []>} : vector<8x32xbf16>, vector<32x64xbf16>, vector<8x64xf32> -> vector<8x64xf32>
    %c0_96 = arith.constant 0 : index
    %c0_97 = arith.constant 0 : index
    %c0_98 = arith.constant 0 : index
    %159 = vector.load %arg12[%c0_96, %c0_97, %c0_98] : memref<2x1x64xf32, #tpu.memory_space<vmem>>, vector<1x1x64xf32>
    %160 = vector.shape_cast %159 : vector<1x1x64xf32> to vector<1x64xf32>
    %161 = vector.broadcast %160 : vector<1x64xf32> to vector<8x64xf32>
    %162 = arith.addf %158, %161 : vector<8x64xf32>
    %cst_99 = arith.constant 0.000000e+00 : f32
    %163 = vector.broadcast %cst_99 : f32 to vector<8x64xf32>
    %164 = arith.maximumf %162, %163 : vector<8x64xf32>
    %165 = arith.truncf %164 : vector<8x64xf32> to vector<8x64xbf16>
    %c0_100 = arith.constant 0 : index
    %c0_101 = arith.constant 0 : index
    %c0_102 = arith.constant 0 : index
    %166 = vector.load %arg13[%c0_100, %c0_101, %c0_102] : memref<2x64x32xbf16, #tpu.memory_space<vmem>>, vector<1x64x32xbf16>
    %167 = vector.shape_cast %166 : vector<1x64x32xbf16> to vector<64x32xbf16>
    %cst_103 = arith.constant dense<0.000000e+00> : vector<8x32xf32>
    %168 = tpu.matmul %165, %167, %cst_103 {dimension_numbers = #tpu.dot_dimension_numbers<[1], [0], [0], [1], [0, 0, 1, 1], [], []>} : vector<8x64xbf16>, vector<64x32xbf16>, vector<8x32xf32> -> vector<8x32xf32>
    %c0_104 = arith.constant 0 : index
    %c0_105 = arith.constant 0 : index
    %c0_106 = arith.constant 0 : index
    %169 = vector.load %arg14[%c0_104, %c0_105, %c0_106] : memref<2x1x32xf32, #tpu.memory_space<vmem>>, vector<1x1x32xf32>
    %170 = vector.shape_cast %169 : vector<1x1x32xf32> to vector<1x32xf32>
    %171 = vector.broadcast %170 : vector<1x32xf32> to vector<8x32xf32>
    %172 = arith.addf %168, %171 : vector<8x32xf32>
    %173 = arith.addf %154, %172 : vector<8x32xf32>
    %c0_107 = arith.constant 0 : index
    %c0_108 = arith.constant 0 : index
    %c0_109 = arith.constant 0 : index
    %174 = vector.load %arg15[%c0_107, %c0_108, %c0_109] : memref<2x1x32xf32, #tpu.memory_space<vmem>>, vector<1x1x32xf32>
    %175 = vector.shape_cast %174 : vector<1x1x32xf32> to vector<1x32xf32>
    %c0_110 = arith.constant 0 : index
    %c0_111 = arith.constant 0 : index
    %c0_112 = arith.constant 0 : index
    %176 = vector.load %arg16[%c0_110, %c0_111, %c0_112] : memref<2x1x32xf32, #tpu.memory_space<vmem>>, vector<1x1x32xf32>
    %177 = vector.shape_cast %176 : vector<1x1x32xf32> to vector<1x32xf32>
    %cst_113 = arith.constant dense<0.000000e+00> : vector<8xf32>
    %178 = vector.multi_reduction <add>, %173, %cst_113 [1] : vector<8x32xf32> to vector<8xf32>
    %179 = vector.shape_cast %178 : vector<8xf32> to vector<8x1xf32>
    %cst_114 = arith.constant 3.200000e+01 : f32
    %180 = vector.broadcast %cst_114 : f32 to vector<8x1xf32>
    %181 = arith.divf %179, %180 : vector<8x1xf32>
    %182 = vector.broadcast %181 : vector<8x1xf32> to vector<8x32xf32>
    %183 = arith.subf %173, %182 : vector<8x32xf32>
    %184 = arith.mulf %183, %183 : vector<8x32xf32>
    %cst_115 = arith.constant dense<0.000000e+00> : vector<8xf32>
    %185 = vector.multi_reduction <add>, %184, %cst_115 [1] : vector<8x32xf32> to vector<8xf32>
    %186 = vector.shape_cast %185 : vector<8xf32> to vector<8x1xf32>
    %cst_116 = arith.constant 3.200000e+01 : f32
    %187 = vector.broadcast %cst_116 : f32 to vector<8x1xf32>
    %188 = arith.divf %186, %187 : vector<8x1xf32>
    %189 = vector.broadcast %181 : vector<8x1xf32> to vector<8x32xf32>
    %190 = arith.subf %173, %189 : vector<8x32xf32>
    %cst_117 = arith.constant 9.99999974E-6 : f32
    %191 = vector.broadcast %cst_117 : f32 to vector<8x1xf32>
    %192 = arith.addf %188, %191 : vector<8x1xf32>
    %193 = math.rsqrt %192 : vector<8x1xf32>
    %194 = vector.broadcast %193 : vector<8x1xf32> to vector<8x32xf32>
    %195 = arith.mulf %190, %194 : vector<8x32xf32>
    %196 = vector.broadcast %175 : vector<1x32xf32> to vector<8x32xf32>
    %197 = arith.mulf %195, %196 : vector<8x32xf32>
    %198 = vector.broadcast %177 : vector<1x32xf32> to vector<8x32xf32>
    %199 = arith.addf %197, %198 : vector<8x32xf32>
    %200 = arith.truncf %199 : vector<8x32xf32> to vector<8x32xbf16>
    %c1_118 = arith.constant 1 : index
    %c0_119 = arith.constant 0 : index
    %c0_120 = arith.constant 0 : index
    %201 = vector.load %arg5[%c1_118, %c0_119, %c0_120] : memref<2x32x96xbf16, #tpu.memory_space<vmem>>, vector<1x32x96xbf16>
    %202 = vector.shape_cast %201 : vector<1x32x96xbf16> to vector<32x96xbf16>
    %cst_121 = arith.constant dense<0.000000e+00> : vector<8x96xf32>
    %203 = tpu.matmul %200, %202, %cst_121 {dimension_numbers = #tpu.dot_dimension_numbers<[1], [0], [0], [1], [0, 0, 1, 1], [], []>} : vector<8x32xbf16>, vector<32x96xbf16>, vector<8x96xf32> -> vector<8x96xf32>
    %c1_122 = arith.constant 1 : index
    %c0_123 = arith.constant 0 : index
    %c0_124 = arith.constant 0 : index
    %204 = vector.load %arg6[%c1_122, %c0_123, %c0_124] : memref<2x1x96xf32, #tpu.memory_space<vmem>>, vector<1x1x96xf32>
    %205 = vector.shape_cast %204 : vector<1x1x96xf32> to vector<1x96xf32>
    %206 = vector.broadcast %205 : vector<1x96xf32> to vector<8x96xf32>
    %207 = arith.addf %203, %206 : vector<8x96xf32>
    %208 = vector.extract_strided_slice %207 {offsets = [0, 0], sizes = [8, 8], strides = [1, 1]} : vector<8x96xf32> to vector<8x8xf32>
    %c0_125 = arith.constant 0 : index
    %c0_126 = arith.constant 0 : index
    %c0_127 = arith.constant 0 : index
    %209 = vector.load %arg20[%c0_125, %c0_126, %c0_127] : memref<4x8x8xf32, #tpu.memory_space<vmem>>, vector<1x8x8xf32>
    %210 = vector.shape_cast %209 : vector<1x8x8xf32> to vector<8x8xf32>
    %211 = vector.shape_cast %208 : vector<8x8xf32> to vector<1x8x8xf32>
    tpu.vector_store %arg20[%c0_125, %c0_126, %c0_127], %211 {strides = array<i32>} : memref<4x8x8xf32, #tpu.memory_space<vmem>>, vector<1x8x8xf32>,
    %212 = vector.extract_strided_slice %207 {offsets = [0, 32], sizes = [8, 8], strides = [1, 1]} : vector<8x96xf32> to vector<8x8xf32>
    %c0_128 = arith.constant 0 : index
    %c0_129 = arith.constant 0 : index
    %c0_130 = arith.constant 0 : index
    %213 = vector.load %arg21[%c0_128, %c0_129, %c0_130] : memref<4x8x8xf32, #tpu.memory_space<vmem>>, vector<1x8x8xf32>
    %214 = vector.shape_cast %213 : vector<1x8x8xf32> to vector<8x8xf32>
    %215 = vector.shape_cast %212 : vector<8x8xf32> to vector<1x8x8xf32>
    tpu.vector_store %arg21[%c0_128, %c0_129, %c0_130], %215 {strides = array<i32>} : memref<4x8x8xf32, #tpu.memory_space<vmem>>, vector<1x8x8xf32>,
    %216 = vector.extract_strided_slice %207 {offsets = [0, 64], sizes = [8, 8], strides = [1, 1]} : vector<8x96xf32> to vector<8x8xf32>
    %c0_131 = arith.constant 0 : index
    %c0_132 = arith.constant 0 : index
    %c0_133 = arith.constant 0 : index
    %217 = vector.load %arg22[%c0_131, %c0_132, %c0_133] : memref<4x8x8xf32, #tpu.memory_space<vmem>>, vector<1x8x8xf32>
    %218 = vector.shape_cast %217 : vector<1x8x8xf32> to vector<8x8xf32>
    %219 = vector.shape_cast %216 : vector<8x8xf32> to vector<1x8x8xf32>
    tpu.vector_store %arg22[%c0_131, %c0_132, %c0_133], %219 {strides = array<i32>} : memref<4x8x8xf32, #tpu.memory_space<vmem>>, vector<1x8x8xf32>,
    %220 = vector.extract_strided_slice %207 {offsets = [0, 8], sizes = [8, 8], strides = [1, 1]} : vector<8x96xf32> to vector<8x8xf32>
    %c1_134 = arith.constant 1 : index
    %c0_135 = arith.constant 0 : index
    %c0_136 = arith.constant 0 : index
    %221 = vector.load %arg20[%c1_134, %c0_135, %c0_136] : memref<4x8x8xf32, #tpu.memory_space<vmem>>, vector<1x8x8xf32>
    %222 = vector.shape_cast %221 : vector<1x8x8xf32> to vector<8x8xf32>
    %223 = vector.shape_cast %220 : vector<8x8xf32> to vector<1x8x8xf32>
    tpu.vector_store %arg20[%c1_134, %c0_135, %c0_136], %223 {strides = array<i32>} : memref<4x8x8xf32, #tpu.memory_space<vmem>>, vector<1x8x8xf32>,
    %224 = vector.extract_strided_slice %207 {offsets = [0, 40], sizes = [8, 8], strides = [1, 1]} : vector<8x96xf32> to vector<8x8xf32>
    %c1_137 = arith.constant 1 : index
    %c0_138 = arith.constant 0 : index
    %c0_139 = arith.constant 0 : index
    %225 = vector.load %arg21[%c1_137, %c0_138, %c0_139] : memref<4x8x8xf32, #tpu.memory_space<vmem>>, vector<1x8x8xf32>
    %226 = vector.shape_cast %225 : vector<1x8x8xf32> to vector<8x8xf32>
    %227 = vector.shape_cast %224 : vector<8x8xf32> to vector<1x8x8xf32>
    tpu.vector_store %arg21[%c1_137, %c0_138, %c0_139], %227 {strides = array<i32>} : memref<4x8x8xf32, #tpu.memory_space<vmem>>, vector<1x8x8xf32>,
    %228 = vector.extract_strided_slice %207 {offsets = [0, 72], sizes = [8, 8], strides = [1, 1]} : vector<8x96xf32> to vector<8x8xf32>
    %c1_140 = arith.constant 1 : index
    %c0_141 = arith.constant 0 : index
    %c0_142 = arith.constant 0 : index
    %229 = vector.load %arg22[%c1_140, %c0_141, %c0_142] : memref<4x8x8xf32, #tpu.memory_space<vmem>>, vector<1x8x8xf32>
    %230 = vector.shape_cast %229 : vector<1x8x8xf32> to vector<8x8xf32>
    %231 = vector.shape_cast %228 : vector<8x8xf32> to vector<1x8x8xf32>
    tpu.vector_store %arg22[%c1_140, %c0_141, %c0_142], %231 {strides = array<i32>} : memref<4x8x8xf32, #tpu.memory_space<vmem>>, vector<1x8x8xf32>,
    %232 = vector.extract_strided_slice %207 {offsets = [0, 16], sizes = [8, 8], strides = [1, 1]} : vector<8x96xf32> to vector<8x8xf32>
    %c2_143 = arith.constant 2 : index
    %c0_144 = arith.constant 0 : index
    %c0_145 = arith.constant 0 : index
    %233 = vector.load %arg20[%c2_143, %c0_144, %c0_145] : memref<4x8x8xf32, #tpu.memory_space<vmem>>, vector<1x8x8xf32>
    %234 = vector.shape_cast %233 : vector<1x8x8xf32> to vector<8x8xf32>
    %235 = vector.shape_cast %232 : vector<8x8xf32> to vector<1x8x8xf32>
    tpu.vector_store %arg20[%c2_143, %c0_144, %c0_145], %235 {strides = array<i32>} : memref<4x8x8xf32, #tpu.memory_space<vmem>>, vector<1x8x8xf32>,
    %236 = vector.extract_strided_slice %207 {offsets = [0, 48], sizes = [8, 8], strides = [1, 1]} : vector<8x96xf32> to vector<8x8xf32>
    %c2_146 = arith.constant 2 : index
    %c0_147 = arith.constant 0 : index
    %c0_148 = arith.constant 0 : index
    %237 = vector.load %arg21[%c2_146, %c0_147, %c0_148] : memref<4x8x8xf32, #tpu.memory_space<vmem>>, vector<1x8x8xf32>
    %238 = vector.shape_cast %237 : vector<1x8x8xf32> to vector<8x8xf32>
    %239 = vector.shape_cast %236 : vector<8x8xf32> to vector<1x8x8xf32>
    tpu.vector_store %arg21[%c2_146, %c0_147, %c0_148], %239 {strides = array<i32>} : memref<4x8x8xf32, #tpu.memory_space<vmem>>, vector<1x8x8xf32>,
    %240 = vector.extract_strided_slice %207 {offsets = [0, 80], sizes = [8, 8], strides = [1, 1]} : vector<8x96xf32> to vector<8x8xf32>
    %c2_149 = arith.constant 2 : index
    %c0_150 = arith.constant 0 : index
    %c0_151 = arith.constant 0 : index
    %241 = vector.load %arg22[%c2_149, %c0_150, %c0_151] : memref<4x8x8xf32, #tpu.memory_space<vmem>>, vector<1x8x8xf32>
    %242 = vector.shape_cast %241 : vector<1x8x8xf32> to vector<8x8xf32>
    %243 = vector.shape_cast %240 : vector<8x8xf32> to vector<1x8x8xf32>
    tpu.vector_store %arg22[%c2_149, %c0_150, %c0_151], %243 {strides = array<i32>} : memref<4x8x8xf32, #tpu.memory_space<vmem>>, vector<1x8x8xf32>,
    %244 = vector.extract_strided_slice %207 {offsets = [0, 24], sizes = [8, 8], strides = [1, 1]} : vector<8x96xf32> to vector<8x8xf32>
    %c3_152 = arith.constant 3 : index
    %c0_153 = arith.constant 0 : index
    %c0_154 = arith.constant 0 : index
    %245 = vector.load %arg20[%c3_152, %c0_153, %c0_154] : memref<4x8x8xf32, #tpu.memory_space<vmem>>, vector<1x8x8xf32>
    %246 = vector.shape_cast %245 : vector<1x8x8xf32> to vector<8x8xf32>
    %247 = vector.shape_cast %244 : vector<8x8xf32> to vector<1x8x8xf32>
    tpu.vector_store %arg20[%c3_152, %c0_153, %c0_154], %247 {strides = array<i32>} : memref<4x8x8xf32, #tpu.memory_space<vmem>>, vector<1x8x8xf32>,
    %248 = vector.extract_strided_slice %207 {offsets = [0, 56], sizes = [8, 8], strides = [1, 1]} : vector<8x96xf32> to vector<8x8xf32>
    %c3_155 = arith.constant 3 : index
    %c0_156 = arith.constant 0 : index
    %c0_157 = arith.constant 0 : index
    %249 = vector.load %arg21[%c3_155, %c0_156, %c0_157] : memref<4x8x8xf32, #tpu.memory_space<vmem>>, vector<1x8x8xf32>
    %250 = vector.shape_cast %249 : vector<1x8x8xf32> to vector<8x8xf32>
    %251 = vector.shape_cast %248 : vector<8x8xf32> to vector<1x8x8xf32>
    tpu.vector_store %arg21[%c3_155, %c0_156, %c0_157], %251 {strides = array<i32>} : memref<4x8x8xf32, #tpu.memory_space<vmem>>, vector<1x8x8xf32>,
    %252 = vector.extract_strided_slice %207 {offsets = [0, 88], sizes = [8, 8], strides = [1, 1]} : vector<8x96xf32> to vector<8x8xf32>
    %c3_158 = arith.constant 3 : index
    %c0_159 = arith.constant 0 : index
    %c0_160 = arith.constant 0 : index
    %253 = vector.load %arg22[%c3_158, %c0_159, %c0_160] : memref<4x8x8xf32, #tpu.memory_space<vmem>>, vector<1x8x8xf32>
    %254 = vector.shape_cast %253 : vector<1x8x8xf32> to vector<8x8xf32>
    %255 = vector.shape_cast %252 : vector<8x8xf32> to vector<1x8x8xf32>
    tpu.vector_store %arg22[%c3_158, %c0_159, %c0_160], %255 {strides = array<i32>} : memref<4x8x8xf32, #tpu.memory_space<vmem>>, vector<1x8x8xf32>,
    %c0_161 = arith.constant 0 : index
    %c0_162 = arith.constant 0 : index
    %c0_163 = arith.constant 0 : index
    %256 = vector.load %arg20[%c0_161, %c0_162, %c0_163] : memref<4x8x8xf32, #tpu.memory_space<vmem>>, vector<4x8x8xf32>
    %257 = arith.truncf %256 : vector<4x8x8xf32> to vector<4x8x8xbf16>
    %c0_164 = arith.constant 0 : index
    %c0_165 = arith.constant 0 : index
    %c0_166 = arith.constant 0 : index
    %258 = vector.load %arg21[%c0_164, %c0_165, %c0_166] : memref<4x8x8xf32, #tpu.memory_space<vmem>>, vector<4x8x8xf32>
    %259 = arith.truncf %258 : vector<4x8x8xf32> to vector<4x8x8xbf16>
    %c0_167 = arith.constant 0 : index
    %c0_168 = arith.constant 0 : index
    %c0_169 = arith.constant 0 : index
    %260 = vector.load %arg22[%c0_167, %c0_168, %c0_169] : memref<4x8x8xf32, #tpu.memory_space<vmem>>, vector<4x8x8xf32>
    %261 = arith.truncf %260 : vector<4x8x8xf32> to vector<4x8x8xbf16>
    "tpu.trace_start"() <{level = 10 : i32, message = "hqc,hkc->hqk"}> : () -> ()
    %cst_170 = arith.constant dense<0.000000e+00> : vector<4x8x8xf32>
    %262 = tpu.matmul %257, %259, %cst_170 {dimension_numbers = #tpu.dot_dimension_numbers<[2], [2], [1], [1], [0, 0, 0, 1, 1, 1], [0], [0]>} : vector<4x8x8xbf16>, vector<4x8x8xbf16>, vector<4x8x8xf32> -> vector<4x8x8xf32>
    "tpu.trace_stop"() : () -> ()
    %cst_171 = arith.constant 0.353553385 : f32
    %263 = vector.broadcast %cst_171 : f32 to vector<4x8x8xf32>
    %264 = arith.mulf %262, %263 : vector<4x8x8xf32>
    %265 = arith.addf %264, %4 : vector<4x8x8xf32>
    %cst_172 = arith.constant dense<0xFF800000> : vector<4x8xf32>
    %266 = vector.multi_reduction <maximumf>, %265, %cst_172 [2] : vector<4x8x8xf32> to vector<4x8xf32>
    %267 = vector.shape_cast %266 : vector<4x8xf32> to vector<4x8x1xf32>
    %268 = vector.broadcast %267 : vector<4x8x1xf32> to vector<4x8x8xf32>
    %269 = arith.subf %265, %268 : vector<4x8x8xf32>
    %270 = math.exp %269 : vector<4x8x8xf32>
    %cst_173 = arith.constant dense<0.000000e+00> : vector<4x8xf32>
    %271 = vector.multi_reduction <add>, %270, %cst_173 [2] : vector<4x8x8xf32> to vector<4x8xf32>
    %272 = vector.shape_cast %271 : vector<4x8xf32> to vector<4x8x1xf32>
    %273 = tpu.reciprocal %272 {approx = true} : vector<4x8x1xf32> -> vector<4x8x1xf32>
    %274 = vector.broadcast %273 : vector<4x8x1xf32> to vector<4x8x8xf32>
    %275 = arith.mulf %270, %274 : vector<4x8x8xf32>
    %276 = arith.truncf %275 : vector<4x8x8xf32> to vector<4x8x8xbf16>
    "tpu.trace_start"() <{level = 10 : i32, message = "hqk,hkc->hqc"}> : () -> ()
    %cst_174 = arith.constant dense<0.000000e+00> : vector<4x8x8xf32>
    %277 = tpu.matmul %276, %261, %cst_174 {dimension_numbers = #tpu.dot_dimension_numbers<[2], [1], [1], [2], [0, 0, 0, 1, 1, 2], [0], [0]>} : vector<4x8x8xbf16>, vector<4x8x8xbf16>, vector<4x8x8xf32> -> vector<4x8x8xf32>
    "tpu.trace_stop"() : () -> ()
    %278 = vector.extract_strided_slice %277 {offsets = [0, 0, 0], sizes = [1, 8, 8], strides = [1, 1, 1]} : vector<4x8x8xf32> to vector<1x8x8xf32>
    %279 = vector.shape_cast %278 : vector<1x8x8xf32> to vector<8x8xf32>
    %c0_175 = arith.constant 0 : index
    %c0_176 = arith.constant 0 : index
    %280 = vector.load %arg23[%c0_175, %c0_176] : memref<8x32xf32, #tpu.memory_space<vmem>>, vector<8x8xf32>
    tpu.vector_store %arg23[%c0_175, %c0_176], %279 {strides = array<i32>} : memref<8x32xf32, #tpu.memory_space<vmem>>, vector<8x8xf32>,
    %281 = vector.extract_strided_slice %277 {offsets = [1, 0, 0], sizes = [1, 8, 8], strides = [1, 1, 1]} : vector<4x8x8xf32> to vector<1x8x8xf32>
    %282 = vector.shape_cast %281 : vector<1x8x8xf32> to vector<8x8xf32>
    %c0_177 = arith.constant 0 : index
    %c8_178 = arith.constant 8 : index
    %283 = vector.load %arg23[%c0_177, %c8_178] : memref<8x32xf32, #tpu.memory_space<vmem>>, vector<8x8xf32>
    tpu.vector_store %arg23[%c0_177, %c8_178], %282 {strides = array<i32>} : memref<8x32xf32, #tpu.memory_space<vmem>>, vector<8x8xf32>,
    %284 = vector.extract_strided_slice %277 {offsets = [2, 0, 0], sizes = [1, 8, 8], strides = [1, 1, 1]} : vector<4x8x8xf32> to vector<1x8x8xf32>
    %285 = vector.shape_cast %284 : vector<1x8x8xf32> to vector<8x8xf32>
    %c0_179 = arith.constant 0 : index
    %c16_180 = arith.constant 16 : index
    %286 = vector.load %arg23[%c0_179, %c16_180] : memref<8x32xf32, #tpu.memory_space<vmem>>, vector<8x8xf32>
    tpu.vector_store %arg23[%c0_179, %c16_180], %285 {strides = array<i32>} : memref<8x32xf32, #tpu.memory_space<vmem>>, vector<8x8xf32>,
    %287 = vector.extract_strided_slice %277 {offsets = [3, 0, 0], sizes = [1, 8, 8], strides = [1, 1, 1]} : vector<4x8x8xf32> to vector<1x8x8xf32>
    %288 = vector.shape_cast %287 : vector<1x8x8xf32> to vector<8x8xf32>
    %c0_181 = arith.constant 0 : index
    %c24_182 = arith.constant 24 : index
    %289 = vector.load %arg23[%c0_181, %c24_182] : memref<8x32xf32, #tpu.memory_space<vmem>>, vector<8x8xf32>
    tpu.vector_store %arg23[%c0_181, %c24_182], %288 {strides = array<i32>} : memref<8x32xf32, #tpu.memory_space<vmem>>, vector<8x8xf32>,
    %c0_183 = arith.constant 0 : index
    %c0_184 = arith.constant 0 : index
    %290 = vector.load %arg23[%c0_183, %c0_184] : memref<8x32xf32, #tpu.memory_space<vmem>>, vector<8x32xf32>
    %291 = arith.truncf %290 : vector<8x32xf32> to vector<8x32xbf16>
    %c1_185 = arith.constant 1 : index
    %c0_186 = arith.constant 0 : index
    %c0_187 = arith.constant 0 : index
    %292 = vector.load %arg7[%c1_185, %c0_186, %c0_187] : memref<2x32x32xbf16, #tpu.memory_space<vmem>>, vector<1x32x32xbf16>
    %293 = vector.shape_cast %292 : vector<1x32x32xbf16> to vector<32x32xbf16>
    %cst_188 = arith.constant dense<0.000000e+00> : vector<8x32xf32>
    %294 = tpu.matmul %291, %293, %cst_188 {dimension_numbers = #tpu.dot_dimension_numbers<[1], [0], [0], [1], [0, 0, 1, 1], [], []>} : vector<8x32xbf16>, vector<32x32xbf16>, vector<8x32xf32> -> vector<8x32xf32>
    %c1_189 = arith.constant 1 : index
    %c0_190 = arith.constant 0 : index
    %c0_191 = arith.constant 0 : index
    %295 = vector.load %arg8[%c1_189, %c0_190, %c0_191] : memref<2x1x32xf32, #tpu.memory_space<vmem>>, vector<1x1x32xf32>
    %296 = vector.shape_cast %295 : vector<1x1x32xf32> to vector<1x32xf32>
    %297 = vector.broadcast %296 : vector<1x32xf32> to vector<8x32xf32>
    %298 = arith.addf %294, %297 : vector<8x32xf32>
    %299 = arith.addf %199, %298 : vector<8x32xf32>
    %c1_192 = arith.constant 1 : index
    %c0_193 = arith.constant 0 : index
    %c0_194 = arith.constant 0 : index
    %300 = vector.load %arg9[%c1_192, %c0_193, %c0_194] : memref<2x1x32xf32, #tpu.memory_space<vmem>>, vector<1x1x32xf32>
    %301 = vector.shape_cast %300 : vector<1x1x32xf32> to vector<1x32xf32>
    %c1_195 = arith.constant 1 : index
    %c0_196 = arith.constant 0 : index
    %c0_197 = arith.constant 0 : index
    %302 = vector.load %arg10[%c1_195, %c0_196, %c0_197] : memref<2x1x32xf32, #tpu.memory_space<vmem>>, vector<1x1x32xf32>
    %303 = vector.shape_cast %302 : vector<1x1x32xf32> to vector<1x32xf32>
    %cst_198 = arith.constant dense<0.000000e+00> : vector<8xf32>
    %304 = vector.multi_reduction <add>, %299, %cst_198 [1] : vector<8x32xf32> to vector<8xf32>
    %305 = vector.shape_cast %304 : vector<8xf32> to vector<8x1xf32>
    %cst_199 = arith.constant 3.200000e+01 : f32
    %306 = vector.broadcast %cst_199 : f32 to vector<8x1xf32>
    %307 = arith.divf %305, %306 : vector<8x1xf32>
    %308 = vector.broadcast %307 : vector<8x1xf32> to vector<8x32xf32>
    %309 = arith.subf %299, %308 : vector<8x32xf32>
    %310 = arith.mulf %309, %309 : vector<8x32xf32>
    %cst_200 = arith.constant dense<0.000000e+00> : vector<8xf32>
    %311 = vector.multi_reduction <add>, %310, %cst_200 [1] : vector<8x32xf32> to vector<8xf32>
    %312 = vector.shape_cast %311 : vector<8xf32> to vector<8x1xf32>
    %cst_201 = arith.constant 3.200000e+01 : f32
    %313 = vector.broadcast %cst_201 : f32 to vector<8x1xf32>
    %314 = arith.divf %312, %313 : vector<8x1xf32>
    %315 = vector.broadcast %307 : vector<8x1xf32> to vector<8x32xf32>
    %316 = arith.subf %299, %315 : vector<8x32xf32>
    %cst_202 = arith.constant 9.99999974E-6 : f32
    %317 = vector.broadcast %cst_202 : f32 to vector<8x1xf32>
    %318 = arith.addf %314, %317 : vector<8x1xf32>
    %319 = math.rsqrt %318 : vector<8x1xf32>
    %320 = vector.broadcast %319 : vector<8x1xf32> to vector<8x32xf32>
    %321 = arith.mulf %316, %320 : vector<8x32xf32>
    %322 = vector.broadcast %301 : vector<1x32xf32> to vector<8x32xf32>
    %323 = arith.mulf %321, %322 : vector<8x32xf32>
    %324 = vector.broadcast %303 : vector<1x32xf32> to vector<8x32xf32>
    %325 = arith.addf %323, %324 : vector<8x32xf32>
    %326 = arith.truncf %325 : vector<8x32xf32> to vector<8x32xbf16>
    %c1_203 = arith.constant 1 : index
    %c0_204 = arith.constant 0 : index
    %c0_205 = arith.constant 0 : index
    %327 = vector.load %arg11[%c1_203, %c0_204, %c0_205] : memref<2x32x64xbf16, #tpu.memory_space<vmem>>, vector<1x32x64xbf16>
    %328 = vector.shape_cast %327 : vector<1x32x64xbf16> to vector<32x64xbf16>
    %cst_206 = arith.constant dense<0.000000e+00> : vector<8x64xf32>
    %329 = tpu.matmul %326, %328, %cst_206 {dimension_numbers = #tpu.dot_dimension_numbers<[1], [0], [0], [1], [0, 0, 1, 1], [], []>} : vector<8x32xbf16>, vector<32x64xbf16>, vector<8x64xf32> -> vector<8x64xf32>
    %c1_207 = arith.constant 1 : index
    %c0_208 = arith.constant 0 : index
    %c0_209 = arith.constant 0 : index
    %330 = vector.load %arg12[%c1_207, %c0_208, %c0_209] : memref<2x1x64xf32, #tpu.memory_space<vmem>>, vector<1x1x64xf32>
    %331 = vector.shape_cast %330 : vector<1x1x64xf32> to vector<1x64xf32>
    %332 = vector.broadcast %331 : vector<1x64xf32> to vector<8x64xf32>
    %333 = arith.addf %329, %332 : vector<8x64xf32>
    %cst_210 = arith.constant 0.000000e+00 : f32
    %334 = vector.broadcast %cst_210 : f32 to vector<8x64xf32>
    %335 = arith.maximumf %333, %334 : vector<8x64xf32>
    %336 = arith.truncf %335 : vector<8x64xf32> to vector<8x64xbf16>
    %c1_211 = arith.constant 1 : index
    %c0_212 = arith.constant 0 : index
    %c0_213 = arith.constant 0 : index
    %337 = vector.load %arg13[%c1_211, %c0_212, %c0_213] : memref<2x64x32xbf16, #tpu.memory_space<vmem>>, vector<1x64x32xbf16>
    %338 = vector.shape_cast %337 : vector<1x64x32xbf16> to vector<64x32xbf16>
    %cst_214 = arith.constant dense<0.000000e+00> : vector<8x32xf32>
    %339 = tpu.matmul %336, %338, %cst_214 {dimension_numbers = #tpu.dot_dimension_numbers<[1], [0], [0], [1], [0, 0, 1, 1], [], []>} : vector<8x64xbf16>, vector<64x32xbf16>, vector<8x32xf32> -> vector<8x32xf32>
    %c1_215 = arith.constant 1 : index
    %c0_216 = arith.constant 0 : index
    %c0_217 = arith.constant 0 : index
    %340 = vector.load %arg14[%c1_215, %c0_216, %c0_217] : memref<2x1x32xf32, #tpu.memory_space<vmem>>, vector<1x1x32xf32>
    %341 = vector.shape_cast %340 : vector<1x1x32xf32> to vector<1x32xf32>
    %342 = vector.broadcast %341 : vector<1x32xf32> to vector<8x32xf32>
    %343 = arith.addf %339, %342 : vector<8x32xf32>
    %344 = arith.addf %325, %343 : vector<8x32xf32>
    %c1_218 = arith.constant 1 : index
    %c0_219 = arith.constant 0 : index
    %c0_220 = arith.constant 0 : index
    %345 = vector.load %arg15[%c1_218, %c0_219, %c0_220] : memref<2x1x32xf32, #tpu.memory_space<vmem>>, vector<1x1x32xf32>
    %346 = vector.shape_cast %345 : vector<1x1x32xf32> to vector<1x32xf32>
    %c1_221 = arith.constant 1 : index
    %c0_222 = arith.constant 0 : index
    %c0_223 = arith.constant 0 : index
    %347 = vector.load %arg16[%c1_221, %c0_222, %c0_223] : memref<2x1x32xf32, #tpu.memory_space<vmem>>, vector<1x1x32xf32>
    %348 = vector.shape_cast %347 : vector<1x1x32xf32> to vector<1x32xf32>
    %cst_224 = arith.constant dense<0.000000e+00> : vector<8xf32>
    %349 = vector.multi_reduction <add>, %344, %cst_224 [1] : vector<8x32xf32> to vector<8xf32>
    %350 = vector.shape_cast %349 : vector<8xf32> to vector<8x1xf32>
    %cst_225 = arith.constant 3.200000e+01 : f32
    %351 = vector.broadcast %cst_225 : f32 to vector<8x1xf32>
    %352 = arith.divf %350, %351 : vector<8x1xf32>
    %353 = vector.broadcast %352 : vector<8x1xf32> to vector<8x32xf32>
    %354 = arith.subf %344, %353 : vector<8x32xf32>
    %355 = arith.mulf %354, %354 : vector<8x32xf32>
    %cst_226 = arith.constant dense<0.000000e+00> : vector<8xf32>
    %356 = vector.multi_reduction <add>, %355, %cst_226 [1] : vector<8x32xf32> to vector<8xf32>
    %357 = vector.shape_cast %356 : vector<8xf32> to vector<8x1xf32>
    %cst_227 = arith.constant 3.200000e+01 : f32
    %358 = vector.broadcast %cst_227 : f32 to vector<8x1xf32>
    %359 = arith.divf %357, %358 : vector<8x1xf32>
    %360 = vector.broadcast %352 : vector<8x1xf32> to vector<8x32xf32>
    %361 = arith.subf %344, %360 : vector<8x32xf32>
    %cst_228 = arith.constant 9.99999974E-6 : f32
    %362 = vector.broadcast %cst_228 : f32 to vector<8x1xf32>
    %363 = arith.addf %359, %362 : vector<8x1xf32>
    %364 = math.rsqrt %363 : vector<8x1xf32>
    %365 = vector.broadcast %364 : vector<8x1xf32> to vector<8x32xf32>
    %366 = arith.mulf %361, %365 : vector<8x32xf32>
    %367 = vector.broadcast %346 : vector<1x32xf32> to vector<8x32xf32>
    %368 = arith.mulf %366, %367 : vector<8x32xf32>
    %369 = vector.broadcast %348 : vector<1x32xf32> to vector<8x32xf32>
    %370 = arith.addf %368, %369 : vector<8x32xf32>
    %c0_229 = arith.constant 0 : index
    %c0_230 = arith.constant 0 : index
    %371 = vector.load %arg17[%c0_229, %c0_230] : memref<1x32xf32, #tpu.memory_space<vmem>>, vector<1x32xf32>
    %c0_231 = arith.constant 0 : index
    %c0_232 = arith.constant 0 : index
    %372 = vector.load %arg18[%c0_231, %c0_232] : memref<1x32xf32, #tpu.memory_space<vmem>>, vector<1x32xf32>
    %cst_233 = arith.constant dense<0.000000e+00> : vector<8xf32>
    %373 = vector.multi_reduction <add>, %370, %cst_233 [1] : vector<8x32xf32> to vector<8xf32>
    %374 = vector.shape_cast %373 : vector<8xf32> to vector<8x1xf32>
    %cst_234 = arith.constant 3.200000e+01 : f32
    %375 = vector.broadcast %cst_234 : f32 to vector<8x1xf32>
    %376 = arith.divf %374, %375 : vector<8x1xf32>
    %377 = vector.broadcast %376 : vector<8x1xf32> to vector<8x32xf32>
    %378 = arith.subf %370, %377 : vector<8x32xf32>
    %379 = arith.mulf %378, %378 : vector<8x32xf32>
    %cst_235 = arith.constant dense<0.000000e+00> : vector<8xf32>
    %380 = vector.multi_reduction <add>, %379, %cst_235 [1] : vector<8x32xf32> to vector<8xf32>
    %381 = vector.shape_cast %380 : vector<8xf32> to vector<8x1xf32>
    %cst_236 = arith.constant 3.200000e+01 : f32
    %382 = vector.broadcast %cst_236 : f32 to vector<8x1xf32>
    %383 = arith.divf %381, %382 : vector<8x1xf32>
    %384 = vector.broadcast %376 : vector<8x1xf32> to vector<8x32xf32>
    %385 = arith.subf %370, %384 : vector<8x32xf32>
    %cst_237 = arith.constant 9.99999974E-6 : f32
    %386 = vector.broadcast %cst_237 : f32 to vector<8x1xf32>
    %387 = arith.addf %383, %386 : vector<8x1xf32>
    %388 = math.rsqrt %387 : vector<8x1xf32>
    %389 = vector.broadcast %388 : vector<8x1xf32> to vector<8x32xf32>
    %390 = arith.mulf %385, %389 : vector<8x32xf32>
    %391 = vector.broadcast %371 : vector<1x32xf32> to vector<8x32xf32>
    %392 = arith.mulf %390, %391 : vector<8x32xf32>
    %393 = vector.broadcast %372 : vector<1x32xf32> to vector<8x32xf32>
    %394 = arith.addf %392, %393 : vector<8x32xf32>
    %c0_238 = arith.constant 0 : index
    %c0_239 = arith.constant 0 : index
    %c0_240 = arith.constant 0 : index
    %395 = vector.load %arg19[%c0_238, %c0_239, %c0_240] : memref<1x8x32xf32, #tpu.memory_space<vmem>>, vector<1x8x32xf32>
    %396 = vector.shape_cast %395 : vector<1x8x32xf32> to vector<8x32xf32>
    %397 = vector.shape_cast %394 : vector<8x32xf32> to vector<1x8x32xf32>
    tpu.vector_store %arg19[%c0_238, %c0_239, %c0_240], %397 {strides = array<i32>} : memref<1x8x32xf32, #tpu.memory_space<vmem>>, vector<1x8x32xf32>,
    return
  }
  func.func @transform_0(%arg0: i32) -> (i32, i32, i32) {
    %c0_i32 = arith.constant 0 : i32
    %c0_i32_0 = arith.constant 0 : i32
    %c0_i32_1 = arith.constant 0 : i32
    return %arg0, %c0_i32, %c0_i32_0 : i32, i32, i32
  }
  func.func @transform_1(%arg0: i32) -> (i32, i32, i32) {
    %c0_i32 = arith.constant 0 : i32
    %c0_i32_0 = arith.constant 0 : i32
    %c0_i32_1 = arith.constant 0 : i32
    return %arg0, %c0_i32, %c0_i32_0 : i32, i32, i32
  }
  func.func @transform_2(%arg0: i32) -> (i32, i32) {
    %c0_i32 = arith.constant 0 : i32
    %c0_i32_0 = arith.constant 0 : i32
    %c0_i32_1 = arith.constant 0 : i32
    return %c0_i32, %c0_i32_0 : i32, i32
  }
  func.func @transform_3(%arg0: i32) -> (i32, i32) {
    %c0_i32 = arith.constant 0 : i32
    %c0_i32_0 = arith.constant 0 : i32
    %c0_i32_1 = arith.constant 0 : i32
    return %c0_i32, %c0_i32_0 : i32, i32
  }
  func.func @transform_4(%arg0: i32) -> (i32, i32, i32) {
    %c0_i32 = arith.constant 0 : i32
    %c0_i32_0 = arith.constant 0 : i32
    %c0_i32_1 = arith.constant 0 : i32
    %c0_i32_2 = arith.constant 0 : i32
    return %c0_i32, %c0_i32_0, %c0_i32_1 : i32, i32, i32
  }
  func.func @transform_5(%arg0: i32) -> (i32, i32, i32) {
    %c0_i32 = arith.constant 0 : i32
    %c0_i32_0 = arith.constant 0 : i32
    %c0_i32_1 = arith.constant 0 : i32
    %c0_i32_2 = arith.constant 0 : i32
    return %c0_i32, %c0_i32_0, %c0_i32_1 : i32, i32, i32
  }
  func.func @transform_6(%arg0: i32) -> (i32, i32, i32) {
    %c0_i32 = arith.constant 0 : i32
    %c0_i32_0 = arith.constant 0 : i32
    %c0_i32_1 = arith.constant 0 : i32
    %c0_i32_2 = arith.constant 0 : i32
    return %c0_i32, %c0_i32_0, %c0_i32_1 : i32, i32, i32
  }
  func.func @transform_7(%arg0: i32) -> (i32, i32, i32) {
    %c0_i32 = arith.constant 0 : i32
    %c0_i32_0 = arith.constant 0 : i32
    %c0_i32_1 = arith.constant 0 : i32
    %c0_i32_2 = arith.constant 0 : i32
    return %c0_i32, %c0_i32_0, %c0_i32_1 : i32, i32, i32
  }
  func.func @transform_8(%arg0: i32) -> (i32, i32, i32) {
    %c0_i32 = arith.constant 0 : i32
    %c0_i32_0 = arith.constant 0 : i32
    %c0_i32_1 = arith.constant 0 : i32
    %c0_i32_2 = arith.constant 0 : i32
    return %c0_i32, %c0_i32_0, %c0_i32_1 : i32, i32, i32
  }
  func.func @transform_9(%arg0: i32) -> (i32, i32, i32) {
    %c0_i32 = arith.constant 0 : i32
    %c0_i32_0 = arith.constant 0 : i32
    %c0_i32_1 = arith.constant 0 : i32
    %c0_i32_2 = arith.constant 0 : i32
    return %c0_i32, %c0_i32_0, %c0_i32_1 : i32, i32, i32
  }
  func.func @transform_10(%arg0: i32) -> (i32, i32, i32) {
    %c0_i32 = arith.constant 0 : i32
    %c0_i32_0 = arith.constant 0 : i32
    %c0_i32_1 = arith.constant 0 : i32
    %c0_i32_2 = arith.constant 0 : i32
    return %c0_i32, %c0_i32_0, %c0_i32_1 : i32, i32, i32
  }
  func.func @transform_11(%arg0: i32) -> (i32, i32, i32) {
    %c0_i32 = arith.constant 0 : i32
    %c0_i32_0 = arith.constant 0 : i32
    %c0_i32_1 = arith.constant 0 : i32
    %c0_i32_2 = arith.constant 0 : i32
    return %c0_i32, %c0_i32_0, %c0_i32_1 : i32, i32, i32
  }
  func.func @transform_12(%arg0: i32) -> (i32, i32, i32) {
    %c0_i32 = arith.constant 0 : i32
    %c0_i32_0 = arith.constant 0 : i32
    %c0_i32_1 = arith.constant 0 : i32
    %c0_i32_2 = arith.constant 0 : i32
    return %c0_i32, %c0_i32_0, %c0_i32_1 : i32, i32, i32
  }
  func.func @transform_13(%arg0: i32) -> (i32, i32, i32) {
    %c0_i32 = arith.constant 0 : i32
    %c0_i32_0 = arith.constant 0 : i32
    %c0_i32_1 = arith.constant 0 : i32
    %c0_i32_2 = arith.constant 0 : i32
    return %c0_i32, %c0_i32_0, %c0_i32_1 : i32, i32, i32
  }
  func.func @transform_14(%arg0: i32) -> (i32, i32, i32) {
    %c0_i32 = arith.constant 0 : i32
    %c0_i32_0 = arith.constant 0 : i32
    %c0_i32_1 = arith.constant 0 : i32
    %c0_i32_2 = arith.constant 0 : i32
    return %c0_i32, %c0_i32_0, %c0_i32_1 : i32, i32, i32
  }
  func.func @transform_15(%arg0: i32) -> (i32, i32, i32) {
    %c0_i32 = arith.constant 0 : i32
    %c0_i32_0 = arith.constant 0 : i32
    %c0_i32_1 = arith.constant 0 : i32
    %c0_i32_2 = arith.constant 0 : i32
    return %c0_i32, %c0_i32_0, %c0_i32_1 : i32, i32, i32
  }
  func.func @transform_16(%arg0: i32) -> (i32, i32) {
    %c0_i32 = arith.constant 0 : i32
    %c0_i32_0 = arith.constant 0 : i32
    %c0_i32_1 = arith.constant 0 : i32
    return %c0_i32, %c0_i32_0 : i32, i32
  }
  func.func @transform_17(%arg0: i32) -> (i32, i32) {
    %c0_i32 = arith.constant 0 : i32
    %c0_i32_0 = arith.constant 0 : i32
    %c0_i32_1 = arith.constant 0 : i32
    return %c0_i32, %c0_i32_0 : i32, i32
  }
  func.func @transform_18(%arg0: i32) -> (i32, i32, i32) {
    %c0_i32 = arith.constant 0 : i32
    %c0_i32_0 = arith.constant 0 : i32
    %c0_i32_1 = arith.constant 0 : i32
    return %arg0, %c0_i32, %c0_i32_0 : i32, i32, i32
  }
}

</mosaic_0001>

<llo_original>
// kernel: _lambda_.1
$region0: #{_lambda_.1}
  #allocation0 [shape = 'u32[]', space=smem, size = 0x4, offset = 0x4, fixed_abs, tag = 'smem constant byte address 0x4 - core index']
  #allocation1 [shape = 'u32[144,128]{1,0:T(1,128)}', space=vmem, size = 0x12000, scoped, tag = 'internal scratch']
  #allocation2 [shape = 'f32[4,8,8]{2,1,0:T(8,128)}', space=vmem, size = 0x4000, scoped, tag = 'scratch operand']
  #allocation3 [shape = 'f32[4,8,8]{2,1,0:T(8,128)}', space=vmem, size = 0x4000, scoped, tag = 'scratch operand']
  #allocation4 [shape = 'f32[4,8,8]{2,1,0:T(8,128)}', space=vmem, size = 0x4000, scoped, tag = 'scratch operand']
  #allocation5 [shape = 'f32[8,32]{1,0:T(8,128)}', space=vmem, size = 0x1000, scoped, tag = 'scratch operand']
  %s0 = inlined_call_operand.vmem [shape: f32[2,8,32], index: 0, kind: input, shape index: {}]
  %s1 = inlined_call_operand.vmem [shape: f32[2,1,8], index: 1, kind: input, shape index: {}]
  %s2 = inlined_call_operand.vmem [shape: f32[1,32], index: 2, kind: input, shape index: {}, may-alias: {2,16}]
  %s3 = inlined_call_operand.vmem [shape: f32[1,32], index: 3, kind: input, shape index: {}, may-alias: {3,17}]
  %s4 = inlined_call_operand.vmem [shape: bf16[2,32,96], index: 4, kind: input, shape index: {}]
  %s5 = inlined_call_operand.hbm [shape: f32[2,1,96], index: 5, kind: input, shape index: {}]
  %s6 = inlined_call_operand.vmem [shape: bf16[2,32,32], index: 6, kind: input, shape index: {}]
  %s7 = inlined_call_operand.hbm [shape: f32[2,1,32], index: 7, kind: input, shape index: {}]
  %s8 = inlined_call_operand.vmem [shape: f32[2,1,32], index: 8, kind: input, shape index: {}, may-alias: {8,14}]
  %s9 = inlined_call_operand.vmem [shape: f32[2,1,32], index: 9, kind: input, shape index: {}, may-alias: {9,15}]
  %s10 = inlined_call_operand.hbm [shape: bf16[2,32,64], index: 10, kind: input, shape index: {}]
  %s11 = inlined_call_operand.hbm [shape: f32[2,1,64], index: 11, kind: input, shape index: {}]
  %s12 = inlined_call_operand.vmem [shape: bf16[2,64,32], index: 12, kind: input, shape index: {}]
  %s13 = inlined_call_operand.hbm [shape: f32[2,1,32], index: 13, kind: input, shape index: {}]
  %s14 = inlined_call_operand.vmem [shape: f32[2,1,32], index: 14, kind: input, shape index: {}, may-alias: {8,14}]
  %s15 = inlined_call_operand.vmem [shape: f32[2,1,32], index: 15, kind: input, shape index: {}, may-alias: {9,15}]
  %s16 = inlined_call_operand.vmem [shape: f32[1,32], index: 16, kind: input, shape index: {}, may-alias: {2,16}]
  %s17 = inlined_call_operand.vmem [shape: f32[1,32], index: 17, kind: input, shape index: {}, may-alias: {3,17}]
  %s18 = inlined_call_operand.vmem [shape: f32[2,8,32], index: 18, kind: output, shape index: {}]
  %s19 = sld [smem:[#allocation0]]
  $region125: #{_lambda_.1} parent=0
    _
  %s21 = ssub.s32 1, %s19
  %s22 = scalar_select 0, %s21, %s19
  $region1: #{_lambda_.1} parent=0
    #allocation6 [shape = 'u8[1024]{0}', space=vmem, size = 0x400, scoped, tag = 'input window, operand 5, single buffered']
    #allocation7 [shape = 's32[2]{0}', space=sflag, size = 0x8, scoped, tag = 'scoped memory for _lambda_.1']
    #allocation8 [shape = 'u8[1024]{0}', space=vmem, size = 0x400, scoped, tag = 'input window, operand 7, single buffered']
    #allocation9 [shape = 's32[1]{0}', space=sflag, size = 0x4, scoped, tag = 'scoped memory for _lambda_.1']
    #allocation10 [shape = 'u8[16384]{0}', space=vmem, size = 0x4000, scoped, tag = 'input window, operand 10, single buffered']
    #allocation11 [shape = 'u8[1024]{0}', space=vmem, size = 0x400, scoped, tag = 'input window, operand 11, single buffered']
    #allocation12 [shape = 's32[1]{0}', space=sflag, size = 0x4, scoped, tag = 'scoped memory for _lambda_.1']
    #allocation13 [shape = 'u8[1024]{0}', space=vmem, size = 0x400, scoped, tag = 'input window, operand 13, single buffered']
    %23 = vsyncpa [#allocation7], 0
    %24 = vsyncpa [#allocation9], 0
    %25 = vsyncpa [#allocation12], 0
    loop: start=0, step=1, limit=4
    $region2: #{_lambda_.1} parent=1 // loop_pre_header
      _
    $region3: #{_lambda_.1} parent=1 // loop_header
      %s27 = sphi 0, %s31
      %p28 = scmp.ge.s32.totalorder %s27, 4
      %s37 = sphi 0, %s39
      %s40 = sphi 0, %s37
      %s41 = sphi 0, %s40
      %s57 = sphi 0, %s41
      %s63 = sphi 0, %s65
      %s66 = sphi 0, %s63
      %s67 = sphi 0, %s66
      %s83 = sphi 0, %s67
      %s87 = sphi 0, %s87
      %s89 = sphi 0, %s87
      %s90 = sphi 0, %s89
      %s104 = sphi 0, %s90
      %s108 = sphi 0, %s108
      %s110 = sphi 0, %s108
      %s111 = sphi 0, %s110
      %s125 = sphi 0, %s111
      %s129 = sphi 0, %s129
      %s131 = sphi 0, %s129
      %s132 = sphi 0, %s131
      %s146 = sphi 0, %s132
      %s150 = sphi 0, %s150
      %s152 = sphi 0, %s150
      %s153 = sphi 0, %s152
      %s167 = sphi 0, %s153
      %s171 = sphi 0, %s171
      %s173 = sphi 0, %s171
      %s174 = sphi 0, %s173
      %s188 = sphi 0, %s174
      %s192 = sphi 0, %s192
      %s194 = sphi 0, %s192
      %s195 = sphi 0, %s194
      %s209 = sphi 0, %s195
      %s213 = sphi 0, %s213
      %s215 = sphi 0, %s213
      %s216 = sphi 0, %s215
      %s230 = sphi 0, %s216
      %s234 = sphi 0, %s234
      %s236 = sphi 0, %s234
      %s237 = sphi 0, %s236
      %s251 = sphi 0, %s237
      %s255 = sphi 0, %s255
      %s257 = sphi 0, %s255
      %s258 = sphi 0, %s257
      %s272 = sphi 0, %s258
      %s276 = sphi 0, %s276
      %s278 = sphi 0, %s276
      %s279 = sphi 0, %s278
      %s293 = sphi 0, %s279
      %s297 = sphi 0, %s297
      %s299 = sphi 0, %s297
      %s300 = sphi 0, %s299
      %s314 = sphi 0, %s300
      %s318 = sphi 0, %s318
      %s320 = sphi 0, %s318
      %s321 = sphi 0, %s320
      %s335 = sphi 0, %s321
      %s339 = sphi 0, %s339
      %s341 = sphi 0, %s339
      %s342 = sphi 0, %s341
      %s356 = sphi 0, %s342
      %s360 = sphi 0, %s360
      %s362 = sphi 0, %s360
      %s363 = sphi 0, %s362
      %s377 = sphi 0, %s363
      %s381 = sphi 0, %s381
      %s383 = sphi 0, %s381
      %s384 = sphi 0, %s383
      %s398 = sphi 0, %s384
      %s402 = sphi 0, %s402
      %s404 = sphi 0, %s402
      %s405 = sphi 0, %s404
      %s419 = sphi 0, %s405
      %s425 = sphi 0, %s427
      %s428 = sphi 0, %s425
      %s429 = sphi 0, %s428
      %s445 = sphi 0, %s429
    $region4: #{_lambda_.1} parent=1 // loop_header_branch
      %30 = sbr.rel (%p28) target = $region8
    $region5: #{_lambda_.1} parent=1 // loop_body
      %s32 = ssub.s32 %s27, 1
      %s33 = ssub.s32 %s27, 2
      %s34 = sadd.s32 %s27, 1
      %s35 = ssub.s32 %s27, %s34
      %p36 = scmp.eq.s32.totalorder %s35, 0
      %s38 = sadd.s32 %s37, 1
      %s39 = scalar_select %p36, %s37, %s38
      %p42 = pneg %p36
      %p43 = scmp.eq.s32.totalorder %s27, 1
      %p44 = por %p42, %p43
      %p45 = scmp.ne.s32.totalorder %s37, %s40
      %p46 = scmp.eq.s32.totalorder %s27, 0
      %p47 = por %p45, %p46
      %p48 = scmp.ne.s32.totalorder %s37, %s40
      %p49 = scmp.eq.s32.totalorder %s32, 1
      %p50 = por %p48, %p49
      %p51 = scmp.ne.s32.totalorder %s40, %s41
      %p52 = scmp.eq.s32.totalorder %s32, 0
      %p53 = por %p51, %p52
      %p54 = scmp.ne.s32.totalorder %s40, %s41
      %p55 = scmp.eq.s32.totalorder %s33, 1
      %p56 = por %p54, %p55
      %p58 = scmp.ne.s32.totalorder %s41, %s57
      %p59 = scmp.eq.s32.totalorder %s33, 0
      %p60 = por %p58, %p59
      %s61 = ssub.s32 %s27, %s34
      %p62 = scmp.eq.s32.totalorder %s61, 0
      %s64 = sadd.s32 %s63, 1
      %s65 = scalar_select %p62, %s63, %s64
      %p68 = pneg %p62
      %p69 = scmp.eq.s32.totalorder %s27, 1
      %p70 = por %p68, %p69
      %p71 = scmp.ne.s32.totalorder %s63, %s66
      %p72 = scmp.eq.s32.totalorder %s27, 0
      %p73 = por %p71, %p72
      %p74 = scmp.ne.s32.totalorder %s63, %s66
      %p75 = scmp.eq.s32.totalorder %s32, 1
      %p76 = por %p74, %p75
      %p77 = scmp.ne.s32.totalorder %s66, %s67
      %p78 = scmp.eq.s32.totalorder %s32, 0
      %p79 = por %p77, %p78
      %p80 = scmp.ne.s32.totalorder %s66, %s67
      %p81 = scmp.eq.s32.totalorder %s33, 1
      %p82 = por %p80, %p81
      %p84 = scmp.ne.s32.totalorder %s67, %s83
      %p85 = scmp.eq.s32.totalorder %s33, 0
      %p86 = por %p84, %p85
      %s88 = sadd.s32 %s87, 1
      %p91 = scmp.eq.s32.totalorder %s27, 1
      %p92 = scmp.ne.s32.totalorder %s87, %s89
      %p93 = scmp.eq.s32.totalorder %s27, 0
      %p94 = por %p92, %p93
      %p95 = scmp.ne.s32.totalorder %s87, %s89
      %p96 = scmp.eq.s32.totalorder %s32, 1
      %p97 = por %p95, %p96
      %p98 = scmp.ne.s32.totalorder %s89, %s90
      %p99 = scmp.eq.s32.totalorder %s32, 0
      %p100 = por %p98, %p99
      %p101 = scmp.ne.s32.totalorder %s89, %s90
      %p102 = scmp.eq.s32.totalorder %s33, 1
      %p103 = por %p101, %p102
      %p105 = scmp.ne.s32.totalorder %s90, %s104
      %p106 = scmp.eq.s32.totalorder %s33, 0
      %p107 = por %p105, %p106
      %s109 = sadd.s32 %s108, 1
      %p112 = scmp.eq.s32.totalorder %s27, 1
      %p113 = scmp.ne.s32.totalorder %s108, %s110
      %p114 = scmp.eq.s32.totalorder %s27, 0
      %p115 = por %p113, %p114
      %p116 = scmp.ne.s32.totalorder %s108, %s110
      %p117 = scmp.eq.s32.totalorder %s32, 1
      %p118 = por %p116, %p117
      %p119 = scmp.ne.s32.totalorder %s110, %s111
      %p120 = scmp.eq.s32.totalorder %s32, 0
      %p121 = por %p119, %p120
      %p122 = scmp.ne.s32.totalorder %s110, %s111
      %p123 = scmp.eq.s32.totalorder %s33, 1
      %p124 = por %p122, %p123
      %p126 = scmp.ne.s32.totalorder %s111, %s125
      %p127 = scmp.eq.s32.totalorder %s33, 0
      %p128 = por %p126, %p127
      %s130 = sadd.s32 %s129, 1
      %p133 = scmp.eq.s32.totalorder %s27, 1
      %p134 = scmp.ne.s32.totalorder %s129, %s131
      %p135 = scmp.eq.s32.totalorder %s27, 0
      %p136 = por %p134, %p135
      %p137 = scmp.ne.s32.totalorder %s129, %s131
      %p138 = scmp.eq.s32.totalorder %s32, 1
      %p139 = por %p137, %p138
      %p140 = scmp.ne.s32.totalorder %s131, %s132
      %p141 = scmp.eq.s32.totalorder %s32, 0
      %p142 = por %p140, %p141
      %p143 = scmp.ne.s32.totalorder %s131, %s132
      %p144 = scmp.eq.s32.totalorder %s33, 1
      %p145 = por %p143, %p144
      %p147 = scmp.ne.s32.totalorder %s132, %s146
      %p148 = scmp.eq.s32.totalorder %s33, 0
      %p149 = por %p147, %p148
      %s151 = sadd.s32 %s150, 1
      %p154 = scmp.eq.s32.totalorder %s27, 1
      %p155 = scmp.ne.s32.totalorder %s150, %s152
      %p156 = scmp.eq.s32.totalorder %s27, 0
      %p157 = por %p155, %p156
      %p158 = scmp.ne.s32.totalorder %s150, %s152
      %p159 = scmp.eq.s32.totalorder %s32, 1
      %p160 = por %p158, %p159
      %p161 = scmp.ne.s32.totalorder %s152, %s153
      %p162 = scmp.eq.s32.totalorder %s32, 0
      %p163 = por %p161, %p162
      %p164 = scmp.ne.s32.totalorder %s152, %s153
      %p165 = scmp.eq.s32.totalorder %s33, 1
      %p166 = por %p164, %p165
      %p168 = scmp.ne.s32.totalorder %s153, %s167
      %p169 = scmp.eq.s32.totalorder %s33, 0
      %p170 = por %p168, %p169
      %s172 = sadd.s32 %s171, 1
      %p175 = scmp.eq.s32.totalorder %s27, 1
      %p176 = scmp.ne.s32.totalorder %s171, %s173
      %p177 = scmp.eq.s32.totalorder %s27, 0
      %p178 = por %p176, %p177
      %p179 = scmp.ne.s32.totalorder %s171, %s173
      %p180 = scmp.eq.s32.totalorder %s32, 1
      %p181 = por %p179, %p180
      %p182 = scmp.ne.s32.totalorder %s173, %s174
      %p183 = scmp.eq.s32.totalorder %s32, 0
      %p184 = por %p182, %p183
      %p185 = scmp.ne.s32.totalorder %s173, %s174
      %p186 = scmp.eq.s32.totalorder %s33, 1
      %p187 = por %p185, %p186
      %p189 = scmp.ne.s32.totalorder %s174, %s188
      %p190 = scmp.eq.s32.totalorder %s33, 0
      %p191 = por %p189, %p190
      %s193 = sadd.s32 %s192, 1
      %p196 = scmp.eq.s32.totalorder %s27, 1
      %p197 = scmp.ne.s32.totalorder %s192, %s194
      %p198 = scmp.eq.s32.totalorder %s27, 0
      %p199 = por %p197, %p198
      %p200 = scmp.ne.s32.totalorder %s192, %s194
      %p201 = scmp.eq.s32.totalorder %s32, 1
      %p202 = por %p200, %p201
      %p203 = scmp.ne.s32.totalorder %s194, %s195
      %p204 = scmp.eq.s32.totalorder %s32, 0
      %p205 = por %p203, %p204
      %p206 = scmp.ne.s32.totalorder %s194, %s195
      %p207 = scmp.eq.s32.totalorder %s33, 1
      %p208 = por %p206, %p207
      %p210 = scmp.ne.s32.totalorder %s195, %s209
      %p211 = scmp.eq.s32.totalorder %s33, 0
      %p212 = por %p210, %p211
      %s214 = sadd.s32 %s213, 1
      %p217 = scmp.eq.s32.totalorder %s27, 1
      %p218 = scmp.ne.s32.totalorder %s213, %s215
      %p219 = scmp.eq.s32.totalorder %s27, 0
      %p220 = por %p218, %p219
      %p221 = scmp.ne.s32.totalorder %s213, %s215
      %p222 = scmp.eq.s32.totalorder %s32, 1
      %p223 = por %p221, %p222
      %p224 = scmp.ne.s32.totalorder %s215, %s216
      %p225 = scmp.eq.s32.totalorder %s32, 0
      %p226 = por %p224, %p225
      %p227 = scmp.ne.s32.totalorder %s215, %s216
      %p228 = scmp.eq.s32.totalorder %s33, 1
      %p229 = por %p227, %p228
      %p231 = scmp.ne.s32.totalorder %s216, %s230
      %p232 = scmp.eq.s32.totalorder %s33, 0
      %p233 = por %p231, %p232
      %s235 = sadd.s32 %s234, 1
      %p238 = scmp.eq.s32.totalorder %s27, 1
      %p239 = scmp.ne.s32.totalorder %s234, %s236
      %p240 = scmp.eq.s32.totalorder %s27, 0
      %p241 = por %p239, %p240
      %p242 = scmp.ne.s32.totalorder %s234, %s236
      %p243 = scmp.eq.s32.totalorder %s32, 1
      %p244 = por %p242, %p243
      %p245 = scmp.ne.s32.totalorder %s236, %s237
      %p246 = scmp.eq.s32.totalorder %s32, 0
      %p247 = por %p245, %p246
      %p248 = scmp.ne.s32.totalorder %s236, %s237
      %p249 = scmp.eq.s32.totalorder %s33, 1
      %p250 = por %p248, %p249
      %p252 = scmp.ne.s32.totalorder %s237, %s251
      %p253 = scmp.eq.s32.totalorder %s33, 0
      %p254 = por %p252, %p253
      %s256 = sadd.s32 %s255, 1
      %p259 = scmp.eq.s32.totalorder %s27, 1
      %p260 = scmp.ne.s32.totalorder %s255, %s257
      %p261 = scmp.eq.s32.totalorder %s27, 0
      %p262 = por %p260, %p261
      %p263 = scmp.ne.s32.totalorder %s255, %s257
      %p264 = scmp.eq.s32.totalorder %s32, 1
      %p265 = por %p263, %p264
      %p266 = scmp.ne.s32.totalorder %s257, %s258
      %p267 = scmp.eq.s32.totalorder %s32, 0
      %p268 = por %p266, %p267
      %p269 = scmp.ne.s32.totalorder %s257, %s258
      %p270 = scmp.eq.s32.totalorder %s33, 1
      %p271 = por %p269, %p270
      %p273 = scmp.ne.s32.totalorder %s258, %s272
      %p274 = scmp.eq.s32.totalorder %s33, 0
      %p275 = por %p273, %p274
      %s277 = sadd.s32 %s276, 1
      %p280 = scmp.eq.s32.totalorder %s27, 1
      %p281 = scmp.ne.s32.totalorder %s276, %s278
      %p282 = scmp.eq.s32.totalorder %s27, 0
      %p283 = por %p281, %p282
      %p284 = scmp.ne.s32.totalorder %s276, %s278
      %p285 = scmp.eq.s32.totalorder %s32, 1
      %p286 = por %p284, %p285
      %p287 = scmp.ne.s32.totalorder %s278, %s279
      %p288 = scmp.eq.s32.totalorder %s32, 0
      %p289 = por %p287, %p288
      %p290 = scmp.ne.s32.totalorder %s278, %s279
      %p291 = scmp.eq.s32.totalorder %s33, 1
      %p292 = por %p290, %p291
      %p294 = scmp.ne.s32.totalorder %s279, %s293
      %p295 = scmp.eq.s32.totalorder %s33, 0
      %p296 = por %p294, %p295
      %s298 = sadd.s32 %s297, 1
      %p301 = scmp.eq.s32.totalorder %s27, 1
      %p302 = scmp.ne.s32.totalorder %s297, %s299
      %p303 = scmp.eq.s32.totalorder %s27, 0
      %p304 = por %p302, %p303
      %p305 = scmp.ne.s32.totalorder %s297, %s299
      %p306 = scmp.eq.s32.totalorder %s32, 1
      %p307 = por %p305, %p306
      %p308 = scmp.ne.s32.totalorder %s299, %s300
      %p309 = scmp.eq.s32.totalorder %s32, 0
      %p310 = por %p308, %p309
      %p311 = scmp.ne.s32.totalorder %s299, %s300
      %p312 = scmp.eq.s32.totalorder %s33, 1
      %p313 = por %p311, %p312
      %p315 = scmp.ne.s32.totalorder %s300, %s314
      %p316 = scmp.eq.s32.totalorder %s33, 0
      %p317 = por %p315, %p316
      %s319 = sadd.s32 %s318, 1
      %p322 = scmp.eq.s32.totalorder %s27, 1
      %p323 = scmp.ne.s32.totalorder %s318, %s320
      %p324 = scmp.eq.s32.totalorder %s27, 0
      %p325 = por %p323, %p324
      %p326 = scmp.ne.s32.totalorder %s318, %s320
      %p327 = scmp.eq.s32.totalorder %s32, 1
      %p328 = por %p326, %p327
      %p329 = scmp.ne.s32.totalorder %s320, %s321
      %p330 = scmp.eq.s32.totalorder %s32, 0
      %p331 = por %p329, %p330
      %p332 = scmp.ne.s32.totalorder %s320, %s321
      %p333 = scmp.eq.s32.totalorder %s33, 1
      %p334 = por %p332, %p333
      %p336 = scmp.ne.s32.totalorder %s321, %s335
      %p337 = scmp.eq.s32.totalorder %s33, 0
      %p338 = por %p336, %p337
      %s340 = sadd.s32 %s339, 1
      %p343 = scmp.eq.s32.totalorder %s27, 1
      %p344 = scmp.ne.s32.totalorder %s339, %s341
      %p345 = scmp.eq.s32.totalorder %s27, 0
      %p346 = por %p344, %p345
      %p347 = scmp.ne.s32.totalorder %s339, %s341
      %p348 = scmp.eq.s32.totalorder %s32, 1
      %p349 = por %p347, %p348
      %p350 = scmp.ne.s32.totalorder %s341, %s342
      %p351 = scmp.eq.s32.totalorder %s32, 0
      %p352 = por %p350, %p351
      %p353 = scmp.ne.s32.totalorder %s341, %s342
      %p354 = scmp.eq.s32.totalorder %s33, 1
      %p355 = por %p353, %p354
      %p357 = scmp.ne.s32.totalorder %s342, %s356
      %p358 = scmp.eq.s32.totalorder %s33, 0
      %p359 = por %p357, %p358
      %s361 = sadd.s32 %s360, 1
      %p364 = scmp.eq.s32.totalorder %s27, 1
      %p365 = scmp.ne.s32.totalorder %s360, %s362
      %p366 = scmp.eq.s32.totalorder %s27, 0
      %p367 = por %p365, %p366
      %p368 = scmp.ne.s32.totalorder %s360, %s362
      %p369 = scmp.eq.s32.totalorder %s32, 1
      %p370 = por %p368, %p369
      %p371 = scmp.ne.s32.totalorder %s362, %s363
      %p372 = scmp.eq.s32.totalorder %s32, 0
      %p373 = por %p371, %p372
      %p374 = scmp.ne.s32.totalorder %s362, %s363
      %p375 = scmp.eq.s32.totalorder %s33, 1
      %p376 = por %p374, %p375
      %p378 = scmp.ne.s32.totalorder %s363, %s377
      %p379 = scmp.eq.s32.totalorder %s33, 0
      %p380 = por %p378, %p379
      %s382 = sadd.s32 %s381, 1
      %p385 = scmp.eq.s32.totalorder %s27, 1
      %p386 = scmp.ne.s32.totalorder %s381, %s383
      %p387 = scmp.eq.s32.totalorder %s27, 0
      %p388 = por %p386, %p387
      %p389 = scmp.ne.s32.totalorder %s381, %s383
      %p390 = scmp.eq.s32.totalorder %s32, 1
      %p391 = por %p389, %p390
      %p392 = scmp.ne.s32.totalorder %s383, %s384
      %p393 = scmp.eq.s32.totalorder %s32, 0
      %p394 = por %p392, %p393
      %p395 = scmp.ne.s32.totalorder %s383, %s384
      %p396 = scmp.eq.s32.totalorder %s33, 1
      %p397 = por %p395, %p396
      %p399 = scmp.ne.s32.totalorder %s384, %s398
      %p400 = scmp.eq.s32.totalorder %s33, 0
      %p401 = por %p399, %p400
      %s403 = sadd.s32 %s402, 1
      %p406 = scmp.eq.s32.totalorder %s27, 1
      %p407 = scmp.ne.s32.totalorder %s402, %s404
      %p408 = scmp.eq.s32.totalorder %s27, 0
      %p409 = por %p407, %p408
      %p410 = scmp.ne.s32.totalorder %s402, %s404
      %p411 = scmp.eq.s32.totalorder %s32, 1
      %p412 = por %p410, %p411
      %p413 = scmp.ne.s32.totalorder %s404, %s405
      %p414 = scmp.eq.s32.totalorder %s32, 0
      %p415 = por %p413, %p414
      %p416 = scmp.ne.s32.totalorder %s404, %s405
      %p417 = scmp.eq.s32.totalorder %s33, 1
      %p418 = por %p416, %p417
      %p420 = scmp.ne.s32.totalorder %s405, %s419
      %p421 = scmp.eq.s32.totalorder %s33, 0
      %p422 = por %p420, %p421
      %s423 = ssub.s32 %s27, %s34
      %p424 = scmp.eq.s32.totalorder %s423, 0
      %s426 = sadd.s32 %s425, 1
      %s427 = scalar_select %p424, %s425, %s426
      %p430 = pneg %p424
      %p431 = scmp.eq.s32.totalorder %s27, 1
      %p432 = por %p430, %p431
      %p433 = scmp.ne.s32.totalorder %s425, %s428
      %p434 = scmp.eq.s32.totalorder %s27, 0
      %p435 = por %p433, %p434
      %p436 = scmp.ne.s32.totalorder %s425, %s428
      %p437 = scmp.eq.s32.totalorder %s32, 1
      %p438 = por %p436, %p437
      %p439 = scmp.ne.s32.totalorder %s428, %s429
      %p440 = scmp.eq.s32.totalorder %s32, 0
      %p441 = por %p439, %p440
      %p442 = scmp.ne.s32.totalorder %s428, %s429
      %p443 = scmp.eq.s32.totalorder %s33, 1
      %p444 = por %p442, %p443
      %p446 = scmp.ne.s32.totalorder %s429, %s445
      %p447 = scmp.eq.s32.totalorder %s33, 0
      %p448 = por %p446, %p447
      %p449 = scmp.le.s32.totalorder 1, %s27
      %p450 = scmp.lt.s32.totalorder %s27, 3
      %p451 = pnand %p449, %p450
      %p452 = pneg %p451
      // Predicated region
      $region9: #{_lambda_.1} parent=5 // pred_check
        _
      $region10: #{_lambda_.1} parent=5 // pred_check_branch
        %454 = sbr.rel (%p451) target = $region12
      $region11: #{_lambda_.1} parent=5 // pred_region
        %s455 = ssub.s32 %s27, 1
        // Predicated region
        $region13: #{_lambda_.1} parent=11 // pred_check
          %p456 = pneg %p100
        $region14: #{_lambda_.1} parent=11 // pred_check_branch
          %458 = sbr.rel (%p456) target = $region16
        $region15: #{_lambda_.1} parent=11 // pred_region
          _
        $region16: #{_lambda_.1} parent=11 // pred_fallthru
          _
        // Predicated region
        $region17: #{_lambda_.1} parent=11 // pred_check
          %p459 = pneg %p121
        $region18: #{_lambda_.1} parent=11 // pred_check_branch
          %461 = sbr.rel (%p459) target = $region20
        $region19: #{_lambda_.1} parent=11 // pred_region
          _
        $region20: #{_lambda_.1} parent=11 // pred_fallthru
          _
        // Predicated region
        $region21: #{_lambda_.1} parent=11 // pred_check
          %p462 = pneg %p142
        $region22: #{_lambda_.1} parent=11 // pred_check_branch
          %464 = sbr.rel (%p462) target = $region24
        $region23: #{_lambda_.1} parent=11 // pred_region
          _
        $region24: #{_lambda_.1} parent=11 // pred_fallthru
          _
        // Predicated region
        $region25: #{_lambda_.1} parent=11 // pred_check
          %p465 = pneg %p163
        $region26: #{_lambda_.1} parent=11 // pred_check_branch
          %467 = sbr.rel (%p465) target = $region28
        $region27: #{_lambda_.1} parent=11 // pred_region
          %s469 = ssub.s32 32, 32
          %470 = vsyncadd [#allocation7], %s469
          %s471 = sshll.u32 [#allocation6], 4
          %s472 = int_to_ptr.vmem [resolvable:$true] %s471
          %477 = dma.hbm_to_vmem [thread:$0]  %s5, 32, %s472, [#allocation7], 16, 16, 1
        $region28: #{_lambda_.1} parent=11 // pred_fallthru
          _
        // Predicated region
        $region29: #{_lambda_.1} parent=11 // pred_check
          %p478 = pneg %p184
        $region30: #{_lambda_.1} parent=11 // pred_check_branch
          %480 = sbr.rel (%p478) target = $region32
        $region31: #{_lambda_.1} parent=11 // pred_region
          _
        $region32: #{_lambda_.1} parent=11 // pred_fallthru
          _
        // Predicated region
        $region33: #{_lambda_.1} parent=11 // pred_check
          %p481 = pneg %p205
        $region34: #{_lambda_.1} parent=11 // pred_check_branch
          %483 = sbr.rel (%p481) target = $region36
        $region35: #{_lambda_.1} parent=11 // pred_region
          %s485 = ssub.s32 32, 32
          %486 = vsyncadd [#allocation9], %s485
          %s487 = sshll.u32 [#allocation8], 4
          %s488 = int_to_ptr.vmem [resolvable:$true] %s487
          %493 = dma.hbm_to_vmem [thread:$0]  %s7, 32, %s488, [#allocation9], 16, 16, 1
        $region36: #{_lambda_.1} parent=11 // pred_fallthru
          _
        // Predicated region
        $region37: #{_lambda_.1} parent=11 // pred_check
          %p494 = pneg %p226
        $region38: #{_lambda_.1} parent=11 // pred_check_branch
          %496 = sbr.rel (%p494) target = $region40
        $region39: #{_lambda_.1} parent=11 // pred_region
          _
        $region40: #{_lambda_.1} parent=11 // pred_fallthru
          _
        // Predicated region
        $region41: #{_lambda_.1} parent=11 // pred_check
          %p497 = pneg %p247
        $region42: #{_lambda_.1} parent=11 // pred_check_branch
          %499 = sbr.rel (%p497) target = $region44
        $region43: #{_lambda_.1} parent=11 // pred_region
          _
        $region44: #{_lambda_.1} parent=11 // pred_fallthru
          _
        // Predicated region
        $region45: #{_lambda_.1} parent=11 // pred_check
          %p500 = pneg %p268
        $region46: #{_lambda_.1} parent=11 // pred_check_branch
          %502 = sbr.rel (%p500) target = $region48
        $region47: #{_lambda_.1} parent=11 // pred_region
          %s504 = ssub.s32 512, 512
          %505 = vsyncadd [#allocation9], %s504
          %s506 = sshll.u32 [#allocation10], 4
          %s507 = int_to_ptr.vmem [resolvable:$true] %s506
          %512 = dma.hbm_to_vmem [thread:$0]  %s10, 512, %s507, [#allocation9], 64, 64, 4
        $region48: #{_lambda_.1} parent=11 // pred_fallthru
          _
        // Predicated region
        $region49: #{_lambda_.1} parent=11 // pred_check
          %p513 = pneg %p289
        $region50: #{_lambda_.1} parent=11 // pred_check_branch
          %515 = sbr.rel (%p513) target = $region52
        $region51: #{_lambda_.1} parent=11 // pred_region
          %s517 = ssub.s32 32, 32
          %518 = vsyncadd [#allocation12], %s517
          %s519 = sshll.u32 [#allocation11], 4
          %s520 = int_to_ptr.vmem [resolvable:$true] %s519
          %525 = dma.hbm_to_vmem [thread:$0]  %s11, 32, %s520, [#allocation12], 16, 16, 1
        $region52: #{_lambda_.1} parent=11 // pred_fallthru
          _
        // Predicated region
        $region53: #{_lambda_.1} parent=11 // pred_check
          %p526 = pneg %p310
        $region54: #{_lambda_.1} parent=11 // pred_check_branch
          %528 = sbr.rel (%p526) target = $region56
        $region55: #{_lambda_.1} parent=11 // pred_region
          _
        $region56: #{_lambda_.1} parent=11 // pred_fallthru
          _
        // Predicated region
        $region57: #{_lambda_.1} parent=11 // pred_check
          %p529 = pneg %p331
        $region58: #{_lambda_.1} parent=11 // pred_check_branch
          %531 = sbr.rel (%p529) target = $region60
        $region59: #{_lambda_.1} parent=11 // pred_region
          %s533 = ssub.s32 32, 32
          %534 = vsyncadd [#allocation12], %s533
          %s535 = sshll.u32 [#allocation13], 4
          %s536 = int_to_ptr.vmem [resolvable:$true] %s535
          %541 = dma.hbm_to_vmem [thread:$0]  %s13, 32, %s536, [#allocation12], 16, 16, 1
        $region60: #{_lambda_.1} parent=11 // pred_fallthru
          _
        // Predicated region
        $region61: #{_lambda_.1} parent=11 // pred_check
          %p542 = pneg %p352
        $region62: #{_lambda_.1} parent=11 // pred_check_branch
          %544 = sbr.rel (%p542) target = $region64
        $region63: #{_lambda_.1} parent=11 // pred_region
          _
        $region64: #{_lambda_.1} parent=11 // pred_fallthru
          _
        // Predicated region
        $region65: #{_lambda_.1} parent=11 // pred_check
          %p545 = pneg %p373
        $region66: #{_lambda_.1} parent=11 // pred_check_branch
          %547 = sbr.rel (%p545) target = $region68
        $region67: #{_lambda_.1} parent=11 // pred_region
          _
        $region68: #{_lambda_.1} parent=11 // pred_fallthru
          _
        // Predicated region
        $region69: #{_lambda_.1} parent=11 // pred_check
          %p548 = pneg %p394
        $region70: #{_lambda_.1} parent=11 // pred_check_branch
          %550 = sbr.rel (%p548) target = $region72
        $region71: #{_lambda_.1} parent=11 // pred_region
          _
        $region72: #{_lambda_.1} parent=11 // pred_fallthru
          _
        // Predicated region
        $region73: #{_lambda_.1} parent=11 // pred_check
          %p551 = pneg %p415
        $region74: #{_lambda_.1} parent=11 // pred_check_branch
          %553 = sbr.rel (%p551) target = $region76
        $region75: #{_lambda_.1} parent=11 // pred_region
          _
        $region76: #{_lambda_.1} parent=11 // pred_fallthru
          _
      $region12: #{_lambda_.1} parent=5 // pred_fallthru
        _
      %p554 = scmp.lt.s32.totalorder %s27, 2
      // Predicated region
      $region77: #{_lambda_.1} parent=5 // pred_check
        %p555 = pneg %p554
      $region78: #{_lambda_.1} parent=5 // pred_check_branch
        %557 = sbr.rel (%p555) target = $region80
      $region79: #{_lambda_.1} parent=5 // pred_region
        // Predicated region
        $region81: #{_lambda_.1} parent=79 // pred_check
          %p558 = pneg %p47
        $region82: #{_lambda_.1} parent=79 // pred_check_branch
          %560 = sbr.rel (%p558) target = $region84
        $region83: #{_lambda_.1} parent=79 // pred_region
          %p561 = scmp.lt.s32.totalorder %s27, 1
          %s562 = scalar_select %p561, %s27, 1
          %s563 = smul.addr %s562, 8
          %s564 = scalar_lea.vmem %s0, %s563
        $region84: #{_lambda_.1} parent=79 // pred_fallthru
          _
        // Predicated region
        $region85: #{_lambda_.1} parent=79 // pred_check
          %p565 = pneg %p73
        $region86: #{_lambda_.1} parent=79 // pred_check_branch
          %567 = sbr.rel (%p565) target = $region88
        $region87: #{_lambda_.1} parent=79 // pred_region
          %p568 = scmp.lt.s32.totalorder %s27, 1
          %s569 = scalar_select %p568, %s27, 1
          %s570 = scalar_lea.vmem %s1, %s569
        $region88: #{_lambda_.1} parent=79 // pred_fallthru
          _
      $region80: #{_lambda_.1} parent=5 // pred_fallthru
        _
      %p571 = scmp.le.s32.totalorder 1, %s27
      %p572 = scmp.lt.s32.totalorder %s27, 3
      %p573 = pnand %p571, %p572
      %p574 = pneg %p573
      // Predicated region
      $region89: #{_lambda_.1} parent=5 // pred_check
        _
      $region90: #{_lambda_.1} parent=5 // pred_check_branch
        %576 = sbr.rel (%p573) target = $region92
      $region91: #{_lambda_.1} parent=5 // pred_region
        %s577 = ssub.s32 %s27, 1
        // Predicated region
        $region93: #{_lambda_.1} parent=91 // pred_check
          %p578 = pneg %p163
        $region94: #{_lambda_.1} parent=91 // pred_check_branch
          %580 = sbr.rel (%p578) target = $region96
        $region95: #{_lambda_.1} parent=91 // pred_region
          %581 = dma.done [#allocation7], 32
        $region96: #{_lambda_.1} parent=91 // pred_fallthru
          _
        // Predicated region
        $region97: #{_lambda_.1} parent=91 // pred_check
          %p582 = pneg %p205
        $region98: #{_lambda_.1} parent=91 // pred_check_branch
          %584 = sbr.rel (%p582) target = $region100
        $region99: #{_lambda_.1} parent=91 // pred_region
          %585 = dma.done [#allocation9], 32
        $region100: #{_lambda_.1} parent=91 // pred_fallthru
          _
        // Predicated region
        $region101: #{_lambda_.1} parent=91 // pred_check
          %p586 = pneg %p268
        $region102: #{_lambda_.1} parent=91 // pred_check_branch
          %588 = sbr.rel (%p586) target = $region104
        $region103: #{_lambda_.1} parent=91 // pred_region
          %589 = dma.done [#allocation9], 512
        $region104: #{_lambda_.1} parent=91 // pred_fallthru
          _
        // Predicated region
        $region105: #{_lambda_.1} parent=91 // pred_check
          %p590 = pneg %p289
        $region106: #{_lambda_.1} parent=91 // pred_check_branch
          %592 = sbr.rel (%p590) target = $region108
        $region107: #{_lambda_.1} parent=91 // pred_region
          %593 = dma.done [#allocation12], 32
        $region108: #{_lambda_.1} parent=91 // pred_fallthru
          _
        // Predicated region
        $region109: #{_lambda_.1} parent=91 // pred_check
          %p594 = pneg %p331
        $region110: #{_lambda_.1} parent=91 // pred_check_branch
          %596 = sbr.rel (%p594) target = $region112
        $region111: #{_lambda_.1} parent=91 // pred_region
          %597 = dma.done [#allocation12], 32
        $region112: #{_lambda_.1} parent=91 // pred_fallthru
          _
        %p598 = scmp.lt.s32.totalorder %s32, 1
        %s599 = scalar_select %p598, %s32, 1
        %s600 = smul.addr %s599, 8
        %s601 = scalar_lea.vmem %s0, %s600
        %p602 = pneg %p53
        %p603 = pneg %p50
        %p604 = scmp.lt.s32.totalorder %s32, 1
        %s605 = scalar_select %p604, %s32, 1
        %s606 = scalar_lea.vmem %s1, %s605
        %p607 = pneg %p79
        %p608 = pneg %p76
        %p609 = pneg %p100
        %p610 = pneg %p97
        %p611 = pneg %p121
        %p612 = pneg %p118
        %p613 = pneg %p142
        %p614 = pneg %p139
        %p615 = pneg %p163
        %p616 = pneg %p160
        %p617 = pneg %p184
        %p618 = pneg %p181
        %p619 = pneg %p205
        %p620 = pneg %p202
        %p621 = pneg %p226
        %p622 = pneg %p223
        %p623 = pneg %p247
        %p624 = pneg %p244
        %p625 = pneg %p268
        %p626 = pneg %p265
        %p627 = pneg %p289
        %p628 = pneg %p286
        %p629 = pneg %p310
        %p630 = pneg %p307
        %p631 = pneg %p331
        %p632 = pneg %p328
        %p633 = pneg %p352
        %p634 = pneg %p349
        %p635 = pneg %p373
        %p636 = pneg %p370
        %p637 = pneg %p394
        %p638 = pneg %p391
        %p639 = pneg %p415
        %p640 = pneg %p412
        %p641 = pneg %p441
        %p642 = pneg %p438
        %p643 = scmp.lt.s32.totalorder %s32, 1
        %s644 = scalar_select %p643, %s32, 1
        %s645 = smul.addr %s644, 8
        %s646 = scalar_lea.vmem %s18, %s645
        %p647 = scmp.lt.s32.totalorder %s32, 1
        %s648 = scalar_select %p647, %s32, 1
        %s649 = smul.addr %s648, 8
        %s650 = scalar_lea.vmem %s0, %s649
        %p651 = scmp.lt.s32.totalorder %s32, 1
        %s652 = scalar_select %p651, %s32, 1
        %s653 = scalar_lea.vmem %s1, %s652
        %p654 = scmp.lt.s32.totalorder %s32, 1
        %s655 = scalar_select %p654, %s32, 1
        %s656 = smul.addr %s655, 8
        %s657 = scalar_lea.vmem %s18, %s656
        %v659 = vld [vmem:[%s650] sm:$0xff]
        %v660 = vld [vmem:[%s653] sm:$0x1]
        %v662 = vlaneseq
        %v663 = vshrl.u32 %v662, 7
        %v664 = vsub.s32 0, %v663
        %v665 = vrot.slane %v660, %v664
        %v667 = vld [vmem:[%s2] sm:$0x1]
        %v668 = vld [vmem:[%s3] sm:$0x1]
        %vm669 = vcmask 261120
        %v670 = vsel %vm669, %v659, 0.0
        %671 = vadd.xlane.f32.xlu0 %v670
        %v672 = vpop.xlane.xlu0 %671
        %v673 = vrcp.pop 32.0
        %v674 = vmul.f32 %v672, %v673
        %v675 = vsub.f32 %v659, %v674
        %v676 = vmul.f32 %v675, %v675
        %v677 = vsel %vm669, %v676, 0.0
        %678 = vadd.xlane.f32.xlu0 %v677
        %v679 = vpop.xlane.xlu0 %678
        %v680 = vmul.f32 %v679, %v673
        %v681 = vadd.f32 %v680, 1e-05
        %v682 = vrsqrt.pop %v681
        %v683 = vmul.f32 %v675, %v682
        %v685 = vlaneseq
        %v686 = vshrl.u32 %v685, 7
        %v687 = vsub.s32 0, %v686
        %v688 = vrot.slane %v667, %v687
        %v690 = vmul.f32 %v683, %v688
        %v692 = vlaneseq
        %v693 = vshrl.u32 %v692, 7
        %v694 = vsub.s32 0, %v693
        %v695 = vrot.slane %v668, %v694
        %v697 = vadd.f32 %v690, %v695
        %v698 = vpack.c.bf16 %v697, %v697
        %v699 = vld [vmem:[%s4] sm:$0xf]
        %v700 = vld [vmem:[%s4 + $0x4] sm:$0xf]
        %v701 = vld [vmem:[%s4 + $0x8] sm:$0xf]
        %v702 = vld [vmem:[%s4 + $0xc] sm:$0xf]
        %v703 = vld [vmem:[#allocation6] sm:$0x1]
        %v705 = vlaneseq
        %v706 = vshrl.u32 %v705, 7
        %v707 = vsub.s32 0, %v706
        %v708 = vrot.slane %v703, %v707
        %v714 = vunpack.c.l.b16 %v699
        %v715 = vunpack.c.l.b16 %v700
        %v716 = vunpack.c.l.b16 %v701
        %v717 = vunpack.c.l.b16 %v702
        %v718 = vpack.c.b16 %v715, %v714
        %v719 = vpack.c.b16 %v717, %v716
        %v723 = vsel %vm669, %v698, 0
        %725 = vmatprep.subr.bf16.mxu0 0
        %726 = vmatpush1.bf16.msra.mxu0 %v718
        %727 = vmatprep.subr.bf16.mxu0 0
        %728 = vmatpush1.bf16.msra.mxu0 %v719
        %729 = vmatprep.subr.bf16.mxu0 0
        %730 = vmatpush1.bf16.msra.mxu0 0
        %731 = vmatprep.subr.bf16.mxu0 0
        %732 = vmatpush1.bf16.msra.mxu0 0
        %733 = vmatprep.subr.bf16.mxu0 0
        %734 = vmatpush1.bf16.msra.mxu0 0
        %735 = vmatprep.subr.bf16.mxu0 0
        %736 = vmatpush1.bf16.msra.mxu0 0
        %737 = vmatprep.subr.bf16.mxu0 0
        %738 = vmatpush1.bf16.msra.mxu0 0
        %739 = vmatprep.subr.bf16.mxu0 0
        %740 = vmatpush1.bf16.msra.mxu0 0
        %741 = vmatprep.subr.bf16.mxu0 0
        %742 = vmatpush1.bf16.msra.mxu0 0
        %743 = vmatprep.subr.bf16.mxu0 0
        %744 = vmatpush1.bf16.msra.mxu0 0
        %745 = vmatprep.subr.bf16.mxu0 0
        %746 = vmatpush1.bf16.msra.mxu0 0
        %747 = vmatprep.subr.bf16.mxu0 0
        %748 = vmatpush1.bf16.msra.mxu0 0
        %749 = vmatprep.subr.bf16.mxu0 0
        %750 = vmatpush1.bf16.msra.mxu0 0
        %751 = vmatprep.subr.bf16.mxu0 0
        %752 = vmatpush1.bf16.msra.mxu0 0
        %753 = vmatprep.subr.bf16.mxu0 0
        %754 = vmatpush1.bf16.msra.mxu0 0
        %755 = vmatprep.subr.bf16.mxu0 0
        %756 = vmatpush1.bf16.msra.mxu0 0
        %757 = vmatprep.mubr.bf16.mxu0 0
        %758 = vmatmul.mubr.bf16.gmra.mrb[0].mxu0 %v723
        %v759 = vpop.f32.mrb[0].mxu0
        %v760 = vadd.f32 %v708, %v759
        %v761 = vpop.f32.mrb[0].mxu0
        %v762 = vpop.f32.mrb[0].mxu0
        %v763 = vpop.f32.mrb[0].mxu0
        %764 = vdwg.mxu0
        %vm765 = vcmask 64512
        %766 = vst.msk [vmem:[#allocation2] sm:$0xff] %vm765, %v760
        %768 = vrot.lane.b32.xlu0 %v760, 96
        %v769 = vpop.permute.xlu0 %768
        %771 = vst.msk [vmem:[#allocation3] sm:$0xff] %vm765, %v769
        %772 = vrot.lane.b32.xlu0 %v760, 64
        %v773 = vpop.permute.xlu0 %772
        %775 = vst.msk [vmem:[#allocation4] sm:$0xff] %vm765, %v773
        %776 = vrot.lane.b32.xlu0 %v760, 120
        %v777 = vpop.permute.xlu0 %776
        %s779 = scalar_lea.vmem [#allocation2], 8
        %780 = vst.msk [vmem:[%s779] sm:$0xff] %vm765, %v777
        %781 = vrot.lane.b32.xlu0 %v760, 88
        %v782 = vpop.permute.xlu0 %781
        %s784 = scalar_lea.vmem [#allocation3], 8
        %785 = vst.msk [vmem:[%s784] sm:$0xff] %vm765, %v782
        %786 = vrot.lane.b32.xlu0 %v760, 56
        %v787 = vpop.permute.xlu0 %786
        %s789 = scalar_lea.vmem [#allocation4], 8
        %790 = vst.msk [vmem:[%s789] sm:$0xff] %vm765, %v787
        %791 = vrot.lane.b32.xlu0 %v760, 112
        %v792 = vpop.permute.xlu0 %791
        %s794 = scalar_lea.vmem [#allocation2], 16
        %795 = vst.msk [vmem:[%s794] sm:$0xff] %vm765, %v792
        %796 = vrot.lane.b32.xlu0 %v760, 80
        %v797 = vpop.permute.xlu0 %796
        %s799 = scalar_lea.vmem [#allocation3], 16
        %800 = vst.msk [vmem:[%s799] sm:$0xff] %vm765, %v797
        %801 = vrot.lane.b32.xlu0 %v760, 48
        %v802 = vpop.permute.xlu0 %801
        %s804 = scalar_lea.vmem [#allocation4], 16
        %805 = vst.msk [vmem:[%s804] sm:$0xff] %vm765, %v802
        %806 = vrot.lane.b32.xlu0 %v760, 104
        %v807 = vpop.permute.xlu0 %806
        %s809 = scalar_lea.vmem [#allocation2], 24
        %810 = vst.msk [vmem:[%s809] sm:$0xff] %vm765, %v807
        %811 = vrot.lane.b32.xlu0 %v760, 72
        %v812 = vpop.permute.xlu0 %811
        %s814 = scalar_lea.vmem [#allocation3], 24
        %815 = vst.msk [vmem:[%s814] sm:$0xff] %vm765, %v812
        %816 = vrot.lane.b32.xlu0 %v760, 40
        %v817 = vpop.permute.xlu0 %816
        %s819 = scalar_lea.vmem [#allocation4], 24
        %820 = vst.msk [vmem:[%s819] sm:$0xff] %vm765, %v817
        %v821 = vld [vmem:[#allocation2] sm:$0xff]
        %v822 = vld [vmem:[#allocation2 + $0x8] sm:$0xff]
        %v823 = vld [vmem:[#allocation2 + $0x10] sm:$0xff]
        %v824 = vld [vmem:[#allocation2 + $0x18] sm:$0xff]
        %v825 = vpack.c.bf16 %v821, %v821
        %v826 = vpack.c.bf16 %v822, %v822
        %v827 = vpack.c.bf16 %v823, %v823
        %v828 = vpack.c.bf16 %v824, %v824
        %v829 = vld [vmem:[#allocation3] sm:$0xff]
        %v830 = vld [vmem:[#allocation3 + $0x8] sm:$0xff]
        %v831 = vld [vmem:[#allocation3 + $0x10] sm:$0xff]
        %v832 = vld [vmem:[#allocation3 + $0x18] sm:$0xff]
        %v833 = vpack.c.bf16 %v829, %v829
        %v834 = vpack.c.bf16 %v830, %v830
        %v835 = vpack.c.bf16 %v831, %v831
        %v836 = vpack.c.bf16 %v832, %v832
        %v837 = vld [vmem:[#allocation4] sm:$0xff]
        %v838 = vld [vmem:[#allocation4 + $0x8] sm:$0xff]
        %v839 = vld [vmem:[#allocation4 + $0x10] sm:$0xff]
        %v840 = vld [vmem:[#allocation4 + $0x18] sm:$0xff]
        %v841 = vpack.c.bf16 %v837, %v837
        %v842 = vpack.c.bf16 %v838, %v838
        %v843 = vpack.c.bf16 %v839, %v839
        %v844 = vpack.c.bf16 %v840, %v840
        %v846 = vsel %vm765, %v825, 0
        %v849 = vsel %vm765, %v833, 0
        %851 = vmatprep.subr.bf16.mxu0 0
        %852 = vmatpush1.bf16.xpose.msra.mxu0 %v849
        %853 = vmatprep.subr.bf16.mxu0 0
        %854 = vmatpush1.bf16.xpose.msra.mxu0 0
        %855 = vmatprep.subr.bf16.mxu0 0
        %856 = vmatpush1.bf16.xpose.msra.mxu0 0
        %857 = vmatprep.subr.bf16.mxu0 0
        %858 = vmatpush1.bf16.xpose.msra.mxu0 0
        %859 = vmatprep.subr.bf16.mxu0 0
        %860 = vmatpush1.bf16.xpose.msra.mxu0 0
        %861 = vmatprep.subr.bf16.mxu0 0
        %862 = vmatpush1.bf16.xpose.msra.mxu0 0
        %863 = vmatprep.subr.bf16.mxu0 0
        %864 = vmatpush1.bf16.xpose.msra.mxu0 0
        %865 = vmatprep.subr.bf16.mxu0 0
        %866 = vmatpush1.bf16.xpose.msra.mxu0 0
        %867 = vmatprep.subr.bf16.mxu0 0
        %868 = vmatpush1.bf16.xpose.msra.mxu0 0
        %869 = vmatprep.subr.bf16.mxu0 0
        %870 = vmatpush1.bf16.xpose.msra.mxu0 0
        %871 = vmatprep.subr.bf16.mxu0 0
        %872 = vmatpush1.bf16.xpose.msra.mxu0 0
        %873 = vmatprep.subr.bf16.mxu0 0
        %874 = vmatpush1.bf16.xpose.msra.mxu0 0
        %875 = vmatprep.subr.bf16.mxu0 0
        %876 = vmatpush1.bf16.xpose.msra.mxu0 0
        %877 = vmatprep.subr.bf16.mxu0 0
        %878 = vmatpush1.bf16.xpose.msra.mxu0 0
        %879 = vmatprep.subr.bf16.mxu0 0
        %880 = vmatpush1.bf16.xpose.msra.mxu0 0
        %881 = vmatprep.subr.bf16.mxu0 0
        %882 = vmatpush1.bf16.xpose.msra.mxu0 0
        %883 = vmatprep.mubr.bf16.mxu0 0
        %884 = vmatmul.mubr.bf16.gmra.mrb[0].mxu0 %v846
        %v885 = vpop.f32.mrb[0].mxu0
        %v886 = vadd.f32 0.0, %v885
        %v887 = vpop.f32.mrb[0].mxu0
        %v888 = vpop.f32.mrb[0].mxu0
        %v889 = vpop.f32.mrb[0].mxu0
        %890 = vdwg.mxu0
        %v892 = vsel %vm765, %v826, 0
        %v895 = vsel %vm765, %v834, 0
        %897 = vmatprep.subr.bf16.mxu0 0
        %898 = vmatpush1.bf16.xpose.msra.mxu0 %v895
        %899 = vmatprep.subr.bf16.mxu0 0
        %900 = vmatpush1.bf16.xpose.msra.mxu0 0
        %901 = vmatprep.subr.bf16.mxu0 0
        %902 = vmatpush1.bf16.xpose.msra.mxu0 0
        %903 = vmatprep.subr.bf16.mxu0 0
        %904 = vmatpush1.bf16.xpose.msra.mxu0 0
        %905 = vmatprep.subr.bf16.mxu0 0
        %906 = vmatpush1.bf16.xpose.msra.mxu0 0
        %907 = vmatprep.subr.bf16.mxu0 0
        %908 = vmatpush1.bf16.xpose.msra.mxu0 0
        %909 = vmatprep.subr.bf16.mxu0 0
        %910 = vmatpush1.bf16.xpose.msra.mxu0 0
        %911 = vmatprep.subr.bf16.mxu0 0
        %912 = vmatpush1.bf16.xpose.msra.mxu0 0
        %913 = vmatprep.subr.bf16.mxu0 0
        %914 = vmatpush1.bf16.xpose.msra.mxu0 0
        %915 = vmatprep.subr.bf16.mxu0 0
        %916 = vmatpush1.bf16.xpose.msra.mxu0 0
        %917 = vmatprep.subr.bf16.mxu0 0
        %918 = vmatpush1.bf16.xpose.msra.mxu0 0
        %919 = vmatprep.subr.bf16.mxu0 0
        %920 = vmatpush1.bf16.xpose.msra.mxu0 0
        %921 = vmatprep.subr.bf16.mxu0 0
        %922 = vmatpush1.bf16.xpose.msra.mxu0 0
        %923 = vmatprep.subr.bf16.mxu0 0
        %924 = vmatpush1.bf16.xpose.msra.mxu0 0
        %925 = vmatprep.subr.bf16.mxu0 0
        %926 = vmatpush1.bf16.xpose.msra.mxu0 0
        %927 = vmatprep.subr.bf16.mxu0 0
        %928 = vmatpush1.bf16.xpose.msra.mxu0 0
        %929 = vmatprep.mubr.bf16.mxu0 0
        %930 = vmatmul.mubr.bf16.gmra.mrb[0].mxu0 %v892
        %v931 = vpop.f32.mrb[0].mxu0
        %v932 = vadd.f32 0.0, %v931
        %v933 = vpop.f32.mrb[0].mxu0
        %v934 = vpop.f32.mrb[0].mxu0
        %v935 = vpop.f32.mrb[0].mxu0
        %936 = vdwg.mxu0
        %v938 = vsel %vm765, %v827, 0
        %v941 = vsel %vm765, %v835, 0
        %943 = vmatprep.subr.bf16.mxu0 0
        %944 = vmatpush1.bf16.xpose.msra.mxu0 %v941
        %945 = vmatprep.subr.bf16.mxu0 0
        %946 = vmatpush1.bf16.xpose.msra.mxu0 0
        %947 = vmatprep.subr.bf16.mxu0 0
        %948 = vmatpush1.bf16.xpose.msra.mxu0 0
        %949 = vmatprep.subr.bf16.mxu0 0
        %950 = vmatpush1.bf16.xpose.msra.mxu0 0
        %951 = vmatprep.subr.bf16.mxu0 0
        %952 = vmatpush1.bf16.xpose.msra.mxu0 0
        %953 = vmatprep.subr.bf16.mxu0 0
        %954 = vmatpush1.bf16.xpose.msra.mxu0 0
        %955 = vmatprep.subr.bf16.mxu0 0
        %956 = vmatpush1.bf16.xpose.msra.mxu0 0
        %957 = vmatprep.subr.bf16.mxu0 0
        %958 = vmatpush1.bf16.xpose.msra.mxu0 0
        %959 = vmatprep.subr.bf16.mxu0 0
        %960 = vmatpush1.bf16.xpose.msra.mxu0 0
        %961 = vmatprep.subr.bf16.mxu0 0
        %962 = vmatpush1.bf16.xpose.msra.mxu0 0
        %963 = vmatprep.subr.bf16.mxu0 0
        %964 = vmatpush1.bf16.xpose.msra.mxu0 0
        %965 = vmatprep.subr.bf16.mxu0 0
        %966 = vmatpush1.bf16.xpose.msra.mxu0 0
        %967 = vmatprep.subr.bf16.mxu0 0
        %968 = vmatpush1.bf16.xpose.msra.mxu0 0
        %969 = vmatprep.subr.bf16.mxu0 0
        %970 = vmatpush1.bf16.xpose.msra.mxu0 0
        %971 = vmatprep.subr.bf16.mxu0 0
        %972 = vmatpush1.bf16.xpose.msra.mxu0 0
        %973 = vmatprep.subr.bf16.mxu0 0
        %974 = vmatpush1.bf16.xpose.msra.mxu0 0
        %975 = vmatprep.mubr.bf16.mxu0 0
        %976 = vmatmul.mubr.bf16.gmra.mrb[0].mxu0 %v938
        %v977 = vpop.f32.mrb[0].mxu0
        %v978 = vadd.f32 0.0, %v977
        %v979 = vpop.f32.mrb[0].mxu0
        %v980 = vpop.f32.mrb[0].mxu0
        %v981 = vpop.f32.mrb[0].mxu0
        %982 = vdwg.mxu0
        %v984 = vsel %vm765, %v828, 0
        %v987 = vsel %vm765, %v836, 0
        %989 = vmatprep.subr.bf16.mxu0 0
        %990 = vmatpush1.bf16.xpose.msra.mxu0 %v987
        %991 = vmatprep.subr.bf16.mxu0 0
        %992 = vmatpush1.bf16.xpose.msra.mxu0 0
        %993 = vmatprep.subr.bf16.mxu0 0
        %994 = vmatpush1.bf16.xpose.msra.mxu0 0
        %995 = vmatprep.subr.bf16.mxu0 0
        %996 = vmatpush1.bf16.xpose.msra.mxu0 0
        %997 = vmatprep.subr.bf16.mxu0 0
        %998 = vmatpush1.bf16.xpose.msra.mxu0 0
        %999 = vmatprep.subr.bf16.mxu0 0
        %1000 = vmatpush1.bf16.xpose.msra.mxu0 0
        %1001 = vmatprep.subr.bf16.mxu0 0
        %1002 = vmatpush1.bf16.xpose.msra.mxu0 0
        %1003 = vmatprep.subr.bf16.mxu0 0
        %1004 = vmatpush1.bf16.xpose.msra.mxu0 0
        %1005 = vmatprep.subr.bf16.mxu0 0
        %1006 = vmatpush1.bf16.xpose.msra.mxu0 0
        %1007 = vmatprep.subr.bf16.mxu0 0
        %1008 = vmatpush1.bf16.xpose.msra.mxu0 0
        %1009 = vmatprep.subr.bf16.mxu0 0
        %1010 = vmatpush1.bf16.xpose.msra.mxu0 0
        %1011 = vmatprep.subr.bf16.mxu0 0
        %1012 = vmatpush1.bf16.xpose.msra.mxu0 0
        %1013 = vmatprep.subr.bf16.mxu0 0
        %1014 = vmatpush1.bf16.xpose.msra.mxu0 0
        %1015 = vmatprep.subr.bf16.mxu0 0
        %1016 = vmatpush1.bf16.xpose.msra.mxu0 0
        %1017 = vmatprep.subr.bf16.mxu0 0
        %1018 = vmatpush1.bf16.xpose.msra.mxu0 0
        %1019 = vmatprep.subr.bf16.mxu0 0
        %1020 = vmatpush1.bf16.xpose.msra.mxu0 0
        %1021 = vmatprep.mubr.bf16.mxu0 0
        %1022 = vmatmul.mubr.bf16.gmra.mrb[0].mxu0 %v984
        %v1023 = vpop.f32.mrb[0].mxu0
        %v1024 = vadd.f32 0.0, %v1023
        %v1025 = vpop.f32.mrb[0].mxu0
        %v1026 = vpop.f32.mrb[0].mxu0
        %v1027 = vpop.f32.mrb[0].mxu0
        %1028 = vdwg.mxu0
        %v1029 = vmul.f32 %v886, 0.35355338
        %v1030 = vmul.f32 %v932, 0.35355338
        %v1031 = vmul.f32 %v978, 0.35355338
        %v1032 = vmul.f32 %v1024, 0.35355338
        %v1033 = vadd.f32 %v1029, %v665
        %v1034 = vadd.f32 %v1030, %v665
        %v1035 = vadd.f32 %v1031, %v665
        %v1036 = vadd.f32 %v1032, %v665
        %v1037 = vsel %vm765, %v1033, -inf
        %1038 = vmax.xlane.f32.xlu0 %v1037
        %v1039 = vpop.xlane.xlu0 %1038
        %v1040 = vsel %vm765, %v1034, -inf
        %1041 = vmax.xlane.f32.xlu0 %v1040
        %v1042 = vpop.xlane.xlu0 %1041
        %v1043 = vsel %vm765, %v1035, -inf
        %1044 = vmax.xlane.f32.xlu0 %v1043
        %v1045 = vpop.xlane.xlu0 %1044
        %v1046 = vsel %vm765, %v1036, -inf
        %1047 = vmax.xlane.f32.xlu0 %v1046
        %v1048 = vpop.xlane.xlu0 %1047
        %v1049 = vsub.f32 %v1033, %v1039
        %v1050 = vsub.f32 %v1034, %v1042
        %v1051 = vsub.f32 %v1035, %v1045
        %v1052 = vsub.f32 %v1036, %v1048
        %v1053 = vmul.f32 %v1049, 1.442695
        %v1054 = vpow.pop %v1053
        %v1055 = vmul.f32 %v1050, 1.442695
        %v1056 = vpow.pop %v1055
        %v1057 = vmul.f32 %v1051, 1.442695
        %v1058 = vpow.pop %v1057
        %v1059 = vmul.f32 %v1052, 1.442695
        %v1060 = vpow.pop %v1059
        %v1061 = vsel %vm765, %v1054, 0.0
        %1062 = vadd.xlane.f32.xlu0 %v1061
        %v1063 = vpop.xlane.xlu0 %1062
        %v1064 = vsel %vm765, %v1056, 0.0
        %1065 = vadd.xlane.f32.xlu0 %v1064
        %v1066 = vpop.xlane.xlu0 %1065
        %v1067 = vsel %vm765, %v1058, 0.0
        %1068 = vadd.xlane.f32.xlu0 %v1067
        %v1069 = vpop.xlane.xlu0 %1068
        %v1070 = vsel %vm765, %v1060, 0.0
        %1071 = vadd.xlane.f32.xlu0 %v1070
        %v1072 = vpop.xlane.xlu0 %1071
        %v1073 = vrcp.pop %v1063
        %v1074 = vrcp.pop %v1066
        %v1075 = vrcp.pop %v1069
        %v1076 = vrcp.pop %v1072
        %v1077 = vmul.f32 %v1054, %v1073
        %v1078 = vmul.f32 %v1056, %v1074
        %v1079 = vmul.f32 %v1058, %v1075
        %v1080 = vmul.f32 %v1060, %v1076
        %v1081 = vpack.c.bf16 %v1077, %v1077
        %v1082 = vpack.c.bf16 %v1078, %v1078
        %v1083 = vpack.c.bf16 %v1079, %v1079
        %v1084 = vpack.c.bf16 %v1080, %v1080
        %v1086 = vsel %vm765, %v1081, 0
        %vm1088 = vcmask 1043456
        %v1090 = vsel %vm1088, %v841, 0
        %1092 = vmatprep.subr.bf16.mxu0 0
        %1093 = vmatpush1.bf16.msra.mxu0 %v1090
        %1094 = vmatprep.subr.bf16.mxu0 0
        %1095 = vmatpush1.bf16.msra.mxu0 0
        %1096 = vmatprep.subr.bf16.mxu0 0
        %1097 = vmatpush1.bf16.msra.mxu0 0
        %1098 = vmatprep.subr.bf16.mxu0 0
        %1099 = vmatpush1.bf16.msra.mxu0 0
        %1100 = vmatprep.subr.bf16.mxu0 0
        %1101 = vmatpush1.bf16.msra.mxu0 0
        %1102 = vmatprep.subr.bf16.mxu0 0
        %1103 = vmatpush1.bf16.msra.mxu0 0
        %1104 = vmatprep.subr.bf16.mxu0 0
        %1105 = vmatpush1.bf16.msra.mxu0 0
        %1106 = vmatprep.subr.bf16.mxu0 0
        %1107 = vmatpush1.bf16.msra.mxu0 0
        %1108 = vmatprep.subr.bf16.mxu0 0
        %1109 = vmatpush1.bf16.msra.mxu0 0
        %1110 = vmatprep.subr.bf16.mxu0 0
        %1111 = vmatpush1.bf16.msra.mxu0 0
        %1112 = vmatprep.subr.bf16.mxu0 0
        %1113 = vmatpush1.bf16.msra.mxu0 0
        %1114 = vmatprep.subr.bf16.mxu0 0
        %1115 = vmatpush1.bf16.msra.mxu0 0
        %1116 = vmatprep.subr.bf16.mxu0 0
        %1117 = vmatpush1.bf16.msra.mxu0 0
        %1118 = vmatprep.subr.bf16.mxu0 0
        %1119 = vmatpush1.bf16.msra.mxu0 0
        %1120 = vmatprep.subr.bf16.mxu0 0
        %1121 = vmatpush1.bf16.msra.mxu0 0
        %1122 = vmatprep.subr.bf16.mxu0 0
        %1123 = vmatpush1.bf16.msra.mxu0 0
        %1124 = vmatprep.mubr.bf16.mxu0 0
        %1125 = vmatmul.mubr.bf16.gmra.mrb[0].mxu0 %v1086
        %v1126 = vpop.f32.mrb[0].mxu0
        %v1127 = vadd.f32 0.0, %v1126
        %v1128 = vpop.f32.mrb[0].mxu0
        %v1129 = vpop.f32.mrb[0].mxu0
        %v1130 = vpop.f32.mrb[0].mxu0
        %1131 = vdwg.mxu0
        %v1133 = vsel %vm765, %v1082, 0
        %v1136 = vsel %vm1088, %v842, 0
        %1138 = vmatprep.subr.bf16.mxu0 0
        %1139 = vmatpush1.bf16.msra.mxu0 %v1136
        %1140 = vmatprep.subr.bf16.mxu0 0
        %1141 = vmatpush1.bf16.msra.mxu0 0
        %1142 = vmatprep.subr.bf16.mxu0 0
        %1143 = vmatpush1.bf16.msra.mxu0 0
        %1144 = vmatprep.subr.bf16.mxu0 0
        %1145 = vmatpush1.bf16.msra.mxu0 0
        %1146 = vmatprep.subr.bf16.mxu0 0
        %1147 = vmatpush1.bf16.msra.mxu0 0
        %1148 = vmatprep.subr.bf16.mxu0 0
        %1149 = vmatpush1.bf16.msra.mxu0 0
        %1150 = vmatprep.subr.bf16.mxu0 0
        %1151 = vmatpush1.bf16.msra.mxu0 0
        %1152 = vmatprep.subr.bf16.mxu0 0
        %1153 = vmatpush1.bf16.msra.mxu0 0
        %1154 = vmatprep.subr.bf16.mxu0 0
        %1155 = vmatpush1.bf16.msra.mxu0 0
        %1156 = vmatprep.subr.bf16.mxu0 0
        %1157 = vmatpush1.bf16.msra.mxu0 0
        %1158 = vmatprep.subr.bf16.mxu0 0
        %1159 = vmatpush1.bf16.msra.mxu0 0
        %1160 = vmatprep.subr.bf16.mxu0 0
        %1161 = vmatpush1.bf16.msra.mxu0 0
        %1162 = vmatprep.subr.bf16.mxu0 0
        %1163 = vmatpush1.bf16.msra.mxu0 0
        %1164 = vmatprep.subr.bf16.mxu0 0
        %1165 = vmatpush1.bf16.msra.mxu0 0
        %1166 = vmatprep.subr.bf16.mxu0 0
        %1167 = vmatpush1.bf16.msra.mxu0 0
        %1168 = vmatprep.subr.bf16.mxu0 0
        %1169 = vmatpush1.bf16.msra.mxu0 0
        %1170 = vmatprep.mubr.bf16.mxu0 0
        %1171 = vmatmul.mubr.bf16.gmra.mrb[0].mxu0 %v1133
        %v1172 = vpop.f32.mrb[0].mxu0
        %v1173 = vadd.f32 0.0, %v1172
        %v1174 = vpop.f32.mrb[0].mxu0
        %v1175 = vpop.f32.mrb[0].mxu0
        %v1176 = vpop.f32.mrb[0].mxu0
        %1177 = vdwg.mxu0
        %v1179 = vsel %vm765, %v1083, 0
        %v1182 = vsel %vm1088, %v843, 0
        %1184 = vmatprep.subr.bf16.mxu0 0
        %1185 = vmatpush1.bf16.msra.mxu0 %v1182
        %1186 = vmatprep.subr.bf16.mxu0 0
        %1187 = vmatpush1.bf16.msra.mxu0 0
        %1188 = vmatprep.subr.bf16.mxu0 0
        %1189 = vmatpush1.bf16.msra.mxu0 0
        %1190 = vmatprep.subr.bf16.mxu0 0
        %1191 = vmatpush1.bf16.msra.mxu0 0
        %1192 = vmatprep.subr.bf16.mxu0 0
        %1193 = vmatpush1.bf16.msra.mxu0 0
        %1194 = vmatprep.subr.bf16.mxu0 0
        %1195 = vmatpush1.bf16.msra.mxu0 0
        %1196 = vmatprep.subr.bf16.mxu0 0
        %1197 = vmatpush1.bf16.msra.mxu0 0
        %1198 = vmatprep.subr.bf16.mxu0 0
        %1199 = vmatpush1.bf16.msra.mxu0 0
        %1200 = vmatprep.subr.bf16.mxu0 0
        %1201 = vmatpush1.bf16.msra.mxu0 0
        %1202 = vmatprep.subr.bf16.mxu0 0
        %1203 = vmatpush1.bf16.msra.mxu0 0
        %1204 = vmatprep.subr.bf16.mxu0 0
        %1205 = vmatpush1.bf16.msra.mxu0 0
        %1206 = vmatprep.subr.bf16.mxu0 0
        %1207 = vmatpush1.bf16.msra.mxu0 0
        %1208 = vmatprep.subr.bf16.mxu0 0
        %1209 = vmatpush1.bf16.msra.mxu0 0
        %1210 = vmatprep.subr.bf16.mxu0 0
        %1211 = vmatpush1.bf16.msra.mxu0 0
        %1212 = vmatprep.subr.bf16.mxu0 0
        %1213 = vmatpush1.bf16.msra.mxu0 0
        %1214 = vmatprep.subr.bf16.mxu0 0
        %1215 = vmatpush1.bf16.msra.mxu0 0
        %1216 = vmatprep.mubr.bf16.mxu0 0
        %1217 = vmatmul.mubr.bf16.gmra.mrb[0].mxu0 %v1179
        %v1218 = vpop.f32.mrb[0].mxu0
        %v1219 = vadd.f32 0.0, %v1218
        %v1220 = vpop.f32.mrb[0].mxu0
        %v1221 = vpop.f32.mrb[0].mxu0
        %v1222 = vpop.f32.mrb[0].mxu0
        %1223 = vdwg.mxu0
        %v1225 = vsel %vm765, %v1084, 0
        %v1228 = vsel %vm1088, %v844, 0
        %1230 = vmatprep.subr.bf16.mxu0 0
        %1231 = vmatpush1.bf16.msra.mxu0 %v1228
        %1232 = vmatprep.subr.bf16.mxu0 0
        %1233 = vmatpush1.bf16.msra.mxu0 0
        %1234 = vmatprep.subr.bf16.mxu0 0
        %1235 = vmatpush1.bf16.msra.mxu0 0
        %1236 = vmatprep.subr.bf16.mxu0 0
        %1237 = vmatpush1.bf16.msra.mxu0 0
        %1238 = vmatprep.subr.bf16.mxu0 0
        %1239 = vmatpush1.bf16.msra.mxu0 0
        %1240 = vmatprep.subr.bf16.mxu0 0
        %1241 = vmatpush1.bf16.msra.mxu0 0
        %1242 = vmatprep.subr.bf16.mxu0 0
        %1243 = vmatpush1.bf16.msra.mxu0 0
        %1244 = vmatprep.subr.bf16.mxu0 0
        %1245 = vmatpush1.bf16.msra.mxu0 0
        %1246 = vmatprep.subr.bf16.mxu0 0
        %1247 = vmatpush1.bf16.msra.mxu0 0
        %1248 = vmatprep.subr.bf16.mxu0 0
        %1249 = vmatpush1.bf16.msra.mxu0 0
        %1250 = vmatprep.subr.bf16.mxu0 0
        %1251 = vmatpush1.bf16.msra.mxu0 0
        %1252 = vmatprep.subr.bf16.mxu0 0
        %1253 = vmatpush1.bf16.msra.mxu0 0
        %1254 = vmatprep.subr.bf16.mxu0 0
        %1255 = vmatpush1.bf16.msra.mxu0 0
        %1256 = vmatprep.subr.bf16.mxu0 0
        %1257 = vmatpush1.bf16.msra.mxu0 0
        %1258 = vmatprep.subr.bf16.mxu0 0
        %1259 = vmatpush1.bf16.msra.mxu0 0
        %1260 = vmatprep.subr.bf16.mxu0 0
        %1261 = vmatpush1.bf16.msra.mxu0 0
        %1262 = vmatprep.mubr.bf16.mxu0 0
        %1263 = vmatmul.mubr.bf16.gmra.mrb[0].mxu0 %v1225
        %v1264 = vpop.f32.mrb[0].mxu0
        %v1265 = vadd.f32 0.0, %v1264
        %v1266 = vpop.f32.mrb[0].mxu0
        %v1267 = vpop.f32.mrb[0].mxu0
        %v1268 = vpop.f32.mrb[0].mxu0
        %1269 = vdwg.mxu0
        %1270 = vst.msk [vmem:[#allocation5] sm:$0xff] %vm765, %v1127
        %1272 = vrot.lane.b32.xlu0 %v1173, 8
        %v1273 = vpop.permute.xlu0 %1272
        %vm1275 = vcmask 130112
        %1276 = vst.msk [vmem:[#allocation5] sm:$0xff] %vm1275, %v1273
        %1278 = vrot.lane.b32.xlu0 %v1219, 16
        %v1279 = vpop.permute.xlu0 %1278
        %vm1281 = vcmask 195712
        %1282 = vst.msk [vmem:[#allocation5] sm:$0xff] %vm1281, %v1279
        %1284 = vrot.lane.b32.xlu0 %v1265, 24
        %v1285 = vpop.permute.xlu0 %1284
        %vm1287 = vcmask 261312
        %1288 = vst.msk [vmem:[#allocation5] sm:$0xff] %vm1287, %v1285
        %v1289 = vld [vmem:[#allocation5] sm:$0xff]
        %v1290 = vpack.c.bf16 %v1289, %v1289
        %v1291 = vld [vmem:[%s6] sm:$0xf]
        %v1292 = vld [vmem:[%s6 + $0x4] sm:$0xf]
        %v1293 = vld [vmem:[%s6 + $0x8] sm:$0xf]
        %v1294 = vld [vmem:[%s6 + $0xc] sm:$0xf]
        %v1295 = vld [vmem:[#allocation8] sm:$0x1]
        %v1297 = vlaneseq
        %v1298 = vshrl.u32 %v1297, 7
        %v1299 = vsub.s32 0, %v1298
        %v1300 = vrot.slane %v1295, %v1299
        %v1306 = vunpack.c.l.b16 %v1291
        %v1307 = vunpack.c.l.b16 %v1292
        %v1308 = vunpack.c.l.b16 %v1293
        %v1309 = vunpack.c.l.b16 %v1294
        %v1310 = vpack.c.b16 %v1307, %v1306
        %v1311 = vpack.c.b16 %v1309, %v1308
        %v1315 = vsel %vm669, %v1290, 0
        %1317 = vmatprep.subr.bf16.mxu0 0
        %1318 = vmatpush1.bf16.msra.mxu0 %v1310
        %1319 = vmatprep.subr.bf16.mxu0 0
        %1320 = vmatpush1.bf16.msra.mxu0 %v1311
        %1321 = vmatprep.subr.bf16.mxu0 0
        %1322 = vmatpush1.bf16.msra.mxu0 0
        %1323 = vmatprep.subr.bf16.mxu0 0
        %1324 = vmatpush1.bf16.msra.mxu0 0
        %1325 = vmatprep.subr.bf16.mxu0 0
        %1326 = vmatpush1.bf16.msra.mxu0 0
        %1327 = vmatprep.subr.bf16.mxu0 0
        %1328 = vmatpush1.bf16.msra.mxu0 0
        %1329 = vmatprep.subr.bf16.mxu0 0
        %1330 = vmatpush1.bf16.msra.mxu0 0
        %1331 = vmatprep.subr.bf16.mxu0 0
        %1332 = vmatpush1.bf16.msra.mxu0 0
        %1333 = vmatprep.subr.bf16.mxu0 0
        %1334 = vmatpush1.bf16.msra.mxu0 0
        %1335 = vmatprep.subr.bf16.mxu0 0
        %1336 = vmatpush1.bf16.msra.mxu0 0
        %1337 = vmatprep.subr.bf16.mxu0 0
        %1338 = vmatpush1.bf16.msra.mxu0 0
        %1339 = vmatprep.subr.bf16.mxu0 0
        %1340 = vmatpush1.bf16.msra.mxu0 0
        %1341 = vmatprep.subr.bf16.mxu0 0
        %1342 = vmatpush1.bf16.msra.mxu0 0
        %1343 = vmatprep.subr.bf16.mxu0 0
        %1344 = vmatpush1.bf16.msra.mxu0 0
        %1345 = vmatprep.subr.bf16.mxu0 0
        %1346 = vmatpush1.bf16.msra.mxu0 0
        %1347 = vmatprep.subr.bf16.mxu0 0
        %1348 = vmatpush1.bf16.msra.mxu0 0
        %1349 = vmatprep.mubr.bf16.mxu0 0
        %1350 = vmatmul.mubr.bf16.gmra.mrb[0].mxu0 %v1315
        %v1351 = vpop.f32.mrb[0].mxu0
        %v1352 = vadd.f32 %v1300, %v1351
        %v1353 = vpop.f32.mrb[0].mxu0
        %v1354 = vpop.f32.mrb[0].mxu0
        %v1355 = vpop.f32.mrb[0].mxu0
        %1356 = vdwg.mxu0
        %v1357 = vadd.f32 %v697, %v1352
        %v1358 = vld [vmem:[%s8] sm:$0x1]
        %v1359 = vld [vmem:[%s9] sm:$0x1]
        %v1360 = vsel %vm669, %v1357, 0.0
        %1361 = vadd.xlane.f32.xlu0 %v1360
        %v1362 = vpop.xlane.xlu0 %1361
        %v1363 = vmul.f32 %v1362, %v673
        %v1364 = vsub.f32 %v1357, %v1363
        %v1365 = vmul.f32 %v1364, %v1364
        %v1366 = vsel %vm669, %v1365, 0.0
        %1367 = vadd.xlane.f32.xlu0 %v1366
        %v1368 = vpop.xlane.xlu0 %1367
        %v1369 = vmul.f32 %v1368, %v673
        %v1370 = vadd.f32 %v1369, 1e-05
        %v1371 = vrsqrt.pop %v1370
        %v1372 = vmul.f32 %v1364, %v1371
        %v1374 = vlaneseq
        %v1375 = vshrl.u32 %v1374, 7
        %v1376 = vsub.s32 0, %v1375
        %v1377 = vrot.slane %v1358, %v1376
        %v1379 = vmul.f32 %v1372, %v1377
        %v1381 = vlaneseq
        %v1382 = vshrl.u32 %v1381, 7
        %v1383 = vsub.s32 0, %v1382
        %v1384 = vrot.slane %v1359, %v1383
        %v1386 = vadd.f32 %v1379, %v1384
        %v1387 = vpack.c.bf16 %v1386, %v1386
        %v1388 = vld [vmem:[#allocation10] sm:$0xf]
        %v1389 = vld [vmem:[#allocation10 + $0x4] sm:$0xf]
        %v1390 = vld [vmem:[#allocation10 + $0x8] sm:$0xf]
        %v1391 = vld [vmem:[#allocation10 + $0xc] sm:$0xf]
        %v1392 = vld [vmem:[#allocation11] sm:$0x1]
        %v1394 = vlaneseq
        %v1395 = vshrl.u32 %v1394, 7
        %v1396 = vsub.s32 0, %v1395
        %v1397 = vrot.slane %v1392, %v1396
        %v1403 = vunpack.c.l.b16 %v1388
        %v1404 = vunpack.c.l.b16 %v1389
        %v1405 = vunpack.c.l.b16 %v1390
        %v1406 = vunpack.c.l.b16 %v1391
        %v1407 = vpack.c.b16 %v1404, %v1403
        %v1408 = vpack.c.b16 %v1406, %v1405
        %v1412 = vsel %vm669, %v1387, 0
        %1414 = vmatprep.subr.bf16.mxu0 0
        %1415 = vmatpush1.bf16.msra.mxu0 %v1407
        %1416 = vmatprep.subr.bf16.mxu0 0
        %1417 = vmatpush1.bf16.msra.mxu0 %v1408
        %1418 = vmatprep.subr.bf16.mxu0 0
        %1419 = vmatpush1.bf16.msra.mxu0 0
        %1420 = vmatprep.subr.bf16.mxu0 0
        %1421 = vmatpush1.bf16.msra.mxu0 0
        %1422 = vmatprep.subr.bf16.mxu0 0
        %1423 = vmatpush1.bf16.msra.mxu0 0
        %1424 = vmatprep.subr.bf16.mxu0 0
        %1425 = vmatpush1.bf16.msra.mxu0 0
        %1426 = vmatprep.subr.bf16.mxu0 0
        %1427 = vmatpush1.bf16.msra.mxu0 0
        %1428 = vmatprep.subr.bf16.mxu0 0
        %1429 = vmatpush1.bf16.msra.mxu0 0
        %1430 = vmatprep.subr.bf16.mxu0 0
        %1431 = vmatpush1.bf16.msra.mxu0 0
        %1432 = vmatprep.subr.bf16.mxu0 0
        %1433 = vmatpush1.bf16.msra.mxu0 0
        %1434 = vmatprep.subr.bf16.mxu0 0
        %1435 = vmatpush1.bf16.msra.mxu0 0
        %1436 = vmatprep.subr.bf16.mxu0 0
        %1437 = vmatpush1.bf16.msra.mxu0 0
        %1438 = vmatprep.subr.bf16.mxu0 0
        %1439 = vmatpush1.bf16.msra.mxu0 0
        %1440 = vmatprep.subr.bf16.mxu0 0
        %1441 = vmatpush1.bf16.msra.mxu0 0
        %1442 = vmatprep.subr.bf16.mxu0 0
        %1443 = vmatpush1.bf16.msra.mxu0 0
        %1444 = vmatprep.subr.bf16.mxu0 0
        %1445 = vmatpush1.bf16.msra.mxu0 0
        %1446 = vmatprep.mubr.bf16.mxu0 0
        %1447 = vmatmul.mubr.bf16.gmra.mrb[0].mxu0 %v1412
        %v1448 = vpop.f32.mrb[0].mxu0
        %v1449 = vadd.f32 %v1397, %v1448
        %v1450 = vpop.f32.mrb[0].mxu0
        %v1451 = vpop.f32.mrb[0].mxu0
        %v1452 = vpop.f32.mrb[0].mxu0
        %1453 = vdwg.mxu0
        %v1454 = vmax.f32 %v1449, 0.0
        %v1455 = vpack.c.bf16 %v1454, %v1454
        %v1456 = vld [vmem:[%s12] sm:$0xf]
        %v1457 = vld [vmem:[%s12 + $0x4] sm:$0xf]
        %v1458 = vld [vmem:[%s12 + $0x8] sm:$0xf]
        %v1459 = vld [vmem:[%s12 + $0xc] sm:$0xf]
        %v1460 = vld [vmem:[%s12 + $0x10] sm:$0xf]
        %v1461 = vld [vmem:[%s12 + $0x14] sm:$0xf]
        %v1462 = vld [vmem:[%s12 + $0x18] sm:$0xf]
        %v1463 = vld [vmem:[%s12 + $0x1c] sm:$0xf]
        %v1464 = vld [vmem:[#allocation13] sm:$0x1]
        %v1466 = vlaneseq
        %v1467 = vshrl.u32 %v1466, 7
        %v1468 = vsub.s32 0, %v1467
        %v1469 = vrot.slane %v1464, %v1468
        %v1479 = vunpack.c.l.b16 %v1456
        %v1480 = vunpack.c.l.b16 %v1457
        %v1481 = vunpack.c.l.b16 %v1458
        %v1482 = vunpack.c.l.b16 %v1459
        %v1483 = vunpack.c.l.b16 %v1460
        %v1484 = vunpack.c.l.b16 %v1461
        %v1485 = vunpack.c.l.b16 %v1462
        %v1486 = vunpack.c.l.b16 %v1463
        %v1487 = vpack.c.b16 %v1480, %v1479
        %v1488 = vpack.c.b16 %v1482, %v1481
        %v1489 = vpack.c.b16 %v1484, %v1483
        %v1490 = vpack.c.b16 %v1486, %v1485
        %vm1495 = vcmask 523264
        %v1497 = vsel %vm1495, %v1455, 0
        %1499 = vmatprep.subr.bf16.mxu0 0
        %1500 = vmatpush1.bf16.msra.mxu0 %v1487
        %1501 = vmatprep.subr.bf16.mxu0 0
        %1502 = vmatpush1.bf16.msra.mxu0 %v1488
        %1503 = vmatprep.subr.bf16.mxu0 0
        %1504 = vmatpush1.bf16.msra.mxu0 %v1489
        %1505 = vmatprep.subr.bf16.mxu0 0
        %1506 = vmatpush1.bf16.msra.mxu0 %v1490
        %1507 = vmatprep.subr.bf16.mxu0 0
        %1508 = vmatpush1.bf16.msra.mxu0 0
        %1509 = vmatprep.subr.bf16.mxu0 0
        %1510 = vmatpush1.bf16.msra.mxu0 0
        %1511 = vmatprep.subr.bf16.mxu0 0
        %1512 = vmatpush1.bf16.msra.mxu0 0
        %1513 = vmatprep.subr.bf16.mxu0 0
        %1514 = vmatpush1.bf16.msra.mxu0 0
        %1515 = vmatprep.subr.bf16.mxu0 0
        %1516 = vmatpush1.bf16.msra.mxu0 0
        %1517 = vmatprep.subr.bf16.mxu0 0
        %1518 = vmatpush1.bf16.msra.mxu0 0
        %1519 = vmatprep.subr.bf16.mxu0 0
        %1520 = vmatpush1.bf16.msra.mxu0 0
        %1521 = vmatprep.subr.bf16.mxu0 0
        %1522 = vmatpush1.bf16.msra.mxu0 0
        %1523 = vmatprep.subr.bf16.mxu0 0
        %1524 = vmatpush1.bf16.msra.mxu0 0
        %1525 = vmatprep.subr.bf16.mxu0 0
        %1526 = vmatpush1.bf16.msra.mxu0 0
        %1527 = vmatprep.subr.bf16.mxu0 0
        %1528 = vmatpush1.bf16.msra.mxu0 0
        %1529 = vmatprep.subr.bf16.mxu0 0
        %1530 = vmatpush1.bf16.msra.mxu0 0
        %1531 = vmatprep.mubr.bf16.mxu0 0
        %1532 = vmatmul.mubr.bf16.gmra.mrb[0].mxu0 %v1497
        %v1533 = vpop.f32.mrb[0].mxu0
        %v1534 = vadd.f32 %v1469, %v1533
        %v1535 = vpop.f32.mrb[0].mxu0
        %v1536 = vpop.f32.mrb[0].mxu0
        %v1537 = vpop.f32.mrb[0].mxu0
        %1538 = vdwg.mxu0
        %v1539 = vadd.f32 %v1386, %v1534
        %v1540 = vld [vmem:[%s14] sm:$0x1]
        %v1541 = vld [vmem:[%s15] sm:$0x1]
        %v1542 = vsel %vm669, %v1539, 0.0
        %1543 = vadd.xlane.f32.xlu0 %v1542
        %v1544 = vpop.xlane.xlu0 %1543
        %v1545 = vmul.f32 %v1544, %v673
        %v1546 = vsub.f32 %v1539, %v1545
        %v1547 = vmul.f32 %v1546, %v1546
        %v1548 = vsel %vm669, %v1547, 0.0
        %1549 = vadd.xlane.f32.xlu0 %v1548
        %v1550 = vpop.xlane.xlu0 %1549
        %v1551 = vmul.f32 %v1550, %v673
        %v1552 = vadd.f32 %v1551, 1e-05
        %v1553 = vrsqrt.pop %v1552
        %v1554 = vmul.f32 %v1546, %v1553
        %v1556 = vlaneseq
        %v1557 = vshrl.u32 %v1556, 7
        %v1558 = vsub.s32 0, %v1557
        %v1559 = vrot.slane %v1540, %v1558
        %v1561 = vmul.f32 %v1554, %v1559
        %v1563 = vlaneseq
        %v1564 = vshrl.u32 %v1563, 7
        %v1565 = vsub.s32 0, %v1564
        %v1566 = vrot.slane %v1541, %v1565
        %v1568 = vadd.f32 %v1561, %v1566
        %v1569 = vpack.c.bf16 %v1568, %v1568
        %s1570 = scalar_lea.vmem %s4, 16
        %v1571 = vld [vmem:[%s1570] sm:$0xf]
        %v1572 = vld [vmem:[%s1570 + $0x4] sm:$0xf]
        %v1573 = vld [vmem:[%s1570 + $0x8] sm:$0xf]
        %v1574 = vld [vmem:[%s1570 + $0xc] sm:$0xf]
        %s1575 = scalar_lea.vmem [#allocation6], 1
        %v1576 = vld [vmem:[%s1575] sm:$0x1]
        %v1578 = vlaneseq
        %v1579 = vshrl.u32 %v1578, 7
        %v1580 = vsub.s32 0, %v1579
        %v1581 = vrot.slane %v1576, %v1580
        %v1587 = vunpack.c.l.b16 %v1571
        %v1588 = vunpack.c.l.b16 %v1572
        %v1589 = vunpack.c.l.b16 %v1573
        %v1590 = vunpack.c.l.b16 %v1574
        %v1591 = vpack.c.b16 %v1588, %v1587
        %v1592 = vpack.c.b16 %v1590, %v1589
        %v1596 = vsel %vm669, %v1569, 0
        %1598 = vmatprep.subr.bf16.mxu0 0
        %1599 = vmatpush1.bf16.msra.mxu0 %v1591
        %1600 = vmatprep.subr.bf16.mxu0 0
        %1601 = vmatpush1.bf16.msra.mxu0 %v1592
        %1602 = vmatprep.subr.bf16.mxu0 0
        %1603 = vmatpush1.bf16.msra.mxu0 0
        %1604 = vmatprep.subr.bf16.mxu0 0
        %1605 = vmatpush1.bf16.msra.mxu0 0
        %1606 = vmatprep.subr.bf16.mxu0 0
        %1607 = vmatpush1.bf16.msra.mxu0 0
        %1608 = vmatprep.subr.bf16.mxu0 0
        %1609 = vmatpush1.bf16.msra.mxu0 0
        %1610 = vmatprep.subr.bf16.mxu0 0
        %1611 = vmatpush1.bf16.msra.mxu0 0
        %1612 = vmatprep.subr.bf16.mxu0 0
        %1613 = vmatpush1.bf16.msra.mxu0 0
        %1614 = vmatprep.subr.bf16.mxu0 0
        %1615 = vmatpush1.bf16.msra.mxu0 0
        %1616 = vmatprep.subr.bf16.mxu0 0
        %1617 = vmatpush1.bf16.msra.mxu0 0
        %1618 = vmatprep.subr.bf16.mxu0 0
        %1619 = vmatpush1.bf16.msra.mxu0 0
        %1620 = vmatprep.subr.bf16.mxu0 0
        %1621 = vmatpush1.bf16.msra.mxu0 0
        %1622 = vmatprep.subr.bf16.mxu0 0
        %1623 = vmatpush1.bf16.msra.mxu0 0
        %1624 = vmatprep.subr.bf16.mxu0 0
        %1625 = vmatpush1.bf16.msra.mxu0 0
        %1626 = vmatprep.subr.bf16.mxu0 0
        %1627 = vmatpush1.bf16.msra.mxu0 0
        %1628 = vmatprep.subr.bf16.mxu0 0
        %1629 = vmatpush1.bf16.msra.mxu0 0
        %1630 = vmatprep.mubr.bf16.mxu0 0
        %1631 = vmatmul.mubr.bf16.gmra.mrb[0].mxu0 %v1596
        %v1632 = vpop.f32.mrb[0].mxu0
        %v1633 = vadd.f32 %v1581, %v1632
        %v1634 = vpop.f32.mrb[0].mxu0
        %v1635 = vpop.f32.mrb[0].mxu0
        %v1636 = vpop.f32.mrb[0].mxu0
        %1637 = vdwg.mxu0
        %1638 = vst.msk [vmem:[#allocation2] sm:$0xff] %vm765, %v1633
        %1640 = vrot.lane.b32.xlu0 %v1633, 96
        %v1641 = vpop.permute.xlu0 %1640
        %1643 = vst.msk [vmem:[#allocation3] sm:$0xff] %vm765, %v1641
        %1644 = vrot.lane.b32.xlu0 %v1633, 64
        %v1645 = vpop.permute.xlu0 %1644
        %1647 = vst.msk [vmem:[#allocation4] sm:$0xff] %vm765, %v1645
        %1648 = vrot.lane.b32.xlu0 %v1633, 120
        %v1649 = vpop.permute.xlu0 %1648
        %1651 = vst.msk [vmem:[%s779] sm:$0xff] %vm765, %v1649
        %1652 = vrot.lane.b32.xlu0 %v1633, 88
        %v1653 = vpop.permute.xlu0 %1652
        %1655 = vst.msk [vmem:[%s784] sm:$0xff] %vm765, %v1653
        %1656 = vrot.lane.b32.xlu0 %v1633, 56
        %v1657 = vpop.permute.xlu0 %1656
        %1659 = vst.msk [vmem:[%s789] sm:$0xff] %vm765, %v1657
        %1660 = vrot.lane.b32.xlu0 %v1633, 112
        %v1661 = vpop.permute.xlu0 %1660
        %1663 = vst.msk [vmem:[%s794] sm:$0xff] %vm765, %v1661
        %1664 = vrot.lane.b32.xlu0 %v1633, 80
        %v1665 = vpop.permute.xlu0 %1664
        %1667 = vst.msk [vmem:[%s799] sm:$0xff] %vm765, %v1665
        %1668 = vrot.lane.b32.xlu0 %v1633, 48
        %v1669 = vpop.permute.xlu0 %1668
        %1671 = vst.msk [vmem:[%s804] sm:$0xff] %vm765, %v1669
        %1672 = vrot.lane.b32.xlu0 %v1633, 104
        %v1673 = vpop.permute.xlu0 %1672
        %1675 = vst.msk [vmem:[%s809] sm:$0xff] %vm765, %v1673
        %1676 = vrot.lane.b32.xlu0 %v1633, 72
        %v1677 = vpop.permute.xlu0 %1676
        %1679 = vst.msk [vmem:[%s814] sm:$0xff] %vm765, %v1677
        %1680 = vrot.lane.b32.xlu0 %v1633, 40
        %v1681 = vpop.permute.xlu0 %1680
        %1683 = vst.msk [vmem:[%s819] sm:$0xff] %vm765, %v1681
        %v1684 = vld [vmem:[#allocation2] sm:$0xff]
        %v1685 = vld [vmem:[#allocation2 + $0x8] sm:$0xff]
        %v1686 = vld [vmem:[#allocation2 + $0x10] sm:$0xff]
        %v1687 = vld [vmem:[#allocation2 + $0x18] sm:$0xff]
        %v1688 = vpack.c.bf16 %v1684, %v1684
        %v1689 = vpack.c.bf16 %v1685, %v1685
        %v1690 = vpack.c.bf16 %v1686, %v1686
        %v1691 = vpack.c.bf16 %v1687, %v1687
        %v1692 = vld [vmem:[#allocation3] sm:$0xff]
        %v1693 = vld [vmem:[#allocation3 + $0x8] sm:$0xff]
        %v1694 = vld [vmem:[#allocation3 + $0x10] sm:$0xff]
        %v1695 = vld [vmem:[#allocation3 + $0x18] sm:$0xff]
        %v1696 = vpack.c.bf16 %v1692, %v1692
        %v1697 = vpack.c.bf16 %v1693, %v1693
        %v1698 = vpack.c.bf16 %v1694, %v1694
        %v1699 = vpack.c.bf16 %v1695, %v1695
        %v1700 = vld [vmem:[#allocation4] sm:$0xff]
        %v1701 = vld [vmem:[#allocation4 + $0x8] sm:$0xff]
        %v1702 = vld [vmem:[#allocation4 + $0x10] sm:$0xff]
        %v1703 = vld [vmem:[#allocation4 + $0x18] sm:$0xff]
        %v1704 = vpack.c.bf16 %v1700, %v1700
        %v1705 = vpack.c.bf16 %v1701, %v1701
        %v1706 = vpack.c.bf16 %v1702, %v1702
        %v1707 = vpack.c.bf16 %v1703, %v1703
        %v1709 = vsel %vm765, %v1688, 0
        %v1712 = vsel %vm765, %v1696, 0
        %1714 = vmatprep.subr.bf16.mxu0 0
        %1715 = vmatpush1.bf16.xpose.msra.mxu0 %v1712
        %1716 = vmatprep.subr.bf16.mxu0 0
        %1717 = vmatpush1.bf16.xpose.msra.mxu0 0
        %1718 = vmatprep.subr.bf16.mxu0 0
        %1719 = vmatpush1.bf16.xpose.msra.mxu0 0
        %1720 = vmatprep.subr.bf16.mxu0 0
        %1721 = vmatpush1.bf16.xpose.msra.mxu0 0
        %1722 = vmatprep.subr.bf16.mxu0 0
        %1723 = vmatpush1.bf16.xpose.msra.mxu0 0
        %1724 = vmatprep.subr.bf16.mxu0 0
        %1725 = vmatpush1.bf16.xpose.msra.mxu0 0
        %1726 = vmatprep.subr.bf16.mxu0 0
        %1727 = vmatpush1.bf16.xpose.msra.mxu0 0
        %1728 = vmatprep.subr.bf16.mxu0 0
        %1729 = vmatpush1.bf16.xpose.msra.mxu0 0
        %1730 = vmatprep.subr.bf16.mxu0 0
        %1731 = vmatpush1.bf16.xpose.msra.mxu0 0
        %1732 = vmatprep.subr.bf16.mxu0 0
        %1733 = vmatpush1.bf16.xpose.msra.mxu0 0
        %1734 = vmatprep.subr.bf16.mxu0 0
        %1735 = vmatpush1.bf16.xpose.msra.mxu0 0
        %1736 = vmatprep.subr.bf16.mxu0 0
        %1737 = vmatpush1.bf16.xpose.msra.mxu0 0
        %1738 = vmatprep.subr.bf16.mxu0 0
        %1739 = vmatpush1.bf16.xpose.msra.mxu0 0
        %1740 = vmatprep.subr.bf16.mxu0 0
        %1741 = vmatpush1.bf16.xpose.msra.mxu0 0
        %1742 = vmatprep.subr.bf16.mxu0 0
        %1743 = vmatpush1.bf16.xpose.msra.mxu0 0
        %1744 = vmatprep.subr.bf16.mxu0 0
        %1745 = vmatpush1.bf16.xpose.msra.mxu0 0
        %1746 = vmatprep.mubr.bf16.mxu0 0
        %1747 = vmatmul.mubr.bf16.gmra.mrb[0].mxu0 %v1709
        %v1748 = vpop.f32.mrb[0].mxu0
        %v1749 = vadd.f32 0.0, %v1748
        %v1750 = vpop.f32.mrb[0].mxu0
        %v1751 = vpop.f32.mrb[0].mxu0
        %v1752 = vpop.f32.mrb[0].mxu0
        %1753 = vdwg.mxu0
        %v1755 = vsel %vm765, %v1689, 0
        %v1758 = vsel %vm765, %v1697, 0
        %1760 = vmatprep.subr.bf16.mxu0 0
        %1761 = vmatpush1.bf16.xpose.msra.mxu0 %v1758
        %1762 = vmatprep.subr.bf16.mxu0 0
        %1763 = vmatpush1.bf16.xpose.msra.mxu0 0
        %1764 = vmatprep.subr.bf16.mxu0 0
        %1765 = vmatpush1.bf16.xpose.msra.mxu0 0
        %1766 = vmatprep.subr.bf16.mxu0 0
        %1767 = vmatpush1.bf16.xpose.msra.mxu0 0
        %1768 = vmatprep.subr.bf16.mxu0 0
        %1769 = vmatpush1.bf16.xpose.msra.mxu0 0
        %1770 = vmatprep.subr.bf16.mxu0 0
        %1771 = vmatpush1.bf16.xpose.msra.mxu0 0
        %1772 = vmatprep.subr.bf16.mxu0 0
        %1773 = vmatpush1.bf16.xpose.msra.mxu0 0
        %1774 = vmatprep.subr.bf16.mxu0 0
        %1775 = vmatpush1.bf16.xpose.msra.mxu0 0
        %1776 = vmatprep.subr.bf16.mxu0 0
        %1777 = vmatpush1.bf16.xpose.msra.mxu0 0
        %1778 = vmatprep.subr.bf16.mxu0 0
        %1779 = vmatpush1.bf16.xpose.msra.mxu0 0
        %1780 = vmatprep.subr.bf16.mxu0 0
        %1781 = vmatpush1.bf16.xpose.msra.mxu0 0
        %1782 = vmatprep.subr.bf16.mxu0 0
        %1783 = vmatpush1.bf16.xpose.msra.mxu0 0
        %1784 = vmatprep.subr.bf16.mxu0 0
        %1785 = vmatpush1.bf16.xpose.msra.mxu0 0
        %1786 = vmatprep.subr.bf16.mxu0 0
        %1787 = vmatpush1.bf16.xpose.msra.mxu0 0
        %1788 = vmatprep.subr.bf16.mxu0 0
        %1789 = vmatpush1.bf16.xpose.msra.mxu0 0
        %1790 = vmatprep.subr.bf16.mxu0 0
        %1791 = vmatpush1.bf16.xpose.msra.mxu0 0
        %1792 = vmatprep.mubr.bf16.mxu0 0
        %1793 = vmatmul.mubr.bf16.gmra.mrb[0].mxu0 %v1755
        %v1794 = vpop.f32.mrb[0].mxu0
        %v1795 = vadd.f32 0.0, %v1794
        %v1796 = vpop.f32.mrb[0].mxu0
        %v1797 = vpop.f32.mrb[0].mxu0
        %v1798 = vpop.f32.mrb[0].mxu0
        %1799 = vdwg.mxu0
        %v1801 = vsel %vm765, %v1690, 0
        %v1804 = vsel %vm765, %v1698, 0
        %1806 = vmatprep.subr.bf16.mxu0 0
        %1807 = vmatpush1.bf16.xpose.msra.mxu0 %v1804
        %1808 = vmatprep.subr.bf16.mxu0 0
        %1809 = vmatpush1.bf16.xpose.msra.mxu0 0
        %1810 = vmatprep.subr.bf16.mxu0 0
        %1811 = vmatpush1.bf16.xpose.msra.mxu0 0
        %1812 = vmatprep.subr.bf16.mxu0 0
        %1813 = vmatpush1.bf16.xpose.msra.mxu0 0
        %1814 = vmatprep.subr.bf16.mxu0 0
        %1815 = vmatpush1.bf16.xpose.msra.mxu0 0
        %1816 = vmatprep.subr.bf16.mxu0 0
        %1817 = vmatpush1.bf16.xpose.msra.mxu0 0
        %1818 = vmatprep.subr.bf16.mxu0 0
        %1819 = vmatpush1.bf16.xpose.msra.mxu0 0
        %1820 = vmatprep.subr.bf16.mxu0 0
        %1821 = vmatpush1.bf16.xpose.msra.mxu0 0
        %1822 = vmatprep.subr.bf16.mxu0 0
        %1823 = vmatpush1.bf16.xpose.msra.mxu0 0
        %1824 = vmatprep.subr.bf16.mxu0 0
        %1825 = vmatpush1.bf16.xpose.msra.mxu0 0
        %1826 = vmatprep.subr.bf16.mxu0 0
        %1827 = vmatpush1.bf16.xpose.msra.mxu0 0
        %1828 = vmatprep.subr.bf16.mxu0 0
        %1829 = vmatpush1.bf16.xpose.msra.mxu0 0
        %1830 = vmatprep.subr.bf16.mxu0 0
        %1831 = vmatpush1.bf16.xpose.msra.mxu0 0
        %1832 = vmatprep.subr.bf16.mxu0 0
        %1833 = vmatpush1.bf16.xpose.msra.mxu0 0
        %1834 = vmatprep.subr.bf16.mxu0 0
        %1835 = vmatpush1.bf16.xpose.msra.mxu0 0
        %1836 = vmatprep.subr.bf16.mxu0 0
        %1837 = vmatpush1.bf16.xpose.msra.mxu0 0
        %1838 = vmatprep.mubr.bf16.mxu0 0
        %1839 = vmatmul.mubr.bf16.gmra.mrb[0].mxu0 %v1801
        %v1840 = vpop.f32.mrb[0].mxu0
        %v1841 = vadd.f32 0.0, %v1840
        %v1842 = vpop.f32.mrb[0].mxu0
        %v1843 = vpop.f32.mrb[0].mxu0
        %v1844 = vpop.f32.mrb[0].mxu0
        %1845 = vdwg.mxu0
        %v1847 = vsel %vm765, %v1691, 0
        %v1850 = vsel %vm765, %v1699, 0
        %1852 = vmatprep.subr.bf16.mxu0 0
        %1853 = vmatpush1.bf16.xpose.msra.mxu0 %v1850
        %1854 = vmatprep.subr.bf16.mxu0 0
        %1855 = vmatpush1.bf16.xpose.msra.mxu0 0
        %1856 = vmatprep.subr.bf16.mxu0 0
        %1857 = vmatpush1.bf16.xpose.msra.mxu0 0
        %1858 = vmatprep.subr.bf16.mxu0 0
        %1859 = vmatpush1.bf16.xpose.msra.mxu0 0
        %1860 = vmatprep.subr.bf16.mxu0 0
        %1861 = vmatpush1.bf16.xpose.msra.mxu0 0
        %1862 = vmatprep.subr.bf16.mxu0 0
        %1863 = vmatpush1.bf16.xpose.msra.mxu0 0
        %1864 = vmatprep.subr.bf16.mxu0 0
        %1865 = vmatpush1.bf16.xpose.msra.mxu0 0
        %1866 = vmatprep.subr.bf16.mxu0 0
        %1867 = vmatpush1.bf16.xpose.msra.mxu0 0
        %1868 = vmatprep.subr.bf16.mxu0 0
        %1869 = vmatpush1.bf16.xpose.msra.mxu0 0
        %1870 = vmatprep.subr.bf16.mxu0 0
        %1871 = vmatpush1.bf16.xpose.msra.mxu0 0
        %1872 = vmatprep.subr.bf16.mxu0 0
        %1873 = vmatpush1.bf16.xpose.msra.mxu0 0
        %1874 = vmatprep.subr.bf16.mxu0 0
        %1875 = vmatpush1.bf16.xpose.msra.mxu0 0
        %1876 = vmatprep.subr.bf16.mxu0 0
        %1877 = vmatpush1.bf16.xpose.msra.mxu0 0
        %1878 = vmatprep.subr.bf16.mxu0 0
        %1879 = vmatpush1.bf16.xpose.msra.mxu0 0
        %1880 = vmatprep.subr.bf16.mxu0 0
        %1881 = vmatpush1.bf16.xpose.msra.mxu0 0
        %1882 = vmatprep.subr.bf16.mxu0 0
        %1883 = vmatpush1.bf16.xpose.msra.mxu0 0
        %1884 = vmatprep.mubr.bf16.mxu0 0
        %1885 = vmatmul.mubr.bf16.gmra.mrb[0].mxu0 %v1847
        %v1886 = vpop.f32.mrb[0].mxu0
        %v1887 = vadd.f32 0.0, %v1886
        %v1888 = vpop.f32.mrb[0].mxu0
        %v1889 = vpop.f32.mrb[0].mxu0
        %v1890 = vpop.f32.mrb[0].mxu0
        %1891 = vdwg.mxu0
        %v1892 = vmul.f32 %v1749, 0.35355338
        %v1893 = vmul.f32 %v1795, 0.35355338
        %v1894 = vmul.f32 %v1841, 0.35355338
        %v1895 = vmul.f32 %v1887, 0.35355338
        %v1896 = vadd.f32 %v1892, %v665
        %v1897 = vadd.f32 %v1893, %v665
        %v1898 = vadd.f32 %v1894, %v665
        %v1899 = vadd.f32 %v1895, %v665
        %v1900 = vsel %vm765, %v1896, -inf
        %1901 = vmax.xlane.f32.xlu0 %v1900
        %v1902 = vpop.xlane.xlu0 %1901
        %v1903 = vsel %vm765, %v1897, -inf
        %1904 = vmax.xlane.f32.xlu0 %v1903
        %v1905 = vpop.xlane.xlu0 %1904
        %v1906 = vsel %vm765, %v1898, -inf
        %1907 = vmax.xlane.f32.xlu0 %v1906
        %v1908 = vpop.xlane.xlu0 %1907
        %v1909 = vsel %vm765, %v1899, -inf
        %1910 = vmax.xlane.f32.xlu0 %v1909
        %v1911 = vpop.xlane.xlu0 %1910
        %v1912 = vsub.f32 %v1896, %v1902
        %v1913 = vsub.f32 %v1897, %v1905
        %v1914 = vsub.f32 %v1898, %v1908
        %v1915 = vsub.f32 %v1899, %v1911
        %v1916 = vmul.f32 %v1912, 1.442695
        %v1917 = vpow.pop %v1916
        %v1918 = vmul.f32 %v1913, 1.442695
        %v1919 = vpow.pop %v1918
        %v1920 = vmul.f32 %v1914, 1.442695
        %v1921 = vpow.pop %v1920
        %v1922 = vmul.f32 %v1915, 1.442695
        %v1923 = vpow.pop %v1922
        %v1924 = vsel %vm765, %v1917, 0.0
        %1925 = vadd.xlane.f32.xlu0 %v1924
        %v1926 = vpop.xlane.xlu0 %1925
        %v1927 = vsel %vm765, %v1919, 0.0
        %1928 = vadd.xlane.f32.xlu0 %v1927
        %v1929 = vpop.xlane.xlu0 %1928
        %v1930 = vsel %vm765, %v1921, 0.0
        %1931 = vadd.xlane.f32.xlu0 %v1930
        %v1932 = vpop.xlane.xlu0 %1931
        %v1933 = vsel %vm765, %v1923, 0.0
        %1934 = vadd.xlane.f32.xlu0 %v1933
        %v1935 = vpop.xlane.xlu0 %1934
        %v1936 = vrcp.pop %v1926
        %v1937 = vrcp.pop %v1929
        %v1938 = vrcp.pop %v1932
        %v1939 = vrcp.pop %v1935
        %v1940 = vmul.f32 %v1917, %v1936
        %v1941 = vmul.f32 %v1919, %v1937
        %v1942 = vmul.f32 %v1921, %v1938
        %v1943 = vmul.f32 %v1923, %v1939
        %v1944 = vpack.c.bf16 %v1940, %v1940
        %v1945 = vpack.c.bf16 %v1941, %v1941
        %v1946 = vpack.c.bf16 %v1942, %v1942
        %v1947 = vpack.c.bf16 %v1943, %v1943
        %v1949 = vsel %vm765, %v1944, 0
        %v1952 = vsel %vm1088, %v1704, 0
        %1954 = vmatprep.subr.bf16.mxu0 0
        %1955 = vmatpush1.bf16.msra.mxu0 %v1952
        %1956 = vmatprep.subr.bf16.mxu0 0
        %1957 = vmatpush1.bf16.msra.mxu0 0
        %1958 = vmatprep.subr.bf16.mxu0 0
        %1959 = vmatpush1.bf16.msra.mxu0 0
        %1960 = vmatprep.subr.bf16.mxu0 0
        %1961 = vmatpush1.bf16.msra.mxu0 0
        %1962 = vmatprep.subr.bf16.mxu0 0
        %1963 = vmatpush1.bf16.msra.mxu0 0
        %1964 = vmatprep.subr.bf16.mxu0 0
        %1965 = vmatpush1.bf16.msra.mxu0 0
        %1966 = vmatprep.subr.bf16.mxu0 0
        %1967 = vmatpush1.bf16.msra.mxu0 0
        %1968 = vmatprep.subr.bf16.mxu0 0
        %1969 = vmatpush1.bf16.msra.mxu0 0
        %1970 = vmatprep.subr.bf16.mxu0 0
        %1971 = vmatpush1.bf16.msra.mxu0 0
        %1972 = vmatprep.subr.bf16.mxu0 0
        %1973 = vmatpush1.bf16.msra.mxu0 0
        %1974 = vmatprep.subr.bf16.mxu0 0
        %1975 = vmatpush1.bf16.msra.mxu0 0
        %1976 = vmatprep.subr.bf16.mxu0 0
        %1977 = vmatpush1.bf16.msra.mxu0 0
        %1978 = vmatprep.subr.bf16.mxu0 0
        %1979 = vmatpush1.bf16.msra.mxu0 0
        %1980 = vmatprep.subr.bf16.mxu0 0
        %1981 = vmatpush1.bf16.msra.mxu0 0
        %1982 = vmatprep.subr.bf16.mxu0 0
        %1983 = vmatpush1.bf16.msra.mxu0 0
        %1984 = vmatprep.subr.bf16.mxu0 0
        %1985 = vmatpush1.bf16.msra.mxu0 0
        %1986 = vmatprep.mubr.bf16.mxu0 0
        %1987 = vmatmul.mubr.bf16.gmra.mrb[0].mxu0 %v1949
        %v1988 = vpop.f32.mrb[0].mxu0
        %v1989 = vadd.f32 0.0, %v1988
        %v1990 = vpop.f32.mrb[0].mxu0
        %v1991 = vpop.f32.mrb[0].mxu0
        %v1992 = vpop.f32.mrb[0].mxu0
        %1993 = vdwg.mxu0
        %v1995 = vsel %vm765, %v1945, 0
        %v1998 = vsel %vm1088, %v1705, 0
        %2000 = vmatprep.subr.bf16.mxu0 0
        %2001 = vmatpush1.bf16.msra.mxu0 %v1998
        %2002 = vmatprep.subr.bf16.mxu0 0
        %2003 = vmatpush1.bf16.msra.mxu0 0
        %2004 = vmatprep.subr.bf16.mxu0 0
        %2005 = vmatpush1.bf16.msra.mxu0 0
        %2006 = vmatprep.subr.bf16.mxu0 0
        %2007 = vmatpush1.bf16.msra.mxu0 0
        %2008 = vmatprep.subr.bf16.mxu0 0
        %2009 = vmatpush1.bf16.msra.mxu0 0
        %2010 = vmatprep.subr.bf16.mxu0 0
        %2011 = vmatpush1.bf16.msra.mxu0 0
        %2012 = vmatprep.subr.bf16.mxu0 0
        %2013 = vmatpush1.bf16.msra.mxu0 0
        %2014 = vmatprep.subr.bf16.mxu0 0
        %2015 = vmatpush1.bf16.msra.mxu0 0
        %2016 = vmatprep.subr.bf16.mxu0 0
        %2017 = vmatpush1.bf16.msra.mxu0 0
        %2018 = vmatprep.subr.bf16.mxu0 0
        %2019 = vmatpush1.bf16.msra.mxu0 0
        %2020 = vmatprep.subr.bf16.mxu0 0
        %2021 = vmatpush1.bf16.msra.mxu0 0
        %2022 = vmatprep.subr.bf16.mxu0 0
        %2023 = vmatpush1.bf16.msra.mxu0 0
        %2024 = vmatprep.subr.bf16.mxu0 0
        %2025 = vmatpush1.bf16.msra.mxu0 0
        %2026 = vmatprep.subr.bf16.mxu0 0
        %2027 = vmatpush1.bf16.msra.mxu0 0
        %2028 = vmatprep.subr.bf16.mxu0 0
        %2029 = vmatpush1.bf16.msra.mxu0 0
        %2030 = vmatprep.subr.bf16.mxu0 0
        %2031 = vmatpush1.bf16.msra.mxu0 0
        %2032 = vmatprep.mubr.bf16.mxu0 0
        %2033 = vmatmul.mubr.bf16.gmra.mrb[0].mxu0 %v1995
        %v2034 = vpop.f32.mrb[0].mxu0
        %v2035 = vadd.f32 0.0, %v2034
        %v2036 = vpop.f32.mrb[0].mxu0
        %v2037 = vpop.f32.mrb[0].mxu0
        %v2038 = vpop.f32.mrb[0].mxu0
        %2039 = vdwg.mxu0
        %v2041 = vsel %vm765, %v1946, 0
        %v2044 = vsel %vm1088, %v1706, 0
        %2046 = vmatprep.subr.bf16.mxu0 0
        %2047 = vmatpush1.bf16.msra.mxu0 %v2044
        %2048 = vmatprep.subr.bf16.mxu0 0
        %2049 = vmatpush1.bf16.msra.mxu0 0
        %2050 = vmatprep.subr.bf16.mxu0 0
        %2051 = vmatpush1.bf16.msra.mxu0 0
        %2052 = vmatprep.subr.bf16.mxu0 0
        %2053 = vmatpush1.bf16.msra.mxu0 0
        %2054 = vmatprep.subr.bf16.mxu0 0
        %2055 = vmatpush1.bf16.msra.mxu0 0
        %2056 = vmatprep.subr.bf16.mxu0 0
        %2057 = vmatpush1.bf16.msra.mxu0 0
        %2058 = vmatprep.subr.bf16.mxu0 0
        %2059 = vmatpush1.bf16.msra.mxu0 0
        %2060 = vmatprep.subr.bf16.mxu0 0
        %2061 = vmatpush1.bf16.msra.mxu0 0
        %2062 = vmatprep.subr.bf16.mxu0 0
        %2063 = vmatpush1.bf16.msra.mxu0 0
        %2064 = vmatprep.subr.bf16.mxu0 0
        %2065 = vmatpush1.bf16.msra.mxu0 0
        %2066 = vmatprep.subr.bf16.mxu0 0
        %2067 = vmatpush1.bf16.msra.mxu0 0
        %2068 = vmatprep.subr.bf16.mxu0 0
        %2069 = vmatpush1.bf16.msra.mxu0 0
        %2070 = vmatprep.subr.bf16.mxu0 0
        %2071 = vmatpush1.bf16.msra.mxu0 0
        %2072 = vmatprep.subr.bf16.mxu0 0
        %2073 = vmatpush1.bf16.msra.mxu0 0
        %2074 = vmatprep.subr.bf16.mxu0 0
        %2075 = vmatpush1.bf16.msra.mxu0 0
        %2076 = vmatprep.subr.bf16.mxu0 0
        %2077 = vmatpush1.bf16.msra.mxu0 0
        %2078 = vmatprep.mubr.bf16.mxu0 0
        %2079 = vmatmul.mubr.bf16.gmra.mrb[0].mxu0 %v2041
        %v2080 = vpop.f32.mrb[0].mxu0
        %v2081 = vadd.f32 0.0, %v2080
        %v2082 = vpop.f32.mrb[0].mxu0
        %v2083 = vpop.f32.mrb[0].mxu0
        %v2084 = vpop.f32.mrb[0].mxu0
        %2085 = vdwg.mxu0
        %v2087 = vsel %vm765, %v1947, 0
        %v2090 = vsel %vm1088, %v1707, 0
        %2092 = vmatprep.subr.bf16.mxu0 0
        %2093 = vmatpush1.bf16.msra.mxu0 %v2090
        %2094 = vmatprep.subr.bf16.mxu0 0
        %2095 = vmatpush1.bf16.msra.mxu0 0
        %2096 = vmatprep.subr.bf16.mxu0 0
        %2097 = vmatpush1.bf16.msra.mxu0 0
        %2098 = vmatprep.subr.bf16.mxu0 0
        %2099 = vmatpush1.bf16.msra.mxu0 0
        %2100 = vmatprep.subr.bf16.mxu0 0
        %2101 = vmatpush1.bf16.msra.mxu0 0
        %2102 = vmatprep.subr.bf16.mxu0 0
        %2103 = vmatpush1.bf16.msra.mxu0 0
        %2104 = vmatprep.subr.bf16.mxu0 0
        %2105 = vmatpush1.bf16.msra.mxu0 0
        %2106 = vmatprep.subr.bf16.mxu0 0
        %2107 = vmatpush1.bf16.msra.mxu0 0
        %2108 = vmatprep.subr.bf16.mxu0 0
        %2109 = vmatpush1.bf16.msra.mxu0 0
        %2110 = vmatprep.subr.bf16.mxu0 0
        %2111 = vmatpush1.bf16.msra.mxu0 0
        %2112 = vmatprep.subr.bf16.mxu0 0
        %2113 = vmatpush1.bf16.msra.mxu0 0
        %2114 = vmatprep.subr.bf16.mxu0 0
        %2115 = vmatpush1.bf16.msra.mxu0 0
        %2116 = vmatprep.subr.bf16.mxu0 0
        %2117 = vmatpush1.bf16.msra.mxu0 0
        %2118 = vmatprep.subr.bf16.mxu0 0
        %2119 = vmatpush1.bf16.msra.mxu0 0
        %2120 = vmatprep.subr.bf16.mxu0 0
        %2121 = vmatpush1.bf16.msra.mxu0 0
        %2122 = vmatprep.subr.bf16.mxu0 0
        %2123 = vmatpush1.bf16.msra.mxu0 0
        %2124 = vmatprep.mubr.bf16.mxu0 0
        %2125 = vmatmul.mubr.bf16.gmra.mrb[0].mxu0 %v2087
        %v2126 = vpop.f32.mrb[0].mxu0
        %v2127 = vadd.f32 0.0, %v2126
        %v2128 = vpop.f32.mrb[0].mxu0
        %v2129 = vpop.f32.mrb[0].mxu0
        %v2130 = vpop.f32.mrb[0].mxu0
        %2131 = vdwg.mxu0
        %2132 = vst.msk [vmem:[#allocation5] sm:$0xff] %vm765, %v1989
        %2134 = vrot.lane.b32.xlu0 %v2035, 8
        %v2135 = vpop.permute.xlu0 %2134
        %2137 = vst.msk [vmem:[#allocation5] sm:$0xff] %vm1275, %v2135
        %2139 = vrot.lane.b32.xlu0 %v2081, 16
        %v2140 = vpop.permute.xlu0 %2139
        %2142 = vst.msk [vmem:[#allocation5] sm:$0xff] %vm1281, %v2140
        %2144 = vrot.lane.b32.xlu0 %v2127, 24
        %v2145 = vpop.permute.xlu0 %2144
        %2147 = vst.msk [vmem:[#allocation5] sm:$0xff] %vm1287, %v2145
        %v2148 = vld [vmem:[#allocation5] sm:$0xff]
        %v2149 = vpack.c.bf16 %v2148, %v2148
        %s2150 = scalar_lea.vmem %s6, 16
        %v2151 = vld [vmem:[%s2150] sm:$0xf]
        %v2152 = vld [vmem:[%s2150 + $0x4] sm:$0xf]
        %v2153 = vld [vmem:[%s2150 + $0x8] sm:$0xf]
        %v2154 = vld [vmem:[%s2150 + $0xc] sm:$0xf]
        %s2155 = scalar_lea.vmem [#allocation8], 1
        %v2156 = vld [vmem:[%s2155] sm:$0x1]
        %v2158 = vlaneseq
        %v2159 = vshrl.u32 %v2158, 7
        %v2160 = vsub.s32 0, %v2159
        %v2161 = vrot.slane %v2156, %v2160
        %v2167 = vunpack.c.l.b16 %v2151
        %v2168 = vunpack.c.l.b16 %v2152
        %v2169 = vunpack.c.l.b16 %v2153
        %v2170 = vunpack.c.l.b16 %v2154
        %v2171 = vpack.c.b16 %v2168, %v2167
        %v2172 = vpack.c.b16 %v2170, %v2169
        %v2176 = vsel %vm669, %v2149, 0
        %2178 = vmatprep.subr.bf16.mxu0 0
        %2179 = vmatpush1.bf16.msra.mxu0 %v2171
        %2180 = vmatprep.subr.bf16.mxu0 0
        %2181 = vmatpush1.bf16.msra.mxu0 %v2172
        %2182 = vmatprep.subr.bf16.mxu0 0
        %2183 = vmatpush1.bf16.msra.mxu0 0
        %2184 = vmatprep.subr.bf16.mxu0 0
        %2185 = vmatpush1.bf16.msra.mxu0 0
        %2186 = vmatprep.subr.bf16.mxu0 0
        %2187 = vmatpush1.bf16.msra.mxu0 0
        %2188 = vmatprep.subr.bf16.mxu0 0
        %2189 = vmatpush1.bf16.msra.mxu0 0
        %2190 = vmatprep.subr.bf16.mxu0 0
        %2191 = vmatpush1.bf16.msra.mxu0 0
        %2192 = vmatprep.subr.bf16.mxu0 0
        %2193 = vmatpush1.bf16.msra.mxu0 0
        %2194 = vmatprep.subr.bf16.mxu0 0
        %2195 = vmatpush1.bf16.msra.mxu0 0
        %2196 = vmatprep.subr.bf16.mxu0 0
        %2197 = vmatpush1.bf16.msra.mxu0 0
        %2198 = vmatprep.subr.bf16.mxu0 0
        %2199 = vmatpush1.bf16.msra.mxu0 0
        %2200 = vmatprep.subr.bf16.mxu0 0
        %2201 = vmatpush1.bf16.msra.mxu0 0
        %2202 = vmatprep.subr.bf16.mxu0 0
        %2203 = vmatpush1.bf16.msra.mxu0 0
        %2204 = vmatprep.subr.bf16.mxu0 0
        %2205 = vmatpush1.bf16.msra.mxu0 0
        %2206 = vmatprep.subr.bf16.mxu0 0
        %2207 = vmatpush1.bf16.msra.mxu0 0
        %2208 = vmatprep.subr.bf16.mxu0 0
        %2209 = vmatpush1.bf16.msra.mxu0 0
        %2210 = vmatprep.mubr.bf16.mxu0 0
        %2211 = vmatmul.mubr.bf16.gmra.mrb[0].mxu0 %v2176
        %v2212 = vpop.f32.mrb[0].mxu0
        %v2213 = vadd.f32 %v2161, %v2212
        %v2214 = vpop.f32.mrb[0].mxu0
        %v2215 = vpop.f32.mrb[0].mxu0
        %v2216 = vpop.f32.mrb[0].mxu0
        %2217 = vdwg.mxu0
        %v2218 = vadd.f32 %v1568, %v2213
        %s2219 = scalar_lea.vmem %s8, 1
        %v2220 = vld [vmem:[%s2219] sm:$0x1]
        %s2221 = scalar_lea.vmem %s9, 1
        %v2222 = vld [vmem:[%s2221] sm:$0x1]
        %v2223 = vsel %vm669, %v2218, 0.0
        %2224 = vadd.xlane.f32.xlu0 %v2223
        %v2225 = vpop.xlane.xlu0 %2224
        %v2226 = vmul.f32 %v2225, %v673
        %v2227 = vsub.f32 %v2218, %v2226
        %v2228 = vmul.f32 %v2227, %v2227
        %v2229 = vsel %vm669, %v2228, 0.0
        %2230 = vadd.xlane.f32.xlu0 %v2229
        %v2231 = vpop.xlane.xlu0 %2230
        %v2232 = vmul.f32 %v2231, %v673
        %v2233 = vadd.f32 %v2232, 1e-05
        %v2234 = vrsqrt.pop %v2233
        %v2235 = vmul.f32 %v2227, %v2234
        %v2237 = vlaneseq
        %v2238 = vshrl.u32 %v2237, 7
        %v2239 = vsub.s32 0, %v2238
        %v2240 = vrot.slane %v2220, %v2239
        %v2242 = vmul.f32 %v2235, %v2240
        %v2244 = vlaneseq
        %v2245 = vshrl.u32 %v2244, 7
        %v2246 = vsub.s32 0, %v2245
        %v2247 = vrot.slane %v2222, %v2246
        %v2249 = vadd.f32 %v2242, %v2247
        %v2250 = vpack.c.bf16 %v2249, %v2249
        %s2251 = scalar_lea.vmem [#allocation10], 16
        %v2252 = vld [vmem:[%s2251] sm:$0xf]
        %v2253 = vld [vmem:[%s2251 + $0x4] sm:$0xf]
        %v2254 = vld [vmem:[%s2251 + $0x8] sm:$0xf]
        %v2255 = vld [vmem:[%s2251 + $0xc] sm:$0xf]
        %s2256 = scalar_lea.vmem [#allocation11], 1
        %v2257 = vld [vmem:[%s2256] sm:$0x1]
        %v2259 = vlaneseq
        %v2260 = vshrl.u32 %v2259, 7
        %v2261 = vsub.s32 0, %v2260
        %v2262 = vrot.slane %v2257, %v2261
        %v2268 = vunpack.c.l.b16 %v2252
        %v2269 = vunpack.c.l.b16 %v2253
        %v2270 = vunpack.c.l.b16 %v2254
        %v2271 = vunpack.c.l.b16 %v2255
        %v2272 = vpack.c.b16 %v2269, %v2268
        %v2273 = vpack.c.b16 %v2271, %v2270
        %v2277 = vsel %vm669, %v2250, 0
        %2279 = vmatprep.subr.bf16.mxu0 0
        %2280 = vmatpush1.bf16.msra.mxu0 %v2272
        %2281 = vmatprep.subr.bf16.mxu0 0
        %2282 = vmatpush1.bf16.msra.mxu0 %v2273
        %2283 = vmatprep.subr.bf16.mxu0 0
        %2284 = vmatpush1.bf16.msra.mxu0 0
        %2285 = vmatprep.subr.bf16.mxu0 0
        %2286 = vmatpush1.bf16.msra.mxu0 0
        %2287 = vmatprep.subr.bf16.mxu0 0
        %2288 = vmatpush1.bf16.msra.mxu0 0
        %2289 = vmatprep.subr.bf16.mxu0 0
        %2290 = vmatpush1.bf16.msra.mxu0 0
        %2291 = vmatprep.subr.bf16.mxu0 0
        %2292 = vmatpush1.bf16.msra.mxu0 0
        %2293 = vmatprep.subr.bf16.mxu0 0
        %2294 = vmatpush1.bf16.msra.mxu0 0
        %2295 = vmatprep.subr.bf16.mxu0 0
        %2296 = vmatpush1.bf16.msra.mxu0 0
        %2297 = vmatprep.subr.bf16.mxu0 0
        %2298 = vmatpush1.bf16.msra.mxu0 0
        %2299 = vmatprep.subr.bf16.mxu0 0
        %2300 = vmatpush1.bf16.msra.mxu0 0
        %2301 = vmatprep.subr.bf16.mxu0 0
        %2302 = vmatpush1.bf16.msra.mxu0 0
        %2303 = vmatprep.subr.bf16.mxu0 0
        %2304 = vmatpush1.bf16.msra.mxu0 0
        %2305 = vmatprep.subr.bf16.mxu0 0
        %2306 = vmatpush1.bf16.msra.mxu0 0
        %2307 = vmatprep.subr.bf16.mxu0 0
        %2308 = vmatpush1.bf16.msra.mxu0 0
        %2309 = vmatprep.subr.bf16.mxu0 0
        %2310 = vmatpush1.bf16.msra.mxu0 0
        %2311 = vmatprep.mubr.bf16.mxu0 0
        %2312 = vmatmul.mubr.bf16.gmra.mrb[0].mxu0 %v2277
        %v2313 = vpop.f32.mrb[0].mxu0
        %v2314 = vadd.f32 %v2262, %v2313
        %v2315 = vpop.f32.mrb[0].mxu0
        %v2316 = vpop.f32.mrb[0].mxu0
        %v2317 = vpop.f32.mrb[0].mxu0
        %2318 = vdwg.mxu0
        %v2319 = vmax.f32 %v2314, 0.0
        %v2320 = vpack.c.bf16 %v2319, %v2319
        %s2321 = scalar_lea.vmem %s12, 32
        %v2322 = vld [vmem:[%s2321] sm:$0xf]
        %v2323 = vld [vmem:[%s2321 + $0x4] sm:$0xf]
        %v2324 = vld [vmem:[%s2321 + $0x8] sm:$0xf]
        %v2325 = vld [vmem:[%s2321 + $0xc] sm:$0xf]
        %v2326 = vld [vmem:[%s2321 + $0x10] sm:$0xf]
        %v2327 = vld [vmem:[%s2321 + $0x14] sm:$0xf]
        %v2328 = vld [vmem:[%s2321 + $0x18] sm:$0xf]
        %v2329 = vld [vmem:[%s2321 + $0x1c] sm:$0xf]
        %s2330 = scalar_lea.vmem [#allocation13], 1
        %v2331 = vld [vmem:[%s2330] sm:$0x1]
        %v2333 = vlaneseq
        %v2334 = vshrl.u32 %v2333, 7
        %v2335 = vsub.s32 0, %v2334
        %v2336 = vrot.slane %v2331, %v2335
        %v2346 = vunpack.c.l.b16 %v2322
        %v2347 = vunpack.c.l.b16 %v2323
        %v2348 = vunpack.c.l.b16 %v2324
        %v2349 = vunpack.c.l.b16 %v2325
        %v2350 = vunpack.c.l.b16 %v2326
        %v2351 = vunpack.c.l.b16 %v2327
        %v2352 = vunpack.c.l.b16 %v2328
        %v2353 = vunpack.c.l.b16 %v2329
        %v2354 = vpack.c.b16 %v2347, %v2346
        %v2355 = vpack.c.b16 %v2349, %v2348
        %v2356 = vpack.c.b16 %v2351, %v2350
        %v2357 = vpack.c.b16 %v2353, %v2352
        %v2363 = vsel %vm1495, %v2320, 0
        %2365 = vmatprep.subr.bf16.mxu0 0
        %2366 = vmatpush1.bf16.msra.mxu0 %v2354
        %2367 = vmatprep.subr.bf16.mxu0 0
        %2368 = vmatpush1.bf16.msra.mxu0 %v2355
        %2369 = vmatprep.subr.bf16.mxu0 0
        %2370 = vmatpush1.bf16.msra.mxu0 %v2356
        %2371 = vmatprep.subr.bf16.mxu0 0
        %2372 = vmatpush1.bf16.msra.mxu0 %v2357
        %2373 = vmatprep.subr.bf16.mxu0 0
        %2374 = vmatpush1.bf16.msra.mxu0 0
        %2375 = vmatprep.subr.bf16.mxu0 0
        %2376 = vmatpush1.bf16.msra.mxu0 0
        %2377 = vmatprep.subr.bf16.mxu0 0
        %2378 = vmatpush1.bf16.msra.mxu0 0
        %2379 = vmatprep.subr.bf16.mxu0 0
        %2380 = vmatpush1.bf16.msra.mxu0 0
        %2381 = vmatprep.subr.bf16.mxu0 0
        %2382 = vmatpush1.bf16.msra.mxu0 0
        %2383 = vmatprep.subr.bf16.mxu0 0
        %2384 = vmatpush1.bf16.msra.mxu0 0
        %2385 = vmatprep.subr.bf16.mxu0 0
        %2386 = vmatpush1.bf16.msra.mxu0 0
        %2387 = vmatprep.subr.bf16.mxu0 0
        %2388 = vmatpush1.bf16.msra.mxu0 0
        %2389 = vmatprep.subr.bf16.mxu0 0
        %2390 = vmatpush1.bf16.msra.mxu0 0
        %2391 = vmatprep.subr.bf16.mxu0 0
        %2392 = vmatpush1.bf16.msra.mxu0 0
        %2393 = vmatprep.subr.bf16.mxu0 0
        %2394 = vmatpush1.bf16.msra.mxu0 0
        %2395 = vmatprep.subr.bf16.mxu0 0
        %2396 = vmatpush1.bf16.msra.mxu0 0
        %2397 = vmatprep.mubr.bf16.mxu0 0
        %2398 = vmatmul.mubr.bf16.gmra.mrb[0].mxu0 %v2363
        %v2399 = vpop.f32.mrb[0].mxu0
        %v2400 = vadd.f32 %v2336, %v2399
        %v2401 = vpop.f32.mrb[0].mxu0
        %v2402 = vpop.f32.mrb[0].mxu0
        %v2403 = vpop.f32.mrb[0].mxu0
        %2404 = vdwg.mxu0
        %v2405 = vadd.f32 %v2249, %v2400
        %s2406 = scalar_lea.vmem %s14, 1
        %v2407 = vld [vmem:[%s2406] sm:$0x1]
        %s2408 = scalar_lea.vmem %s15, 1
        %v2409 = vld [vmem:[%s2408] sm:$0x1]
        %v2410 = vsel %vm669, %v2405, 0.0
        %2411 = vadd.xlane.f32.xlu0 %v2410
        %v2412 = vpop.xlane.xlu0 %2411
        %v2413 = vmul.f32 %v2412, %v673
        %v2414 = vsub.f32 %v2405, %v2413
        %v2415 = vmul.f32 %v2414, %v2414
        %v2416 = vsel %vm669, %v2415, 0.0
        %2417 = vadd.xlane.f32.xlu0 %v2416
        %v2418 = vpop.xlane.xlu0 %2417
        %v2419 = vmul.f32 %v2418, %v673
        %v2420 = vadd.f32 %v2419, 1e-05
        %v2421 = vrsqrt.pop %v2420
        %v2422 = vmul.f32 %v2414, %v2421
        %v2424 = vlaneseq
        %v2425 = vshrl.u32 %v2424, 7
        %v2426 = vsub.s32 0, %v2425
        %v2427 = vrot.slane %v2407, %v2426
        %v2429 = vmul.f32 %v2422, %v2427
        %v2431 = vlaneseq
        %v2432 = vshrl.u32 %v2431, 7
        %v2433 = vsub.s32 0, %v2432
        %v2434 = vrot.slane %v2409, %v2433
        %v2436 = vadd.f32 %v2429, %v2434
        %v2437 = vld [vmem:[%s16] sm:$0x1]
        %v2438 = vld [vmem:[%s17] sm:$0x1]
        %v2439 = vsel %vm669, %v2436, 0.0
        %2440 = vadd.xlane.f32.xlu0 %v2439
        %v2441 = vpop.xlane.xlu0 %2440
        %v2442 = vmul.f32 %v2441, %v673
        %v2443 = vsub.f32 %v2436, %v2442
        %v2444 = vmul.f32 %v2443, %v2443
        %v2445 = vsel %vm669, %v2444, 0.0
        %2446 = vadd.xlane.f32.xlu0 %v2445
        %v2447 = vpop.xlane.xlu0 %2446
        %v2448 = vmul.f32 %v2447, %v673
        %v2449 = vadd.f32 %v2448, 1e-05
        %v2450 = vrsqrt.pop %v2449
        %v2451 = vmul.f32 %v2443, %v2450
        %v2453 = vlaneseq
        %v2454 = vshrl.u32 %v2453, 7
        %v2455 = vsub.s32 0, %v2454
        %v2456 = vrot.slane %v2437, %v2455
        %v2458 = vmul.f32 %v2451, %v2456
        %v2460 = vlaneseq
        %v2461 = vshrl.u32 %v2460, 7
        %v2462 = vsub.s32 0, %v2461
        %v2463 = vrot.slane %v2438, %v2462
        %v2465 = vadd.f32 %v2458, %v2463
        %2466 = vst.msk [vmem:[%s657] sm:$0xff] %vm669, %v2465
        %p2467 = scmp.lt.s32.totalorder %s32, 1
        %s2468 = scalar_select %p2467, %s32, 1
        %s2469 = smul.addr %s2468, 8
        %s2470 = scalar_lea.vmem %s18, %s2469
        // Predicated region
        $region113: #{_lambda_.1} parent=91 // pred_check
          %p2471 = pneg %p438
        $region114: #{_lambda_.1} parent=91 // pred_check_branch
          %2473 = sbr.rel (%p2471) target = $region116
        $region115: #{_lambda_.1} parent=91 // pred_region
          _
        $region116: #{_lambda_.1} parent=91 // pred_fallthru
          _
      $region92: #{_lambda_.1} parent=5 // pred_fallthru
        _
      %p2474 = scmp.le.s32.totalorder 2, %s27
      // Predicated region
      $region117: #{_lambda_.1} parent=5 // pred_check
        %p2475 = pneg %p2474
      $region118: #{_lambda_.1} parent=5 // pred_check_branch
        %2477 = sbr.rel (%p2475) target = $region120
      $region119: #{_lambda_.1} parent=5 // pred_region
        %s2478 = ssub.s32 %s27, 2
        // Predicated region
        $region121: #{_lambda_.1} parent=119 // pred_check
          %p2479 = pneg %p444
        $region122: #{_lambda_.1} parent=119 // pred_check_branch
          %2481 = sbr.rel (%p2479) target = $region124
        $region123: #{_lambda_.1} parent=119 // pred_region
          %p2482 = scmp.lt.s32.totalorder %s33, 1
          %s2483 = scalar_select %p2482, %s33, 1
          %s2484 = smul.addr %s2483, 8
          %s2485 = scalar_lea.vmem %s18, %s2484
        $region124: #{_lambda_.1} parent=119 // pred_fallthru
          _
      $region120: #{_lambda_.1} parent=5 // pred_fallthru
        _
    $region6: #{_lambda_.1} parent=1 // loop_footer
      %s31 = sadd.s32 1, %s27
    $region7: #{_lambda_.1} parent=1 // loop_footer_branch
      %26 = sbr.rel target = $region3
    $region8: #{_lambda_.1} parent=1 // loop_exit
      _
    %2486 = vsyncpa [#allocation7], 1
    %s2487 = scalar_lea.sflag [#allocation7], 1
    %2488 = vsyncpa %s2487, 1
    %2489 = vsyncpa [#allocation9], 1
    %2490 = vsyncpa [#allocation12], 1

</llo_original>
